<compile_context>
chip_gen: v7x
topology: tpu7x:2x2x1
jax: 0.10.0
libtpu: 0.0.40
codegen_flags: <defaults>
</compile_context>

<pallas_src>
import math

import jax
import jax.numpy as jnp
from jax.experimental import pallas as pl
from jax.experimental.pallas import tpu as pltpu

BN_EPS = 0.2


def combine_kernel(x1_ref, x2_ref, wsq_ref, wscale_ref, w256_hbm, wtail_hbm,
                   b_ref, out_ref, w256_ref, wtail_ref, sem):
    # ---- kick off trunk/tail weight DMAs; they overlap the stub matmuls ----
    cp_w256 = pltpu.make_async_copy(w256_hbm, w256_ref, sem.at[0])
    cp_wtail = pltpu.make_async_copy(wtail_hbm, wtail_ref, sem.at[1])
    cp_w256.start()
    cp_wtail.start()

    def dot(x, w):
        # bf16 operands, f32 accumulation on the MXU.
        return jnp.dot(x.astype(jnp.bfloat16), w,
                       preferred_element_type=jnp.float32)

    def bn(x):
        # BatchNorm1d training mode: per-batch biased stats, gamma=1, beta=0.
        m = jnp.mean(x, axis=0, keepdims=True)
        v = jnp.mean((x - m) ** 2, axis=0, keepdims=True)
        return (x - m) * jax.lax.rsqrt(v + BN_EPS)

    def bn_relu(x):
        return bn(jnp.maximum(x, 0.0))

    # ---- backbone stub: flatten + Linear(in -> 512), int8 weight dequant ----
    wq = wsq_ref[...].astype(jnp.bfloat16)            # int8 -> bf16 (VPU, cheap)
    scale = wscale_ref[...]                           # (1, 512) f32 per-column
    b_stub = b_ref[0:1, 0:512]
    f1 = dot(x1_ref[...], wq) * scale + b_stub        # (B, 512)
    f2 = dot(x2_ref[...], wq) * scale + b_stub        # (B, 512)

    cp_w256.wait()                                    # trunk weights now in VMEM

    def trunk(f):
        # x1 -> x2 -> x11, relu then BN after each (per-stream BN stats).
        h = bn_relu(dot(f, w256_ref[0:512, :]) + b_ref[1:2, 0:256])
        h = bn_relu(dot(h, w256_ref[512:768, :]) + b_ref[2:3, 0:256])
        return bn_relu(dot(h, w256_ref[768:1024, :]) + b_ref[3:4, 0:256])

    b1 = trunk(f1)                                    # (B, 256) stream 1 branch
    b2 = trunk(f2)                                    # (B, 256) stream 2 branch

    # torch.cat((b1, b2), 1) @ W_x1c  ==  b1 @ W[:256] + b2 @ W[256:]
    c = bn_relu(dot(b1, w256_ref[1024:1280, :]) +
                dot(b2, w256_ref[1280:1536, :]) + b_ref[4:5, 0:256])   # (B,256)

    cp_wtail.wait()                                   # tail weights now in VMEM

    # ---- brk chain on the lane-packed tail slab (natural widths) ----
    d1 = bn_relu(dot(c, wtail_ref[0:256, :]) + b_ref[5:6, 0:128])       # (B,128)
    d2 = bn_relu(dot(d1, wtail_ref[256:384, 0:64]) + b_ref[6:7, 0:64])  # (B,64)
    d3 = bn_relu(dot(d2, wtail_ref[256:320, 64:96]) + b_ref[7:8, 0:32])  # (B,32)
    d4 = bn_relu(dot(d3, wtail_ref[256:288, 96:112]) + b_ref[8:9, 0:16])  # (B,16)

    # ---- fused output heads: (16,128) block, real logits in lanes 0:16,
    #      zero weights+bias in lanes 16:128 so padded lanes stay exactly 0 ----
    z = dot(d4, wtail_ref[384:400, :]) + b_ref[9:10, 0:128]             # (B,128)

    # segmented softmax over head slices [0:3] [3:6] [6:12] [12:16]
    col = jax.lax.broadcasted_iota(jnp.int32, z.shape, 1)
    probs = jnp.zeros_like(z)
    for lo, hi in ((0, 3), (3, 6), (6, 12), (12, 16)):
        mask = (col >= lo) & (col < hi)
        zm = jnp.where(mask, z, -1e30)
        m = jnp.max(zm, axis=1, keepdims=True)
        e = jnp.exp(zm - m)                 # masked-out lanes underflow to 0
        s = jnp.sum(e, axis=1, keepdims=True)
        probs = probs + e / s
    out_ref[...] = probs                    # lane-dense (B, 128) store


def _xavier_normal(key, fan_in, fan_out):
    std = (2.0 / (fan_in + fan_out)) ** 0.5
    return std * jax.random.normal(key, (fan_in, fan_out), dtype=jnp.float32)


def _default_bias(key, fan_in, fan_out):
    # PyTorch default Linear bias init: U(-1/sqrt(fan_in), 1/sqrt(fan_in)).
    bound = 1.0 / (fan_in ** 0.5)
    return jax.random.uniform(key, (fan_out,), jnp.float32,
                              minval=-bound, maxval=bound)


def init_params(key, in_features):
    layer_dims = [
        ("stub", in_features, 512),
        ("x1", 512, 256), ("x2", 256, 256), ("x11", 256, 256), ("x1c", 512, 256),
        ("brk1", 256, 128), ("brk2", 128, 64), ("brk3", 64, 32), ("brk4", 32, 16),
        ("y1o", 16, 3), ("y2o", 16, 3), ("y3o", 16, 6), ("y4o", 16, 4),
    ]
    keys = jax.random.split(key, 2 * len(layer_dims))
    w, b = {}, {}
    for i, (name, fin, fout) in enumerate(layer_dims):
        w[name] = _xavier_normal(keys[2 * i], fin, fout)
        b[name] = _default_bias(keys[2 * i + 1], fin, fout)

    # Slab 1: backbone-stub weight, int8 with per-output-column f32 scale.
    ws = w["stub"]
    wscale = jnp.maximum(jnp.max(jnp.abs(ws), axis=0, keepdims=True) / 127.0,
                         1e-12)                                   # (1, 512)
    wsq = jnp.clip(jnp.round(ws / wscale), -127, 127).astype(jnp.int8)

    # Slab 2: trunk weights with 256 output lanes, stacked along rows, bf16.
    #   rows 0:512 x1 | 512:768 x2 | 768:1024 x11 | 1024:1536 x1c
    w256 = jnp.concatenate([w["x1"], w["x2"], w["x11"], w["x1c"]],
                           axis=0).astype(jnp.bfloat16)

    # Slab 3: packed tail weights (400, 128) bf16.
    #   rows 0:256              lanes 0:128   brk1 (256,128)
    #   rows 256:384            lanes 0:64    brk2 (128,64)
    #   rows 256:320            lanes 64:96   brk3 (64,32)
    #   rows 256:288            lanes 96:112  brk4 (32,16)
    #   rows 384:400            lanes 0:16    fused heads (16,16), rest ZERO
    wy = jnp.concatenate([w["y1o"], w["y2o"], w["y3o"], w["y4o"]], axis=1)  # (16,16)
    wtail = jnp.zeros((400, 128), jnp.float32)
    wtail = wtail.at[0:256, 0:128].set(w["brk1"])
    wtail = wtail.at[256:384, 0:64].set(w["brk2"])
    wtail = wtail.at[256:320, 64:96].set(w["brk3"])
    wtail = wtail.at[256:288, 96:112].set(w["brk4"])
    wtail = wtail.at[384:400, 0:16].set(wy)
    wtail = wtail.astype(jnp.bfloat16)

    # Slab 4: all biases in one (10, 512) f32 block (zero-padded columns;
    # row 9 lanes 16:512 MUST stay zero so padded head logits stay 0).
    by = jnp.concatenate([b["y1o"], b["y2o"], b["y3o"], b["y4o"]], axis=0)  # (16,)
    bias = jnp.zeros((10, 512), jnp.float32)
    for r, (name, width) in enumerate([("stub", 512), ("x1", 256), ("x2", 256),
                                       ("x11", 256), ("x1c", 256), ("brk1", 128),
                                       ("brk2", 64), ("brk3", 32), ("brk4", 16)]):
        bias = bias.at[r, 0:width].set(b[name])
    bias = bias.at[9, 0:16].set(by)

    return wsq, wscale, w256, wtail, bias


def _nbytes(a):
    return math.prod(a.shape) * a.dtype.itemsize


@jax.jit
def combine_multi_output_forward(x1_img, x2_img, params):
    wsq, wscale, w256, wtail, bias = params
    B = x1_img.shape[0]
    IN = wsq.shape[0]
    # bf16 activations; no XLA-level stream concat (two separate VMEM inputs).
    x1_flat = x1_img.reshape(B, IN).astype(jnp.bfloat16)
    x2_flat = x2_img.reshape(B, IN).astype(jnp.bfloat16)

    vmem = pl.BlockSpec(memory_space=pltpu.MemorySpace.VMEM)
    hbm = pl.BlockSpec(memory_space=pl.ANY)

    # Advisory cost estimate so XLA schedules around the custom call.
    matmuls = [(2, IN, 512), (2, 512, 256), (2, 256, 256), (2, 256, 256),
               (2, 256, 256), (1, 256, 128), (1, 128, 64), (1, 64, 32),
               (1, 32, 16), (1, 16, 128)]
    flops = sum(2 * s * B * k * n for s, k, n in matmuls)
    transcendentals = 4 * B * 128 + (6 * 256 + 256 + 128 + 64 + 32 + 16)
    bytes_accessed = (sum(_nbytes(a) for a in
                          (x1_flat, x2_flat, wsq, wscale, w256, wtail, bias))
                      + B * 128 * 4)

    y = pl.pallas_call(
        combine_kernel,
        out_shape=jax.ShapeDtypeStruct((B, 128), jnp.float32),
        in_specs=[vmem, vmem, vmem, vmem, hbm, hbm, vmem],
        out_specs=vmem,
        scratch_shapes=[
            pltpu.VMEM((1536, 256), jnp.bfloat16),    # trunk weights landing pad
            pltpu.VMEM((400, 128), jnp.bfloat16),     # tail weights landing pad
            pltpu.SemaphoreType.DMA((2,)),
        ],
        cost_estimate=pl.CostEstimate(flops=flops,
                                      transcendentals=transcendentals,
                                      bytes_accessed=bytes_accessed),
    )(x1_flat, x2_flat, wsq, wscale, w256, wtail, bias)

    # Split the fused lane-dense head output back into (y1, y2, y3, y4).
    return y[:, 0:3], y[:, 3:6], y[:, 6:12], y[:, 12:16]


if __name__ == "__main__":
    key = jax.random.PRNGKey(0)
    k_x1, k_x2, k_params = jax.random.split(key, 3)

    B, C, H, W = 2, 4, 16, 16  # NCHW
    x1_img = jax.random.normal(k_x1, (B, C, H, W), dtype=jnp.float32)
    x2_img = jax.random.normal(k_x2, (B, C, H, W), dtype=jnp.float32)

    params = init_params(k_params, C * H * W)

    y1, y2, y3, y4 = combine_multi_output_forward(x1_img, x2_img, params)
    jax.block_until_ready((y1, y2, y3, y4))

    assert y1.shape == (B, 3) and y2.shape == (B, 3)
    assert y3.shape == (B, 6) and y4.shape == (B, 4)
    # softmax rows sum to 1
    for y in (y1, y2, y3, y4):
        assert jnp.allclose(jnp.sum(y, axis=1), 1.0, atol=1e-5)

    print("KERNEL_OK")
</pallas_src>

<mosaic_0001>
module attributes {stable_mosaic.version = 11 : i64} {
  func.func @combine_kernel(%arg0: memref<2x1024xbf16, #tpu.memory_space<vmem>>, %arg1: memref<2x1024xbf16, #tpu.memory_space<vmem>>, %arg2: memref<1024x512xi8, #tpu.memory_space<vmem>>, %arg3: memref<1x512xf32, #tpu.memory_space<vmem>>, %arg4: memref<1536x256xbf16, #tpu.memory_space<any>>, %arg5: memref<400x128xbf16, #tpu.memory_space<any>>, %arg6: memref<10x512xf32, #tpu.memory_space<vmem>>, %arg7: memref<2x128xf32, #tpu.memory_space<vmem>>, %arg8: memref<1536x256xbf16, #tpu.memory_space<vmem>>, %arg9: memref<400x128xbf16, #tpu.memory_space<vmem>>, %arg10: memref<2x!tpu.dma_semaphore, #tpu.memory_space<semaphore_mem>>) attributes {dimension_semantics = [], scalar_prefetch = 0 : i64, scratch_operands = 3 : i64, tpu.core_type = #tpu.core_type<tc>} {
    %c0_i32 = arith.constant 0 : i32
    %0 = tpu.memref_slice %arg10[%c0_i32] : memref<2x!tpu.dma_semaphore, #tpu.memory_space<semaphore_mem>> -> memref<1x!tpu.dma_semaphore, #tpu.memory_space<semaphore_mem>>
    %1 = tpu.memref_squeeze %0 : memref<1x!tpu.dma_semaphore, #tpu.memory_space<semaphore_mem>> -> memref<!tpu.dma_semaphore, #tpu.memory_space<semaphore_mem>>
    tpu.enqueue_dma source(%arg4 : memref<1536x256xbf16, #tpu.memory_space<any>>) target(%arg8 : memref<1536x256xbf16, #tpu.memory_space<vmem>>) target_semaphore(%1 : memref<!tpu.dma_semaphore, #tpu.memory_space<semaphore_mem>>)
    %c1_i32 = arith.constant 1 : i32
    %2 = tpu.memref_slice %arg10[%c1_i32] : memref<2x!tpu.dma_semaphore, #tpu.memory_space<semaphore_mem>> -> memref<1x!tpu.dma_semaphore, #tpu.memory_space<semaphore_mem>>
    %3 = tpu.memref_squeeze %2 : memref<1x!tpu.dma_semaphore, #tpu.memory_space<semaphore_mem>> -> memref<!tpu.dma_semaphore, #tpu.memory_space<semaphore_mem>>
    tpu.enqueue_dma source(%arg5 : memref<400x128xbf16, #tpu.memory_space<any>>) target(%arg9 : memref<400x128xbf16, #tpu.memory_space<vmem>>) target_semaphore(%3 : memref<!tpu.dma_semaphore, #tpu.memory_space<semaphore_mem>>)
    %c0 = arith.constant 0 : index
    %c0_0 = arith.constant 0 : index
    %4 = vector.load %arg2[%c0, %c0_0] : memref<1024x512xi8, #tpu.memory_space<vmem>>, vector<1024x512xi8>
    %5 = arith.sitofp %4 : vector<1024x512xi8> to vector<1024x512xbf16>
    %c0_1 = arith.constant 0 : index
    %c0_2 = arith.constant 0 : index
    %6 = vector.load %arg3[%c0_1, %c0_2] : memref<1x512xf32, #tpu.memory_space<vmem>>, vector<1x512xf32>
    %c0_3 = arith.constant 0 : index
    %c0_4 = arith.constant 0 : index
    %7 = vector.load %arg6[%c0_3, %c0_4] : memref<10x512xf32, #tpu.memory_space<vmem>>, vector<1x512xf32>
    %c0_5 = arith.constant 0 : index
    %c0_6 = arith.constant 0 : index
    %8 = vector.load %arg0[%c0_5, %c0_6] : memref<2x1024xbf16, #tpu.memory_space<vmem>>, vector<2x1024xbf16>
    %cst = arith.constant dense<0.000000e+00> : vector<2x512xf32>
    %9 = tpu.matmul %8, %5, %cst {dimension_numbers = #tpu.dot_dimension_numbers<[1], [0], [0], [1], [0, 0, 1, 1], [], []>} : vector<2x1024xbf16>, vector<1024x512xbf16>, vector<2x512xf32> -> vector<2x512xf32>
    %10 = vector.broadcast %6 : vector<1x512xf32> to vector<2x512xf32>
    %11 = arith.mulf %9, %10 : vector<2x512xf32>
    %12 = vector.broadcast %7 : vector<1x512xf32> to vector<2x512xf32>
    %13 = arith.addf %11, %12 : vector<2x512xf32>
    %c0_7 = arith.constant 0 : index
    %c0_8 = arith.constant 0 : index
    %14 = vector.load %arg1[%c0_7, %c0_8] : memref<2x1024xbf16, #tpu.memory_space<vmem>>, vector<2x1024xbf16>
    %cst_9 = arith.constant dense<0.000000e+00> : vector<2x512xf32>
    %15 = tpu.matmul %14, %5, %cst_9 {dimension_numbers = #tpu.dot_dimension_numbers<[1], [0], [0], [1], [0, 0, 1, 1], [], []>} : vector<2x1024xbf16>, vector<1024x512xbf16>, vector<2x512xf32> -> vector<2x512xf32>
    %16 = vector.broadcast %6 : vector<1x512xf32> to vector<2x512xf32>
    %17 = arith.mulf %15, %16 : vector<2x512xf32>
    %18 = vector.broadcast %7 : vector<1x512xf32> to vector<2x512xf32>
    %19 = arith.addf %17, %18 : vector<2x512xf32>
    %c0_i32_10 = arith.constant 0 : i32
    %20 = tpu.memref_slice %arg10[%c0_i32_10] : memref<2x!tpu.dma_semaphore, #tpu.memory_space<semaphore_mem>> -> memref<1x!tpu.dma_semaphore, #tpu.memory_space<semaphore_mem>>
    %21 = tpu.memref_squeeze %20 : memref<1x!tpu.dma_semaphore, #tpu.memory_space<semaphore_mem>> -> memref<!tpu.dma_semaphore, #tpu.memory_space<semaphore_mem>>
    tpu.wait_dma2 semaphore(%21 : memref<!tpu.dma_semaphore, #tpu.memory_space<semaphore_mem>>) src(%arg4 : memref<1536x256xbf16, #tpu.memory_space<any>>) dst(%arg8 : memref<1536x256xbf16, #tpu.memory_space<vmem>>)
    %c0_11 = arith.constant 0 : index
    %c0_12 = arith.constant 0 : index
    %22 = vector.load %arg8[%c0_11, %c0_12] : memref<1536x256xbf16, #tpu.memory_space<vmem>>, vector<512x256xbf16>
    %23 = arith.truncf %13 : vector<2x512xf32> to vector<2x512xbf16>
    %cst_13 = arith.constant dense<0.000000e+00> : vector<2x256xf32>
    %24 = tpu.matmul %23, %22, %cst_13 {dimension_numbers = #tpu.dot_dimension_numbers<[1], [0], [0], [1], [0, 0, 1, 1], [], []>} : vector<2x512xbf16>, vector<512x256xbf16>, vector<2x256xf32> -> vector<2x256xf32>
    %c1 = arith.constant 1 : index
    %c0_14 = arith.constant 0 : index
    %25 = vector.load %arg6[%c1, %c0_14] : memref<10x512xf32, #tpu.memory_space<vmem>>, vector<1x256xf32>
    %26 = vector.broadcast %25 : vector<1x256xf32> to vector<2x256xf32>
    %27 = arith.addf %24, %26 : vector<2x256xf32>
    %cst_15 = arith.constant 0.000000e+00 : f32
    %28 = vector.broadcast %cst_15 : f32 to vector<2x256xf32>
    %29 = arith.maximumf %27, %28 : vector<2x256xf32>
    %cst_16 = arith.constant dense<0.000000e+00> : vector<256xf32>
    %30 = vector.multi_reduction <add>, %29, %cst_16 [0] : vector<2x256xf32> to vector<256xf32>
    %31 = vector.shape_cast %30 : vector<256xf32> to vector<1x256xf32>
    %cst_17 = arith.constant 2.000000e+00 : f32
    %32 = vector.broadcast %cst_17 : f32 to vector<1x256xf32>
    %33 = arith.divf %31, %32 : vector<1x256xf32>
    %34 = vector.broadcast %33 : vector<1x256xf32> to vector<2x256xf32>
    %35 = arith.subf %29, %34 : vector<2x256xf32>
    %36 = arith.mulf %35, %35 : vector<2x256xf32>
    %cst_18 = arith.constant dense<0.000000e+00> : vector<256xf32>
    %37 = vector.multi_reduction <add>, %36, %cst_18 [0] : vector<2x256xf32> to vector<256xf32>
    %38 = vector.shape_cast %37 : vector<256xf32> to vector<1x256xf32>
    %cst_19 = arith.constant 2.000000e+00 : f32
    %39 = vector.broadcast %cst_19 : f32 to vector<1x256xf32>
    %40 = arith.divf %38, %39 : vector<1x256xf32>
    %41 = vector.broadcast %33 : vector<1x256xf32> to vector<2x256xf32>
    %42 = arith.subf %29, %41 : vector<2x256xf32>
    %cst_20 = arith.constant 2.000000e-01 : f32
    %43 = vector.broadcast %cst_20 : f32 to vector<1x256xf32>
    %44 = arith.addf %40, %43 : vector<1x256xf32>
    %45 = math.rsqrt %44 : vector<1x256xf32>
    %46 = vector.broadcast %45 : vector<1x256xf32> to vector<2x256xf32>
    %47 = arith.mulf %42, %46 : vector<2x256xf32>
    %c512 = arith.constant 512 : index
    %c0_21 = arith.constant 0 : index
    %48 = vector.load %arg8[%c512, %c0_21] : memref<1536x256xbf16, #tpu.memory_space<vmem>>, vector<256x256xbf16>
    %49 = arith.truncf %47 : vector<2x256xf32> to vector<2x256xbf16>
    %cst_22 = arith.constant dense<0.000000e+00> : vector<2x256xf32>
    %50 = tpu.matmul %49, %48, %cst_22 {dimension_numbers = #tpu.dot_dimension_numbers<[1], [0], [0], [1], [0, 0, 1, 1], [], []>} : vector<2x256xbf16>, vector<256x256xbf16>, vector<2x256xf32> -> vector<2x256xf32>
    %c2 = arith.constant 2 : index
    %c0_23 = arith.constant 0 : index
    %51 = vector.load %arg6[%c2, %c0_23] : memref<10x512xf32, #tpu.memory_space<vmem>>, vector<1x256xf32>
    %52 = vector.broadcast %51 : vector<1x256xf32> to vector<2x256xf32>
    %53 = arith.addf %50, %52 : vector<2x256xf32>
    %cst_24 = arith.constant 0.000000e+00 : f32
    %54 = vector.broadcast %cst_24 : f32 to vector<2x256xf32>
    %55 = arith.maximumf %53, %54 : vector<2x256xf32>
    %cst_25 = arith.constant dense<0.000000e+00> : vector<256xf32>
    %56 = vector.multi_reduction <add>, %55, %cst_25 [0] : vector<2x256xf32> to vector<256xf32>
    %57 = vector.shape_cast %56 : vector<256xf32> to vector<1x256xf32>
    %cst_26 = arith.constant 2.000000e+00 : f32
    %58 = vector.broadcast %cst_26 : f32 to vector<1x256xf32>
    %59 = arith.divf %57, %58 : vector<1x256xf32>
    %60 = vector.broadcast %59 : vector<1x256xf32> to vector<2x256xf32>
    %61 = arith.subf %55, %60 : vector<2x256xf32>
    %62 = arith.mulf %61, %61 : vector<2x256xf32>
    %cst_27 = arith.constant dense<0.000000e+00> : vector<256xf32>
    %63 = vector.multi_reduction <add>, %62, %cst_27 [0] : vector<2x256xf32> to vector<256xf32>
    %64 = vector.shape_cast %63 : vector<256xf32> to vector<1x256xf32>
    %cst_28 = arith.constant 2.000000e+00 : f32
    %65 = vector.broadcast %cst_28 : f32 to vector<1x256xf32>
    %66 = arith.divf %64, %65 : vector<1x256xf32>
    %67 = vector.broadcast %59 : vector<1x256xf32> to vector<2x256xf32>
    %68 = arith.subf %55, %67 : vector<2x256xf32>
    %cst_29 = arith.constant 2.000000e-01 : f32
    %69 = vector.broadcast %cst_29 : f32 to vector<1x256xf32>
    %70 = arith.addf %66, %69 : vector<1x256xf32>
    %71 = math.rsqrt %70 : vector<1x256xf32>
    %72 = vector.broadcast %71 : vector<1x256xf32> to vector<2x256xf32>
    %73 = arith.mulf %68, %72 : vector<2x256xf32>
    %c768 = arith.constant 768 : index
    %c0_30 = arith.constant 0 : index
    %74 = vector.load %arg8[%c768, %c0_30] : memref<1536x256xbf16, #tpu.memory_space<vmem>>, vector<256x256xbf16>
    %75 = arith.truncf %73 : vector<2x256xf32> to vector<2x256xbf16>
    %cst_31 = arith.constant dense<0.000000e+00> : vector<2x256xf32>
    %76 = tpu.matmul %75, %74, %cst_31 {dimension_numbers = #tpu.dot_dimension_numbers<[1], [0], [0], [1], [0, 0, 1, 1], [], []>} : vector<2x256xbf16>, vector<256x256xbf16>, vector<2x256xf32> -> vector<2x256xf32>
    %c3 = arith.constant 3 : index
    %c0_32 = arith.constant 0 : index
    %77 = vector.load %arg6[%c3, %c0_32] : memref<10x512xf32, #tpu.memory_space<vmem>>, vector<1x256xf32>
    %78 = vector.broadcast %77 : vector<1x256xf32> to vector<2x256xf32>
    %79 = arith.addf %76, %78 : vector<2x256xf32>
    %cst_33 = arith.constant 0.000000e+00 : f32
    %80 = vector.broadcast %cst_33 : f32 to vector<2x256xf32>
    %81 = arith.maximumf %79, %80 : vector<2x256xf32>
    %cst_34 = arith.constant dense<0.000000e+00> : vector<256xf32>
    %82 = vector.multi_reduction <add>, %81, %cst_34 [0] : vector<2x256xf32> to vector<256xf32>
    %83 = vector.shape_cast %82 : vector<256xf32> to vector<1x256xf32>
    %cst_35 = arith.constant 2.000000e+00 : f32
    %84 = vector.broadcast %cst_35 : f32 to vector<1x256xf32>
    %85 = arith.divf %83, %84 : vector<1x256xf32>
    %86 = vector.broadcast %85 : vector<1x256xf32> to vector<2x256xf32>
    %87 = arith.subf %81, %86 : vector<2x256xf32>
    %88 = arith.mulf %87, %87 : vector<2x256xf32>
    %cst_36 = arith.constant dense<0.000000e+00> : vector<256xf32>
    %89 = vector.multi_reduction <add>, %88, %cst_36 [0] : vector<2x256xf32> to vector<256xf32>
    %90 = vector.shape_cast %89 : vector<256xf32> to vector<1x256xf32>
    %cst_37 = arith.constant 2.000000e+00 : f32
    %91 = vector.broadcast %cst_37 : f32 to vector<1x256xf32>
    %92 = arith.divf %90, %91 : vector<1x256xf32>
    %93 = vector.broadcast %85 : vector<1x256xf32> to vector<2x256xf32>
    %94 = arith.subf %81, %93 : vector<2x256xf32>
    %cst_38 = arith.constant 2.000000e-01 : f32
    %95 = vector.broadcast %cst_38 : f32 to vector<1x256xf32>
    %96 = arith.addf %92, %95 : vector<1x256xf32>
    %97 = math.rsqrt %96 : vector<1x256xf32>
    %98 = vector.broadcast %97 : vector<1x256xf32> to vector<2x256xf32>
    %99 = arith.mulf %94, %98 : vector<2x256xf32>
    %c0_39 = arith.constant 0 : index
    %c0_40 = arith.constant 0 : index
    %100 = vector.load %arg8[%c0_39, %c0_40] : memref<1536x256xbf16, #tpu.memory_space<vmem>>, vector<512x256xbf16>
    %101 = arith.truncf %19 : vector<2x512xf32> to vector<2x512xbf16>
    %cst_41 = arith.constant dense<0.000000e+00> : vector<2x256xf32>
    %102 = tpu.matmul %101, %100, %cst_41 {dimension_numbers = #tpu.dot_dimension_numbers<[1], [0], [0], [1], [0, 0, 1, 1], [], []>} : vector<2x512xbf16>, vector<512x256xbf16>, vector<2x256xf32> -> vector<2x256xf32>
    %c1_42 = arith.constant 1 : index
    %c0_43 = arith.constant 0 : index
    %103 = vector.load %arg6[%c1_42, %c0_43] : memref<10x512xf32, #tpu.memory_space<vmem>>, vector<1x256xf32>
    %104 = vector.broadcast %103 : vector<1x256xf32> to vector<2x256xf32>
    %105 = arith.addf %102, %104 : vector<2x256xf32>
    %cst_44 = arith.constant 0.000000e+00 : f32
    %106 = vector.broadcast %cst_44 : f32 to vector<2x256xf32>
    %107 = arith.maximumf %105, %106 : vector<2x256xf32>
    %cst_45 = arith.constant dense<0.000000e+00> : vector<256xf32>
    %108 = vector.multi_reduction <add>, %107, %cst_45 [0] : vector<2x256xf32> to vector<256xf32>
    %109 = vector.shape_cast %108 : vector<256xf32> to vector<1x256xf32>
    %cst_46 = arith.constant 2.000000e+00 : f32
    %110 = vector.broadcast %cst_46 : f32 to vector<1x256xf32>
    %111 = arith.divf %109, %110 : vector<1x256xf32>
    %112 = vector.broadcast %111 : vector<1x256xf32> to vector<2x256xf32>
    %113 = arith.subf %107, %112 : vector<2x256xf32>
    %114 = arith.mulf %113, %113 : vector<2x256xf32>
    %cst_47 = arith.constant dense<0.000000e+00> : vector<256xf32>
    %115 = vector.multi_reduction <add>, %114, %cst_47 [0] : vector<2x256xf32> to vector<256xf32>
    %116 = vector.shape_cast %115 : vector<256xf32> to vector<1x256xf32>
    %cst_48 = arith.constant 2.000000e+00 : f32
    %117 = vector.broadcast %cst_48 : f32 to vector<1x256xf32>
    %118 = arith.divf %116, %117 : vector<1x256xf32>
    %119 = vector.broadcast %111 : vector<1x256xf32> to vector<2x256xf32>
    %120 = arith.subf %107, %119 : vector<2x256xf32>
    %cst_49 = arith.constant 2.000000e-01 : f32
    %121 = vector.broadcast %cst_49 : f32 to vector<1x256xf32>
    %122 = arith.addf %118, %121 : vector<1x256xf32>
    %123 = math.rsqrt %122 : vector<1x256xf32>
    %124 = vector.broadcast %123 : vector<1x256xf32> to vector<2x256xf32>
    %125 = arith.mulf %120, %124 : vector<2x256xf32>
    %c512_50 = arith.constant 512 : index
    %c0_51 = arith.constant 0 : index
    %126 = vector.load %arg8[%c512_50, %c0_51] : memref<1536x256xbf16, #tpu.memory_space<vmem>>, vector<256x256xbf16>
    %127 = arith.truncf %125 : vector<2x256xf32> to vector<2x256xbf16>
    %cst_52 = arith.constant dense<0.000000e+00> : vector<2x256xf32>
    %128 = tpu.matmul %127, %126, %cst_52 {dimension_numbers = #tpu.dot_dimension_numbers<[1], [0], [0], [1], [0, 0, 1, 1], [], []>} : vector<2x256xbf16>, vector<256x256xbf16>, vector<2x256xf32> -> vector<2x256xf32>
    %c2_53 = arith.constant 2 : index
    %c0_54 = arith.constant 0 : index
    %129 = vector.load %arg6[%c2_53, %c0_54] : memref<10x512xf32, #tpu.memory_space<vmem>>, vector<1x256xf32>
    %130 = vector.broadcast %129 : vector<1x256xf32> to vector<2x256xf32>
    %131 = arith.addf %128, %130 : vector<2x256xf32>
    %cst_55 = arith.constant 0.000000e+00 : f32
    %132 = vector.broadcast %cst_55 : f32 to vector<2x256xf32>
    %133 = arith.maximumf %131, %132 : vector<2x256xf32>
    %cst_56 = arith.constant dense<0.000000e+00> : vector<256xf32>
    %134 = vector.multi_reduction <add>, %133, %cst_56 [0] : vector<2x256xf32> to vector<256xf32>
    %135 = vector.shape_cast %134 : vector<256xf32> to vector<1x256xf32>
    %cst_57 = arith.constant 2.000000e+00 : f32
    %136 = vector.broadcast %cst_57 : f32 to vector<1x256xf32>
    %137 = arith.divf %135, %136 : vector<1x256xf32>
    %138 = vector.broadcast %137 : vector<1x256xf32> to vector<2x256xf32>
    %139 = arith.subf %133, %138 : vector<2x256xf32>
    %140 = arith.mulf %139, %139 : vector<2x256xf32>
    %cst_58 = arith.constant dense<0.000000e+00> : vector<256xf32>
    %141 = vector.multi_reduction <add>, %140, %cst_58 [0] : vector<2x256xf32> to vector<256xf32>
    %142 = vector.shape_cast %141 : vector<256xf32> to vector<1x256xf32>
    %cst_59 = arith.constant 2.000000e+00 : f32
    %143 = vector.broadcast %cst_59 : f32 to vector<1x256xf32>
    %144 = arith.divf %142, %143 : vector<1x256xf32>
    %145 = vector.broadcast %137 : vector<1x256xf32> to vector<2x256xf32>
    %146 = arith.subf %133, %145 : vector<2x256xf32>
    %cst_60 = arith.constant 2.000000e-01 : f32
    %147 = vector.broadcast %cst_60 : f32 to vector<1x256xf32>
    %148 = arith.addf %144, %147 : vector<1x256xf32>
    %149 = math.rsqrt %148 : vector<1x256xf32>
    %150 = vector.broadcast %149 : vector<1x256xf32> to vector<2x256xf32>
    %151 = arith.mulf %146, %150 : vector<2x256xf32>
    %c768_61 = arith.constant 768 : index
    %c0_62 = arith.constant 0 : index
    %152 = vector.load %arg8[%c768_61, %c0_62] : memref<1536x256xbf16, #tpu.memory_space<vmem>>, vector<256x256xbf16>
    %153 = arith.truncf %151 : vector<2x256xf32> to vector<2x256xbf16>
    %cst_63 = arith.constant dense<0.000000e+00> : vector<2x256xf32>
    %154 = tpu.matmul %153, %152, %cst_63 {dimension_numbers = #tpu.dot_dimension_numbers<[1], [0], [0], [1], [0, 0, 1, 1], [], []>} : vector<2x256xbf16>, vector<256x256xbf16>, vector<2x256xf32> -> vector<2x256xf32>
    %c3_64 = arith.constant 3 : index
    %c0_65 = arith.constant 0 : index
    %155 = vector.load %arg6[%c3_64, %c0_65] : memref<10x512xf32, #tpu.memory_space<vmem>>, vector<1x256xf32>
    %156 = vector.broadcast %155 : vector<1x256xf32> to vector<2x256xf32>
    %157 = arith.addf %154, %156 : vector<2x256xf32>
    %cst_66 = arith.constant 0.000000e+00 : f32
    %158 = vector.broadcast %cst_66 : f32 to vector<2x256xf32>
    %159 = arith.maximumf %157, %158 : vector<2x256xf32>
    %cst_67 = arith.constant dense<0.000000e+00> : vector<256xf32>
    %160 = vector.multi_reduction <add>, %159, %cst_67 [0] : vector<2x256xf32> to vector<256xf32>
    %161 = vector.shape_cast %160 : vector<256xf32> to vector<1x256xf32>
    %cst_68 = arith.constant 2.000000e+00 : f32
    %162 = vector.broadcast %cst_68 : f32 to vector<1x256xf32>
    %163 = arith.divf %161, %162 : vector<1x256xf32>
    %164 = vector.broadcast %163 : vector<1x256xf32> to vector<2x256xf32>
    %165 = arith.subf %159, %164 : vector<2x256xf32>
    %166 = arith.mulf %165, %165 : vector<2x256xf32>
    %cst_69 = arith.constant dense<0.000000e+00> : vector<256xf32>
    %167 = vector.multi_reduction <add>, %166, %cst_69 [0] : vector<2x256xf32> to vector<256xf32>
    %168 = vector.shape_cast %167 : vector<256xf32> to vector<1x256xf32>
    %cst_70 = arith.constant 2.000000e+00 : f32
    %169 = vector.broadcast %cst_70 : f32 to vector<1x256xf32>
    %170 = arith.divf %168, %169 : vector<1x256xf32>
    %171 = vector.broadcast %163 : vector<1x256xf32> to vector<2x256xf32>
    %172 = arith.subf %159, %171 : vector<2x256xf32>
    %cst_71 = arith.constant 2.000000e-01 : f32
    %173 = vector.broadcast %cst_71 : f32 to vector<1x256xf32>
    %174 = arith.addf %170, %173 : vector<1x256xf32>
    %175 = math.rsqrt %174 : vector<1x256xf32>
    %176 = vector.broadcast %175 : vector<1x256xf32> to vector<2x256xf32>
    %177 = arith.mulf %172, %176 : vector<2x256xf32>
    %c1024 = arith.constant 1024 : index
    %c0_72 = arith.constant 0 : index
    %178 = vector.load %arg8[%c1024, %c0_72] : memref<1536x256xbf16, #tpu.memory_space<vmem>>, vector<256x256xbf16>
    %179 = arith.truncf %99 : vector<2x256xf32> to vector<2x256xbf16>
    %cst_73 = arith.constant dense<0.000000e+00> : vector<2x256xf32>
    %180 = tpu.matmul %179, %178, %cst_73 {dimension_numbers = #tpu.dot_dimension_numbers<[1], [0], [0], [1], [0, 0, 1, 1], [], []>} : vector<2x256xbf16>, vector<256x256xbf16>, vector<2x256xf32> -> vector<2x256xf32>
    %c1280 = arith.constant 1280 : index
    %c0_74 = arith.constant 0 : index
    %181 = vector.load %arg8[%c1280, %c0_74] : memref<1536x256xbf16, #tpu.memory_space<vmem>>, vector<256x256xbf16>
    %182 = arith.truncf %177 : vector<2x256xf32> to vector<2x256xbf16>
    %cst_75 = arith.constant dense<0.000000e+00> : vector<2x256xf32>
    %183 = tpu.matmul %182, %181, %cst_75 {dimension_numbers = #tpu.dot_dimension_numbers<[1], [0], [0], [1], [0, 0, 1, 1], [], []>} : vector<2x256xbf16>, vector<256x256xbf16>, vector<2x256xf32> -> vector<2x256xf32>
    %184 = arith.addf %180, %183 : vector<2x256xf32>
    %c4 = arith.constant 4 : index
    %c0_76 = arith.constant 0 : index
    %185 = vector.load %arg6[%c4, %c0_76] : memref<10x512xf32, #tpu.memory_space<vmem>>, vector<1x256xf32>
    %186 = vector.broadcast %185 : vector<1x256xf32> to vector<2x256xf32>
    %187 = arith.addf %184, %186 : vector<2x256xf32>
    %cst_77 = arith.constant 0.000000e+00 : f32
    %188 = vector.broadcast %cst_77 : f32 to vector<2x256xf32>
    %189 = arith.maximumf %187, %188 : vector<2x256xf32>
    %cst_78 = arith.constant dense<0.000000e+00> : vector<256xf32>
    %190 = vector.multi_reduction <add>, %189, %cst_78 [0] : vector<2x256xf32> to vector<256xf32>
    %191 = vector.shape_cast %190 : vector<256xf32> to vector<1x256xf32>
    %cst_79 = arith.constant 2.000000e+00 : f32
    %192 = vector.broadcast %cst_79 : f32 to vector<1x256xf32>
    %193 = arith.divf %191, %192 : vector<1x256xf32>
    %194 = vector.broadcast %193 : vector<1x256xf32> to vector<2x256xf32>
    %195 = arith.subf %189, %194 : vector<2x256xf32>
    %196 = arith.mulf %195, %195 : vector<2x256xf32>
    %cst_80 = arith.constant dense<0.000000e+00> : vector<256xf32>
    %197 = vector.multi_reduction <add>, %196, %cst_80 [0] : vector<2x256xf32> to vector<256xf32>
    %198 = vector.shape_cast %197 : vector<256xf32> to vector<1x256xf32>
    %cst_81 = arith.constant 2.000000e+00 : f32
    %199 = vector.broadcast %cst_81 : f32 to vector<1x256xf32>
    %200 = arith.divf %198, %199 : vector<1x256xf32>
    %201 = vector.broadcast %193 : vector<1x256xf32> to vector<2x256xf32>
    %202 = arith.subf %189, %201 : vector<2x256xf32>
    %cst_82 = arith.constant 2.000000e-01 : f32
    %203 = vector.broadcast %cst_82 : f32 to vector<1x256xf32>
    %204 = arith.addf %200, %203 : vector<1x256xf32>
    %205 = math.rsqrt %204 : vector<1x256xf32>
    %206 = vector.broadcast %205 : vector<1x256xf32> to vector<2x256xf32>
    %207 = arith.mulf %202, %206 : vector<2x256xf32>
    %c1_i32_83 = arith.constant 1 : i32
    %208 = tpu.memref_slice %arg10[%c1_i32_83] : memref<2x!tpu.dma_semaphore, #tpu.memory_space<semaphore_mem>> -> memref<1x!tpu.dma_semaphore, #tpu.memory_space<semaphore_mem>>
    %209 = tpu.memref_squeeze %208 : memref<1x!tpu.dma_semaphore, #tpu.memory_space<semaphore_mem>> -> memref<!tpu.dma_semaphore, #tpu.memory_space<semaphore_mem>>
    tpu.wait_dma2 semaphore(%209 : memref<!tpu.dma_semaphore, #tpu.memory_space<semaphore_mem>>) src(%arg5 : memref<400x128xbf16, #tpu.memory_space<any>>) dst(%arg9 : memref<400x128xbf16, #tpu.memory_space<vmem>>)
    %c0_84 = arith.constant 0 : index
    %c0_85 = arith.constant 0 : index
    %210 = vector.load %arg9[%c0_84, %c0_85] : memref<400x128xbf16, #tpu.memory_space<vmem>>, vector<256x128xbf16>
    %211 = arith.truncf %207 : vector<2x256xf32> to vector<2x256xbf16>
    %cst_86 = arith.constant dense<0.000000e+00> : vector<2x128xf32>
    %212 = tpu.matmul %211, %210, %cst_86 {dimension_numbers = #tpu.dot_dimension_numbers<[1], [0], [0], [1], [0, 0, 1, 1], [], []>} : vector<2x256xbf16>, vector<256x128xbf16>, vector<2x128xf32> -> vector<2x128xf32>
    %c5 = arith.constant 5 : index
    %c0_87 = arith.constant 0 : index
    %213 = vector.load %arg6[%c5, %c0_87] : memref<10x512xf32, #tpu.memory_space<vmem>>, vector<1x128xf32>
    %214 = vector.broadcast %213 : vector<1x128xf32> to vector<2x128xf32>
    %215 = arith.addf %212, %214 : vector<2x128xf32>
    %cst_88 = arith.constant 0.000000e+00 : f32
    %216 = vector.broadcast %cst_88 : f32 to vector<2x128xf32>
    %217 = arith.maximumf %215, %216 : vector<2x128xf32>
    %cst_89 = arith.constant dense<0.000000e+00> : vector<128xf32>
    %218 = vector.multi_reduction <add>, %217, %cst_89 [0] : vector<2x128xf32> to vector<128xf32>
    %219 = vector.shape_cast %218 : vector<128xf32> to vector<1x128xf32>
    %cst_90 = arith.constant 2.000000e+00 : f32
    %220 = vector.broadcast %cst_90 : f32 to vector<1x128xf32>
    %221 = arith.divf %219, %220 : vector<1x128xf32>
    %222 = vector.broadcast %221 : vector<1x128xf32> to vector<2x128xf32>
    %223 = arith.subf %217, %222 : vector<2x128xf32>
    %224 = arith.mulf %223, %223 : vector<2x128xf32>
    %cst_91 = arith.constant dense<0.000000e+00> : vector<128xf32>
    %225 = vector.multi_reduction <add>, %224, %cst_91 [0] : vector<2x128xf32> to vector<128xf32>
    %226 = vector.shape_cast %225 : vector<128xf32> to vector<1x128xf32>
    %cst_92 = arith.constant 2.000000e+00 : f32
    %227 = vector.broadcast %cst_92 : f32 to vector<1x128xf32>
    %228 = arith.divf %226, %227 : vector<1x128xf32>
    %229 = vector.broadcast %221 : vector<1x128xf32> to vector<2x128xf32>
    %230 = arith.subf %217, %229 : vector<2x128xf32>
    %cst_93 = arith.constant 2.000000e-01 : f32
    %231 = vector.broadcast %cst_93 : f32 to vector<1x128xf32>
    %232 = arith.addf %228, %231 : vector<1x128xf32>
    %233 = math.rsqrt %232 : vector<1x128xf32>
    %234 = vector.broadcast %233 : vector<1x128xf32> to vector<2x128xf32>
    %235 = arith.mulf %230, %234 : vector<2x128xf32>
    %c256 = arith.constant 256 : index
    %c0_94 = arith.constant 0 : index
    %236 = vector.load %arg9[%c256, %c0_94] : memref<400x128xbf16, #tpu.memory_space<vmem>>, vector<128x64xbf16>
    %237 = arith.truncf %235 : vector<2x128xf32> to vector<2x128xbf16>
    %cst_95 = arith.constant dense<0.000000e+00> : vector<2x64xf32>
    %238 = tpu.matmul %237, %236, %cst_95 {dimension_numbers = #tpu.dot_dimension_numbers<[1], [0], [0], [1], [0, 0, 1, 1], [], []>} : vector<2x128xbf16>, vector<128x64xbf16>, vector<2x64xf32> -> vector<2x64xf32>
    %c6 = arith.constant 6 : index
    %c0_96 = arith.constant 0 : index
    %239 = vector.load %arg6[%c6, %c0_96] : memref<10x512xf32, #tpu.memory_space<vmem>>, vector<1x64xf32>
    %240 = vector.broadcast %239 : vector<1x64xf32> to vector<2x64xf32>
    %241 = arith.addf %238, %240 : vector<2x64xf32>
    %cst_97 = arith.constant 0.000000e+00 : f32
    %242 = vector.broadcast %cst_97 : f32 to vector<2x64xf32>
    %243 = arith.maximumf %241, %242 : vector<2x64xf32>
    %cst_98 = arith.constant dense<0.000000e+00> : vector<64xf32>
    %244 = vector.multi_reduction <add>, %243, %cst_98 [0] : vector<2x64xf32> to vector<64xf32>
    %245 = vector.shape_cast %244 : vector<64xf32> to vector<1x64xf32>
    %cst_99 = arith.constant 2.000000e+00 : f32
    %246 = vector.broadcast %cst_99 : f32 to vector<1x64xf32>
    %247 = arith.divf %245, %246 : vector<1x64xf32>
    %248 = vector.broadcast %247 : vector<1x64xf32> to vector<2x64xf32>
    %249 = arith.subf %243, %248 : vector<2x64xf32>
    %250 = arith.mulf %249, %249 : vector<2x64xf32>
    %cst_100 = arith.constant dense<0.000000e+00> : vector<64xf32>
    %251 = vector.multi_reduction <add>, %250, %cst_100 [0] : vector<2x64xf32> to vector<64xf32>
    %252 = vector.shape_cast %251 : vector<64xf32> to vector<1x64xf32>
    %cst_101 = arith.constant 2.000000e+00 : f32
    %253 = vector.broadcast %cst_101 : f32 to vector<1x64xf32>
    %254 = arith.divf %252, %253 : vector<1x64xf32>
    %255 = vector.broadcast %247 : vector<1x64xf32> to vector<2x64xf32>
    %256 = arith.subf %243, %255 : vector<2x64xf32>
    %cst_102 = arith.constant 2.000000e-01 : f32
    %257 = vector.broadcast %cst_102 : f32 to vector<1x64xf32>
    %258 = arith.addf %254, %257 : vector<1x64xf32>
    %259 = math.rsqrt %258 : vector<1x64xf32>
    %260 = vector.broadcast %259 : vector<1x64xf32> to vector<2x64xf32>
    %261 = arith.mulf %256, %260 : vector<2x64xf32>
    %c256_103 = arith.constant 256 : index
    %c64 = arith.constant 64 : index
    %262 = vector.load %arg9[%c256_103, %c64] : memref<400x128xbf16, #tpu.memory_space<vmem>>, vector<64x32xbf16>
    %263 = arith.truncf %261 : vector<2x64xf32> to vector<2x64xbf16>
    %cst_104 = arith.constant dense<0.000000e+00> : vector<2x32xf32>
    %264 = tpu.matmul %263, %262, %cst_104 {dimension_numbers = #tpu.dot_dimension_numbers<[1], [0], [0], [1], [0, 0, 1, 1], [], []>} : vector<2x64xbf16>, vector<64x32xbf16>, vector<2x32xf32> -> vector<2x32xf32>
    %c7 = arith.constant 7 : index
    %c0_105 = arith.constant 0 : index
    %265 = vector.load %arg6[%c7, %c0_105] : memref<10x512xf32, #tpu.memory_space<vmem>>, vector<1x32xf32>
    %266 = vector.broadcast %265 : vector<1x32xf32> to vector<2x32xf32>
    %267 = arith.addf %264, %266 : vector<2x32xf32>
    %cst_106 = arith.constant 0.000000e+00 : f32
    %268 = vector.broadcast %cst_106 : f32 to vector<2x32xf32>
    %269 = arith.maximumf %267, %268 : vector<2x32xf32>
    %cst_107 = arith.constant dense<0.000000e+00> : vector<32xf32>
    %270 = vector.multi_reduction <add>, %269, %cst_107 [0] : vector<2x32xf32> to vector<32xf32>
    %271 = vector.shape_cast %270 : vector<32xf32> to vector<1x32xf32>
    %cst_108 = arith.constant 2.000000e+00 : f32
    %272 = vector.broadcast %cst_108 : f32 to vector<1x32xf32>
    %273 = arith.divf %271, %272 : vector<1x32xf32>
    %274 = vector.broadcast %273 : vector<1x32xf32> to vector<2x32xf32>
    %275 = arith.subf %269, %274 : vector<2x32xf32>
    %276 = arith.mulf %275, %275 : vector<2x32xf32>
    %cst_109 = arith.constant dense<0.000000e+00> : vector<32xf32>
    %277 = vector.multi_reduction <add>, %276, %cst_109 [0] : vector<2x32xf32> to vector<32xf32>
    %278 = vector.shape_cast %277 : vector<32xf32> to vector<1x32xf32>
    %cst_110 = arith.constant 2.000000e+00 : f32
    %279 = vector.broadcast %cst_110 : f32 to vector<1x32xf32>
    %280 = arith.divf %278, %279 : vector<1x32xf32>
    %281 = vector.broadcast %273 : vector<1x32xf32> to vector<2x32xf32>
    %282 = arith.subf %269, %281 : vector<2x32xf32>
    %cst_111 = arith.constant 2.000000e-01 : f32
    %283 = vector.broadcast %cst_111 : f32 to vector<1x32xf32>
    %284 = arith.addf %280, %283 : vector<1x32xf32>
    %285 = math.rsqrt %284 : vector<1x32xf32>
    %286 = vector.broadcast %285 : vector<1x32xf32> to vector<2x32xf32>
    %287 = arith.mulf %282, %286 : vector<2x32xf32>
    %c256_112 = arith.constant 256 : index
    %c96 = arith.constant 96 : index
    %288 = vector.load %arg9[%c256_112, %c96] : memref<400x128xbf16, #tpu.memory_space<vmem>>, vector<32x16xbf16>
    %289 = arith.truncf %287 : vector<2x32xf32> to vector<2x32xbf16>
    %cst_113 = arith.constant dense<0.000000e+00> : vector<2x16xf32>
    %290 = tpu.matmul %289, %288, %cst_113 {dimension_numbers = #tpu.dot_dimension_numbers<[1], [0], [0], [1], [0, 0, 1, 1], [], []>} : vector<2x32xbf16>, vector<32x16xbf16>, vector<2x16xf32> -> vector<2x16xf32>
    %c8 = arith.constant 8 : index
    %c0_114 = arith.constant 0 : index
    %291 = vector.load %arg6[%c8, %c0_114] : memref<10x512xf32, #tpu.memory_space<vmem>>, vector<1x16xf32>
    %292 = vector.broadcast %291 : vector<1x16xf32> to vector<2x16xf32>
    %293 = arith.addf %290, %292 : vector<2x16xf32>
    %cst_115 = arith.constant 0.000000e+00 : f32
    %294 = vector.broadcast %cst_115 : f32 to vector<2x16xf32>
    %295 = arith.maximumf %293, %294 : vector<2x16xf32>
    %cst_116 = arith.constant dense<0.000000e+00> : vector<16xf32>
    %296 = vector.multi_reduction <add>, %295, %cst_116 [0] : vector<2x16xf32> to vector<16xf32>
    %297 = vector.shape_cast %296 : vector<16xf32> to vector<1x16xf32>
    %cst_117 = arith.constant 2.000000e+00 : f32
    %298 = vector.broadcast %cst_117 : f32 to vector<1x16xf32>
    %299 = arith.divf %297, %298 : vector<1x16xf32>
    %300 = vector.broadcast %299 : vector<1x16xf32> to vector<2x16xf32>
    %301 = arith.subf %295, %300 : vector<2x16xf32>
    %302 = arith.mulf %301, %301 : vector<2x16xf32>
    %cst_118 = arith.constant dense<0.000000e+00> : vector<16xf32>
    %303 = vector.multi_reduction <add>, %302, %cst_118 [0] : vector<2x16xf32> to vector<16xf32>
    %304 = vector.shape_cast %303 : vector<16xf32> to vector<1x16xf32>
    %cst_119 = arith.constant 2.000000e+00 : f32
    %305 = vector.broadcast %cst_119 : f32 to vector<1x16xf32>
    %306 = arith.divf %304, %305 : vector<1x16xf32>
    %307 = vector.broadcast %299 : vector<1x16xf32> to vector<2x16xf32>
    %308 = arith.subf %295, %307 : vector<2x16xf32>
    %cst_120 = arith.constant 2.000000e-01 : f32
    %309 = vector.broadcast %cst_120 : f32 to vector<1x16xf32>
    %310 = arith.addf %306, %309 : vector<1x16xf32>
    %311 = math.rsqrt %310 : vector<1x16xf32>
    %312 = vector.broadcast %311 : vector<1x16xf32> to vector<2x16xf32>
    %313 = arith.mulf %308, %312 : vector<2x16xf32>
    %c384 = arith.constant 384 : index
    %c0_121 = arith.constant 0 : index
    %314 = vector.load %arg9[%c384, %c0_121] : memref<400x128xbf16, #tpu.memory_space<vmem>>, vector<16x128xbf16>
    %315 = arith.truncf %313 : vector<2x16xf32> to vector<2x16xbf16>
    %cst_122 = arith.constant dense<0.000000e+00> : vector<2x128xf32>
    %316 = tpu.matmul %315, %314, %cst_122 {dimension_numbers = #tpu.dot_dimension_numbers<[1], [0], [0], [1], [0, 0, 1, 1], [], []>} : vector<2x16xbf16>, vector<16x128xbf16>, vector<2x128xf32> -> vector<2x128xf32>
    %c9 = arith.constant 9 : index
    %c0_123 = arith.constant 0 : index
    %317 = vector.load %arg6[%c9, %c0_123] : memref<10x512xf32, #tpu.memory_space<vmem>>, vector<1x128xf32>
    %318 = vector.broadcast %317 : vector<1x128xf32> to vector<2x128xf32>
    %319 = arith.addf %316, %318 : vector<2x128xf32>
    %320 = tpu.iota {dimensions = array<i32: 1>} : vector<2x128xi32>
    %cst_124 = arith.constant 0.000000e+00 : f32
    %321 = vector.broadcast %cst_124 : f32 to vector<2x128xf32>
    %c0_i32_125 = arith.constant 0 : i32
    %322 = vector.broadcast %c0_i32_125 : i32 to vector<2x128xi32>
    %323 = arith.cmpi sge, %320, %322 : vector<2x128xi32>
    %c3_i32 = arith.constant 3 : i32
    %324 = vector.broadcast %c3_i32 : i32 to vector<2x128xi32>
    %325 = arith.cmpi slt, %320, %324 : vector<2x128xi32>
    %326 = arith.andi %323, %325 : vector<2x128xi1>
    %cst_126 = arith.constant -1.000000e+30 : f32
    %327 = vector.broadcast %cst_126 : f32 to vector<2x128xf32>
    %328 = arith.select %326, %319, %327 : vector<2x128xi1>, vector<2x128xf32>
    %cst_127 = arith.constant dense<0xFF800000> : vector<2xf32>
    %329 = vector.multi_reduction <maximumf>, %328, %cst_127 [1] : vector<2x128xf32> to vector<2xf32>
    %330 = vector.shape_cast %329 : vector<2xf32> to vector<2x1xf32>
    %331 = vector.broadcast %330 : vector<2x1xf32> to vector<2x128xf32>
    %332 = arith.subf %328, %331 : vector<2x128xf32>
    %333 = math.exp %332 : vector<2x128xf32>
    %cst_128 = arith.constant dense<0.000000e+00> : vector<2xf32>
    %334 = vector.multi_reduction <add>, %333, %cst_128 [1] : vector<2x128xf32> to vector<2xf32>
    %335 = vector.shape_cast %334 : vector<2xf32> to vector<2x1xf32>
    %336 = vector.broadcast %335 : vector<2x1xf32> to vector<2x128xf32>
    %337 = arith.divf %333, %336 : vector<2x128xf32>
    %338 = arith.addf %321, %337 : vector<2x128xf32>
    %c3_i32_129 = arith.constant 3 : i32
    %339 = vector.broadcast %c3_i32_129 : i32 to vector<2x128xi32>
    %340 = arith.cmpi sge, %320, %339 : vector<2x128xi32>
    %c6_i32 = arith.constant 6 : i32
    %341 = vector.broadcast %c6_i32 : i32 to vector<2x128xi32>
    %342 = arith.cmpi slt, %320, %341 : vector<2x128xi32>
    %343 = arith.andi %340, %342 : vector<2x128xi1>
    %cst_130 = arith.constant -1.000000e+30 : f32
    %344 = vector.broadcast %cst_130 : f32 to vector<2x128xf32>
    %345 = arith.select %343, %319, %344 : vector<2x128xi1>, vector<2x128xf32>
    %cst_131 = arith.constant dense<0xFF800000> : vector<2xf32>
    %346 = vector.multi_reduction <maximumf>, %345, %cst_131 [1] : vector<2x128xf32> to vector<2xf32>
    %347 = vector.shape_cast %346 : vector<2xf32> to vector<2x1xf32>
    %348 = vector.broadcast %347 : vector<2x1xf32> to vector<2x128xf32>
    %349 = arith.subf %345, %348 : vector<2x128xf32>
    %350 = math.exp %349 : vector<2x128xf32>
    %cst_132 = arith.constant dense<0.000000e+00> : vector<2xf32>
    %351 = vector.multi_reduction <add>, %350, %cst_132 [1] : vector<2x128xf32> to vector<2xf32>
    %352 = vector.shape_cast %351 : vector<2xf32> to vector<2x1xf32>
    %353 = vector.broadcast %352 : vector<2x1xf32> to vector<2x128xf32>
    %354 = arith.divf %350, %353 : vector<2x128xf32>
    %355 = arith.addf %338, %354 : vector<2x128xf32>
    %c6_i32_133 = arith.constant 6 : i32
    %356 = vector.broadcast %c6_i32_133 : i32 to vector<2x128xi32>
    %357 = arith.cmpi sge, %320, %356 : vector<2x128xi32>
    %c12_i32 = arith.constant 12 : i32
    %358 = vector.broadcast %c12_i32 : i32 to vector<2x128xi32>
    %359 = arith.cmpi slt, %320, %358 : vector<2x128xi32>
    %360 = arith.andi %357, %359 : vector<2x128xi1>
    %cst_134 = arith.constant -1.000000e+30 : f32
    %361 = vector.broadcast %cst_134 : f32 to vector<2x128xf32>
    %362 = arith.select %360, %319, %361 : vector<2x128xi1>, vector<2x128xf32>
    %cst_135 = arith.constant dense<0xFF800000> : vector<2xf32>
    %363 = vector.multi_reduction <maximumf>, %362, %cst_135 [1] : vector<2x128xf32> to vector<2xf32>
    %364 = vector.shape_cast %363 : vector<2xf32> to vector<2x1xf32>
    %365 = vector.broadcast %364 : vector<2x1xf32> to vector<2x128xf32>
    %366 = arith.subf %362, %365 : vector<2x128xf32>
    %367 = math.exp %366 : vector<2x128xf32>
    %cst_136 = arith.constant dense<0.000000e+00> : vector<2xf32>
    %368 = vector.multi_reduction <add>, %367, %cst_136 [1] : vector<2x128xf32> to vector<2xf32>
    %369 = vector.shape_cast %368 : vector<2xf32> to vector<2x1xf32>
    %370 = vector.broadcast %369 : vector<2x1xf32> to vector<2x128xf32>
    %371 = arith.divf %367, %370 : vector<2x128xf32>
    %372 = arith.addf %355, %371 : vector<2x128xf32>
    %c12_i32_137 = arith.constant 12 : i32
    %373 = vector.broadcast %c12_i32_137 : i32 to vector<2x128xi32>
    %374 = arith.cmpi sge, %320, %373 : vector<2x128xi32>
    %c16_i32 = arith.constant 16 : i32
    %375 = vector.broadcast %c16_i32 : i32 to vector<2x128xi32>
    %376 = arith.cmpi slt, %320, %375 : vector<2x128xi32>
    %377 = arith.andi %374, %376 : vector<2x128xi1>
    %cst_138 = arith.constant -1.000000e+30 : f32
    %378 = vector.broadcast %cst_138 : f32 to vector<2x128xf32>
    %379 = arith.select %377, %319, %378 : vector<2x128xi1>, vector<2x128xf32>
    %cst_139 = arith.constant dense<0xFF800000> : vector<2xf32>
    %380 = vector.multi_reduction <maximumf>, %379, %cst_139 [1] : vector<2x128xf32> to vector<2xf32>
    %381 = vector.shape_cast %380 : vector<2xf32> to vector<2x1xf32>
    %382 = vector.broadcast %381 : vector<2x1xf32> to vector<2x128xf32>
    %383 = arith.subf %379, %382 : vector<2x128xf32>
    %384 = math.exp %383 : vector<2x128xf32>
    %cst_140 = arith.constant dense<0.000000e+00> : vector<2xf32>
    %385 = vector.multi_reduction <add>, %384, %cst_140 [1] : vector<2x128xf32> to vector<2xf32>
    %386 = vector.shape_cast %385 : vector<2xf32> to vector<2x1xf32>
    %387 = vector.broadcast %386 : vector<2x1xf32> to vector<2x128xf32>
    %388 = arith.divf %384, %387 : vector<2x128xf32>
    %389 = arith.addf %372, %388 : vector<2x128xf32>
    %c0_141 = arith.constant 0 : index
    %c0_142 = arith.constant 0 : index
    %390 = vector.load %arg7[%c0_141, %c0_142] : memref<2x128xf32, #tpu.memory_space<vmem>>, vector<2x128xf32>
    tpu.vector_store %arg7[%c0_141, %c0_142], %389 {strides = array<i32>} : memref<2x128xf32, #tpu.memory_space<vmem>>, vector<2x128xf32>,
    return
  }
}

</mosaic_0001>

<llo_original>
// kernel: combine_multi_output_forward.1
$region0: #{combine_multi_output_forward.1}
  #allocation0 [shape = 'u32[]', space=smem, size = 0x4, offset = 0x4, fixed_abs, tag = 'smem constant byte address 0x4 - core index']
  #allocation1 [shape = 'u32[144,128]{1,0:T(1,128)}', space=vmem, size = 0x12000, scoped, tag = 'internal scratch']
  #allocation2 [shape = 'bf16[1536,256]{1,0:T(16,128)(2,1)}', space=vmem, size = 0xc0000, scoped, tag = 'scratch operand']
  #allocation3 [shape = 'bf16[400,128]{1,0:T(16,128)(2,1)}', space=vmem, size = 0x19000, scoped, tag = 'scratch operand']
  #allocation4 [shape = 's32[2]{0}', space=sflag, size = 0x8, scoped, tag = 'scratch operand']
  #allocation7 [shape = 's32[]', space=sflag, size = 0x4, offset = 0, fixed_abs, tag = 'sflag constant byte address 0x0 - dummy sync flag']
  #allocation9 [shape = 's32[]', space=sflag, size = 0x4, offset = 0, fixed_abs, tag = 'sflag constant byte address 0x0 - dummy sync flag']
  %s0 = inlined_call_operand.vmem [shape: bf16[2,1024], index: 0, kind: input, shape index: {}]
  %s1 = inlined_call_operand.vmem [shape: bf16[2,1024], index: 1, kind: input, shape index: {}]
  %s2 = inlined_call_operand.hbm [shape: s8[1024,512], index: 2, kind: input, shape index: {}]
  %s3 = inlined_call_operand.vmem [shape: f32[1,512], index: 3, kind: input, shape index: {}]
  %s4 = inlined_call_operand.hbm [shape: bf16[1536,256], index: 4, kind: input, shape index: {}]
  %s5 = inlined_call_operand.vmem [shape: bf16[400,128], index: 5, kind: input, shape index: {}]
  %s6 = inlined_call_operand.vmem [shape: f32[10,512], index: 6, kind: input, shape index: {}]
  %s7 = inlined_call_operand.vmem [shape: f32[2,128], index: 7, kind: output, shape index: {}]
  %s8 = sld [smem:[#allocation0]]
  $region68: #{combine_multi_output_forward.1} parent=0
    _
  %s10 = ssub.s32 1, %s8
  %s11 = scalar_select 0, %s10, %s8
  $region1: #{combine_multi_output_forward.1} parent=0
    #allocation5 [shape = 'u8[524288]{0}', space=vmem, size = 0x80000, scoped, tag = 'input window, operand 2, single buffered']
    #allocation6 [shape = 's32[1]{0}', space=sflag, size = 0x4, scoped, tag = 'scoped memory for combine_multi_output_forward.1']
    #allocation8 [shape = 'u32[9]{0}', space=smem, size = 0x24, scoped, tag = 'DMA stride descriptor']
    %12 = vsyncpa [#allocation6], 0
    // Predicated region
    $region2: #{combine_multi_output_forward.1} parent=1 // pred_check
      _
    $region3: #{combine_multi_output_forward.1} parent=1 // pred_check_branch
      %14 = sbr.rel (0) target = $region5
    $region4: #{combine_multi_output_forward.1} parent=1 // pred_region
      _
    $region5: #{combine_multi_output_forward.1} parent=1 // pred_fallthru
      _
    // Predicated region
    $region6: #{combine_multi_output_forward.1} parent=1 // pred_check
      _
    $region7: #{combine_multi_output_forward.1} parent=1 // pred_check_branch
      %16 = sbr.rel (0) target = $region9
    $region8: #{combine_multi_output_forward.1} parent=1 // pred_region
      _
    $region9: #{combine_multi_output_forward.1} parent=1 // pred_fallthru
      _
    // Predicated region
    $region10: #{combine_multi_output_forward.1} parent=1 // pred_check
      _
    $region11: #{combine_multi_output_forward.1} parent=1 // pred_check_branch
      %18 = sbr.rel (0) target = $region13
    $region12: #{combine_multi_output_forward.1} parent=1 // pred_region
      %s20 = ssub.s32 16384, 16384
      %21 = vsyncadd [#allocation6], %s20
      %s22 = sshll.u32 [#allocation5], 4
      %s23 = int_to_ptr.vmem [resolvable:$true] %s22
      %28 = dma.hbm_to_vmem [thread:$0]  %s2, 16384, %s23, [#allocation6], 512, 512, 32
    $region13: #{combine_multi_output_forward.1} parent=1 // pred_fallthru
      _
    // Predicated region
    $region14: #{combine_multi_output_forward.1} parent=1 // pred_check
      _
    $region15: #{combine_multi_output_forward.1} parent=1 // pred_check_branch
      %30 = sbr.rel (0) target = $region17
    $region16: #{combine_multi_output_forward.1} parent=1 // pred_region
      _
    $region17: #{combine_multi_output_forward.1} parent=1 // pred_fallthru
      _
    // Predicated region
    $region18: #{combine_multi_output_forward.1} parent=1 // pred_check
      _
    $region19: #{combine_multi_output_forward.1} parent=1 // pred_check_branch
      %32 = sbr.rel (0) target = $region21
    $region20: #{combine_multi_output_forward.1} parent=1 // pred_region
      _
    $region21: #{combine_multi_output_forward.1} parent=1 // pred_fallthru
      _
    // Predicated region
    $region22: #{combine_multi_output_forward.1} parent=1 // pred_check
      _
    $region23: #{combine_multi_output_forward.1} parent=1 // pred_check_branch
      %34 = sbr.rel (0) target = $region25
    $region24: #{combine_multi_output_forward.1} parent=1 // pred_region
      %35 = dma.done [#allocation6], 16384
    $region25: #{combine_multi_output_forward.1} parent=1 // pred_fallthru
      _
    %s38 = sshll.u32 1, 14
    %s39 = sxor.u32 4294967295, %s38
    %s41 = sld [smem:[#allocation0]]
    %s42 = sadd.s32 2, %s41
    %s44 = sshll.u32 7, 26
    %s45 = sxor.u32 4294967295, %s44
    %s46 = sand.u32 0, %s45
    %s47 = sshll.u32 %s42, 26
    %s48 = sor.u32 %s46, %s47
    %s49 = sshll.u32 [#allocation2], 4
    %s50 = int_to_ptr.vmem [resolvable:$true] %s49
    %53 = sst [smem:[#allocation8]] 256
    %s54 = scalar_lea.smem [#allocation8], 1
    %55 = sst [smem:[%s54]] 256
    %s56 = scalar_lea.smem [#allocation8], 2
    %57 = sst [smem:[%s56]] 2
    %s58 = scalar_lea.smem [#allocation8], 3
    %59 = sst [smem:[%s58]] 64
    %s60 = scalar_lea.smem [#allocation8], 4
    %61 = sst [smem:[%s60]] 128
    %s62 = scalar_lea.smem [#allocation8], 5
    %63 = sst [smem:[%s62]] 2
    %s64 = scalar_lea.smem [#allocation8], 6
    %65 = sst [smem:[%s64]] 128
    %s66 = scalar_lea.smem [#allocation8], 7
    %67 = sst [smem:[%s66]] 64
    %s68 = scalar_lea.smem [#allocation8], 8
    %69 = sst [smem:[%s68]] 4
    %71 = dma.general %s4, 24576, %s50, [#allocation4], [#allocation7], [#allocation8], %s48, 0
    %s72 = scalar_lea.sflag [#allocation4], 1
    %p74 = scmp.lt.u32.totalorder 200, 8
    %p75 = pneg %p74
    // Predicated region
    $region26: #{combine_multi_output_forward.1} parent=1 // pred_check
      _
    $region27: #{combine_multi_output_forward.1} parent=1 // pred_check_branch
      %77 = sbr.rel (%p74) target = $region29
    $region28: #{combine_multi_output_forward.1} parent=1 // pred_region
      %s92 = sand.u32 200, 7
      %p93 = scmp.eq.s32.totalorder %s92, 0
      // Predicated region
      $region41: #{combine_multi_output_forward.1} parent=28 // pred_check
        %p94 = pneg %p93
      $region42: #{combine_multi_output_forward.1} parent=28 // pred_check_branch
        %96 = sbr.rel (%p94) target = $region44
      $region43: #{combine_multi_output_forward.1} parent=28 // pred_region
        loop: start=0, step=1, limit=1
        $region45: #{combine_multi_output_forward.1} parent=43 // loop_pre_header
          _
        $region46: #{combine_multi_output_forward.1} parent=43 // loop_header
          %s98 = sphi 0, %s102
          %p99 = scmp.ge.s32.totalorder %s98, 1
          %s103 = sphi %s5, %s5
          %s104 = sphi [#allocation3], [#allocation3]
        $region47: #{combine_multi_output_forward.1} parent=43 // loop_header_branch
          %101 = sbr.rel (%p99) target = $region51
        $region48: #{combine_multi_output_forward.1} parent=43 // loop_body
          %v105 = vld [vmem:[%s103] sm:$0xff]
          %106 = vst [vmem:[%s104] sm:$0xff] %v105
          %v107 = vld [vmem:[%s103 + $0x8] sm:$0xff]
          %108 = vst [vmem:[%s104 + $0x8] sm:$0xff] %v107
          %v109 = vld [vmem:[%s103 + $0x10] sm:$0xff]
          %110 = vst [vmem:[%s104 + $0x10] sm:$0xff] %v109
          %v111 = vld [vmem:[%s103 + $0x18] sm:$0xff]
          %112 = vst [vmem:[%s104 + $0x18] sm:$0xff] %v111
          %v113 = vld [vmem:[%s103 + $0x20] sm:$0xff]
          %114 = vst [vmem:[%s104 + $0x20] sm:$0xff] %v113
          %v115 = vld [vmem:[%s103 + $0x28] sm:$0xff]
          %116 = vst [vmem:[%s104 + $0x28] sm:$0xff] %v115
          %v117 = vld [vmem:[%s103 + $0x30] sm:$0xff]
          %118 = vst [vmem:[%s104 + $0x30] sm:$0xff] %v117
          %v119 = vld [vmem:[%s103 + $0x38] sm:$0xff]
          %120 = vst [vmem:[%s104 + $0x38] sm:$0xff] %v119
          %v121 = vld [vmem:[%s103 + $0x40] sm:$0xff]
          %122 = vst [vmem:[%s104 + $0x40] sm:$0xff] %v121
          %v123 = vld [vmem:[%s103 + $0x48] sm:$0xff]
          %124 = vst [vmem:[%s104 + $0x48] sm:$0xff] %v123
          %v125 = vld [vmem:[%s103 + $0x50] sm:$0xff]
          %126 = vst [vmem:[%s104 + $0x50] sm:$0xff] %v125
          %v127 = vld [vmem:[%s103 + $0x58] sm:$0xff]
          %128 = vst [vmem:[%s104 + $0x58] sm:$0xff] %v127
          %v129 = vld [vmem:[%s103 + $0x60] sm:$0xff]
          %130 = vst [vmem:[%s104 + $0x60] sm:$0xff] %v129
          %v131 = vld [vmem:[%s103 + $0x68] sm:$0xff]
          %132 = vst [vmem:[%s104 + $0x68] sm:$0xff] %v131
          %v133 = vld [vmem:[%s103 + $0x70] sm:$0xff]
          %134 = vst [vmem:[%s104 + $0x70] sm:$0xff] %v133
          %v135 = vld [vmem:[%s103 + $0x78] sm:$0xff]
          %136 = vst [vmem:[%s104 + $0x78] sm:$0xff] %v135
          %v137 = vld [vmem:[%s103 + $0x80] sm:$0xff]
          %138 = vst [vmem:[%s104 + $0x80] sm:$0xff] %v137
          %v139 = vld [vmem:[%s103 + $0x88] sm:$0xff]
          %140 = vst [vmem:[%s104 + $0x88] sm:$0xff] %v139
          %v141 = vld [vmem:[%s103 + $0x90] sm:$0xff]
          %142 = vst [vmem:[%s104 + $0x90] sm:$0xff] %v141
          %v143 = vld [vmem:[%s103 + $0x98] sm:$0xff]
          %144 = vst [vmem:[%s104 + $0x98] sm:$0xff] %v143
          %v145 = vld [vmem:[%s103 + $0xa0] sm:$0xff]
          %146 = vst [vmem:[%s104 + $0xa0] sm:$0xff] %v145
          %v147 = vld [vmem:[%s103 + $0xa8] sm:$0xff]
          %148 = vst [vmem:[%s104 + $0xa8] sm:$0xff] %v147
          %v149 = vld [vmem:[%s103 + $0xb0] sm:$0xff]
          %150 = vst [vmem:[%s104 + $0xb0] sm:$0xff] %v149
          %v151 = vld [vmem:[%s103 + $0xb8] sm:$0xff]
          %152 = vst [vmem:[%s104 + $0xb8] sm:$0xff] %v151
          %v153 = vld [vmem:[%s103 + $0xc0] sm:$0xff]
          %154 = vst [vmem:[%s104 + $0xc0] sm:$0xff] %v153
        $region49: #{combine_multi_output_forward.1} parent=43 // loop_footer
          %s102 = sadd.s32 1, %s98
        $region50: #{combine_multi_output_forward.1} parent=43 // loop_footer_branch
          %97 = sbr.rel target = $region46
        $region51: #{combine_multi_output_forward.1} parent=43 // loop_exit
          _
      $region44: #{combine_multi_output_forward.1} parent=28 // pred_fallthru
        _
      %p155 = pneg %p93
      // Predicated region
      $region52: #{combine_multi_output_forward.1} parent=28 // pred_check
        _
      $region53: #{combine_multi_output_forward.1} parent=28 // pred_check_branch
        %157 = sbr.rel (%p93) target = $region55
      $region54: #{combine_multi_output_forward.1} parent=28 // pred_region
        %s158 = sand.u32 200, 7
      $region55: #{combine_multi_output_forward.1} parent=28 // pred_fallthru
        _
    $region29: #{combine_multi_output_forward.1} parent=1 // pred_fallthru
      _
    // Predicated region
    $region30: #{combine_multi_output_forward.1} parent=1 // pred_check
      %p78 = pneg %p74
    $region31: #{combine_multi_output_forward.1} parent=1 // pred_check_branch
      %80 = sbr.rel (%p78) target = $region33
    $region32: #{combine_multi_output_forward.1} parent=1 // pred_region
      %s81 = sshllo.u32 0, 200
      loop: start=0, step=1, limit=1
      $region34: #{combine_multi_output_forward.1} parent=32 // loop_pre_header
        _
      $region35: #{combine_multi_output_forward.1} parent=32 // loop_header
        %s83 = sphi 0, %s87
        %p84 = scmp.ge.s32.totalorder %s83, 1
        %s88 = sphi %s5, %s5
        %s89 = sphi [#allocation3], [#allocation3]
      $region36: #{combine_multi_output_forward.1} parent=32 // loop_header_branch
        %86 = sbr.rel (%p84) target = $region40
      $region37: #{combine_multi_output_forward.1} parent=32 // loop_body
        %v90 = vld [vmem:[%s88] sm:%s81]
        %91 = vst [vmem:[%s89] sm:%s81] %v90
      $region38: #{combine_multi_output_forward.1} parent=32 // loop_footer
        %s87 = sadd.s32 1, %s83
      $region39: #{combine_multi_output_forward.1} parent=32 // loop_footer_branch
        %82 = sbr.rel target = $region35
      $region40: #{combine_multi_output_forward.1} parent=32 // loop_exit
        _
    $region33: #{combine_multi_output_forward.1} parent=1 // pred_fallthru
      _
    // Predicated region
    $region56: #{combine_multi_output_forward.1} parent=1 // pred_check
      _
    $region57: #{combine_multi_output_forward.1} parent=1 // pred_check_branch
      %161 = sbr.rel (0) target = $region59
    $region58: #{combine_multi_output_forward.1} parent=1 // pred_region
      %162 = vsyncadd %s72, 3200
    $region59: #{combine_multi_output_forward.1} parent=1 // pred_fallthru
      _
    %v163 = vld [vmem:[#allocation5] sm:$0xff]
    %v164 = vld [vmem:[#allocation5 + $0x8] sm:$0xff]
    %v165 = vld [vmem:[#allocation5 + $0x10] sm:$0xff]
    %v166 = vld [vmem:[#allocation5 + $0x18] sm:$0xff]
    %v167 = vld [vmem:[#allocation5 + $0x20] sm:$0xff]
    %v168 = vld [vmem:[#allocation5 + $0x28] sm:$0xff]
    %v169 = vld [vmem:[#allocation5 + $0x30] sm:$0xff]
    %v170 = vld [vmem:[#allocation5 + $0x38] sm:$0xff]
    %v171 = vld [vmem:[#allocation5 + $0x40] sm:$0xff]
    %v172 = vld [vmem:[#allocation5 + $0x48] sm:$0xff]
    %v173 = vld [vmem:[#allocation5 + $0x50] sm:$0xff]
    %v174 = vld [vmem:[#allocation5 + $0x58] sm:$0xff]
    %v175 = vld [vmem:[#allocation5 + $0x60] sm:$0xff]
    %v176 = vld [vmem:[#allocation5 + $0x68] sm:$0xff]
    %v177 = vld [vmem:[#allocation5 + $0x70] sm:$0xff]
    %v178 = vld [vmem:[#allocation5 + $0x78] sm:$0xff]
    %v179 = vld [vmem:[#allocation5 + $0x80] sm:$0xff]
    %v180 = vld [vmem:[#allocation5 + $0x88] sm:$0xff]
    %v181 = vld [vmem:[#allocation5 + $0x90] sm:$0xff]
    %v182 = vld [vmem:[#allocation5 + $0x98] sm:$0xff]
    %v183 = vld [vmem:[#allocation5 + $0xa0] sm:$0xff]
    %v184 = vld [vmem:[#allocation5 + $0xa8] sm:$0xff]
    %v185 = vld [vmem:[#allocation5 + $0xb0] sm:$0xff]
    %v186 = vld [vmem:[#allocation5 + $0xb8] sm:$0xff]
    %v187 = vld [vmem:[#allocation5 + $0xc0] sm:$0xff]
    %v188 = vld [vmem:[#allocation5 + $0xc8] sm:$0xff]
    %v189 = vld [vmem:[#allocation5 + $0xd0] sm:$0xff]
    %v190 = vld [vmem:[#allocation5 + $0xd8] sm:$0xff]
    %v191 = vld [vmem:[#allocation5 + $0xe0] sm:$0xff]
    %v192 = vld [vmem:[#allocation5 + $0xe8] sm:$0xff]
    %v193 = vld [vmem:[#allocation5 + $0xf0] sm:$0xff]
    %v194 = vld [vmem:[#allocation5 + $0xf8] sm:$0xff]
    %v195 = vld [vmem:[#allocation5 + $0x100] sm:$0xff]
    %v196 = vld [vmem:[#allocation5 + $0x108] sm:$0xff]
    %v197 = vld [vmem:[#allocation5 + $0x110] sm:$0xff]
    %v198 = vld [vmem:[#allocation5 + $0x118] sm:$0xff]
    %v199 = vld [vmem:[#allocation5 + $0x120] sm:$0xff]
    %v200 = vld [vmem:[#allocation5 + $0x128] sm:$0xff]
    %v201 = vld [vmem:[#allocation5 + $0x130] sm:$0xff]
    %v202 = vld [vmem:[#allocation5 + $0x138] sm:$0xff]
    %v203 = vld [vmem:[#allocation5 + $0x140] sm:$0xff]
    %v204 = vld [vmem:[#allocation5 + $0x148] sm:$0xff]
    %v205 = vld [vmem:[#allocation5 + $0x150] sm:$0xff]
    %v206 = vld [vmem:[#allocation5 + $0x158] sm:$0xff]
    %v207 = vld [vmem:[#allocation5 + $0x160] sm:$0xff]
    %v208 = vld [vmem:[#allocation5 + $0x168] sm:$0xff]
    %v209 = vld [vmem:[#allocation5 + $0x170] sm:$0xff]
    %v210 = vld [vmem:[#allocation5 + $0x178] sm:$0xff]
    %v211 = vld [vmem:[#allocation5 + $0x180] sm:$0xff]
    %v212 = vld [vmem:[#allocation5 + $0x188] sm:$0xff]
    %v213 = vld [vmem:[#allocation5 + $0x190] sm:$0xff]
    %v214 = vld [vmem:[#allocation5 + $0x198] sm:$0xff]
    %v215 = vld [vmem:[#allocation5 + $0x1a0] sm:$0xff]
    %v216 = vld [vmem:[#allocation5 + $0x1a8] sm:$0xff]
    %v217 = vld [vmem:[#allocation5 + $0x1b0] sm:$0xff]
    %v218 = vld [vmem:[#allocation5 + $0x1b8] sm:$0xff]
    %v219 = vld [vmem:[#allocation5 + $0x1c0] sm:$0xff]
    %v220 = vld [vmem:[#allocation5 + $0x1c8] sm:$0xff]
    %v221 = vld [vmem:[#allocation5 + $0x1d0] sm:$0xff]
    %v222 = vld [vmem:[#allocation5 + $0x1d8] sm:$0xff]
    %v223 = vld [vmem:[#allocation5 + $0x1e0] sm:$0xff]
    %v224 = vld [vmem:[#allocation5 + $0x1e8] sm:$0xff]
    %v225 = vld [vmem:[#allocation5 + $0x1f0] sm:$0xff]
    %v226 = vld [vmem:[#allocation5 + $0x1f8] sm:$0xff]
    %v227 = vld [vmem:[#allocation5 + $0x200] sm:$0xff]
    %v228 = vld [vmem:[#allocation5 + $0x208] sm:$0xff]
    %v229 = vld [vmem:[#allocation5 + $0x210] sm:$0xff]
    %v230 = vld [vmem:[#allocation5 + $0x218] sm:$0xff]
    %v231 = vld [vmem:[#allocation5 + $0x220] sm:$0xff]
    %v232 = vld [vmem:[#allocation5 + $0x228] sm:$0xff]
    %v233 = vld [vmem:[#allocation5 + $0x230] sm:$0xff]
    %v234 = vld [vmem:[#allocation5 + $0x238] sm:$0xff]
    %v235 = vld [vmem:[#allocation5 + $0x240] sm:$0xff]
    %v236 = vld [vmem:[#allocation5 + $0x248] sm:$0xff]
    %v237 = vld [vmem:[#allocation5 + $0x250] sm:$0xff]
    %v238 = vld [vmem:[#allocation5 + $0x258] sm:$0xff]
    %v239 = vld [vmem:[#allocation5 + $0x260] sm:$0xff]
    %v240 = vld [vmem:[#allocation5 + $0x268] sm:$0xff]
    %v241 = vld [vmem:[#allocation5 + $0x270] sm:$0xff]
    %v242 = vld [vmem:[#allocation5 + $0x278] sm:$0xff]
    %v243 = vld [vmem:[#allocation5 + $0x280] sm:$0xff]
    %v244 = vld [vmem:[#allocation5 + $0x288] sm:$0xff]
    %v245 = vld [vmem:[#allocation5 + $0x290] sm:$0xff]
    %v246 = vld [vmem:[#allocation5 + $0x298] sm:$0xff]
    %v247 = vld [vmem:[#allocation5 + $0x2a0] sm:$0xff]
    %v248 = vld [vmem:[#allocation5 + $0x2a8] sm:$0xff]
    %v249 = vld [vmem:[#allocation5 + $0x2b0] sm:$0xff]
    %v250 = vld [vmem:[#allocation5 + $0x2b8] sm:$0xff]
    %v251 = vld [vmem:[#allocation5 + $0x2c0] sm:$0xff]
    %v252 = vld [vmem:[#allocation5 + $0x2c8] sm:$0xff]
    %v253 = vld [vmem:[#allocation5 + $0x2d0] sm:$0xff]
    %v254 = vld [vmem:[#allocation5 + $0x2d8] sm:$0xff]
    %v255 = vld [vmem:[#allocation5 + $0x2e0] sm:$0xff]
    %v256 = vld [vmem:[#allocation5 + $0x2e8] sm:$0xff]
    %v257 = vld [vmem:[#allocation5 + $0x2f0] sm:$0xff]
    %v258 = vld [vmem:[#allocation5 + $0x2f8] sm:$0xff]
    %v259 = vld [vmem:[#allocation5 + $0x300] sm:$0xff]
    %v260 = vld [vmem:[#allocation5 + $0x308] sm:$0xff]
    %v261 = vld [vmem:[#allocation5 + $0x310] sm:$0xff]
    %v262 = vld [vmem:[#allocation5 + $0x318] sm:$0xff]
    %v263 = vld [vmem:[#allocation5 + $0x320] sm:$0xff]
    %v264 = vld [vmem:[#allocation5 + $0x328] sm:$0xff]
    %v265 = vld [vmem:[#allocation5 + $0x330] sm:$0xff]
    %v266 = vld [vmem:[#allocation5 + $0x338] sm:$0xff]
    %v267 = vld [vmem:[#allocation5 + $0x340] sm:$0xff]
    %v268 = vld [vmem:[#allocation5 + $0x348] sm:$0xff]
    %v269 = vld [vmem:[#allocation5 + $0x350] sm:$0xff]
    %v270 = vld [vmem:[#allocation5 + $0x358] sm:$0xff]
    %v271 = vld [vmem:[#allocation5 + $0x360] sm:$0xff]
    %v272 = vld [vmem:[#allocation5 + $0x368] sm:$0xff]
    %v273 = vld [vmem:[#allocation5 + $0x370] sm:$0xff]
    %v274 = vld [vmem:[#allocation5 + $0x378] sm:$0xff]
    %v275 = vld [vmem:[#allocation5 + $0x380] sm:$0xff]
    %v276 = vld [vmem:[#allocation5 + $0x388] sm:$0xff]
    %v277 = vld [vmem:[#allocation5 + $0x390] sm:$0xff]
    %v278 = vld [vmem:[#allocation5 + $0x398] sm:$0xff]
    %v279 = vld [vmem:[#allocation5 + $0x3a0] sm:$0xff]
    %v280 = vld [vmem:[#allocation5 + $0x3a8] sm:$0xff]
    %v281 = vld [vmem:[#allocation5 + $0x3b0] sm:$0xff]
    %v282 = vld [vmem:[#allocation5 + $0x3b8] sm:$0xff]
    %v283 = vld [vmem:[#allocation5 + $0x3c0] sm:$0xff]
    %v284 = vld [vmem:[#allocation5 + $0x3c8] sm:$0xff]
    %v285 = vld [vmem:[#allocation5 + $0x3d0] sm:$0xff]
    %v286 = vld [vmem:[#allocation5 + $0x3d8] sm:$0xff]
    %v287 = vld [vmem:[#allocation5 + $0x3e0] sm:$0xff]
    %v288 = vld [vmem:[#allocation5 + $0x3e8] sm:$0xff]
    %v289 = vld [vmem:[#allocation5 + $0x3f0] sm:$0xff]
    %v290 = vld [vmem:[#allocation5 + $0x3f8] sm:$0xff]
    %v291 = vunpack.c.l.s8.bf16 %v163
    %v292 = vunpack.c.l.s8.bf16 %v164
    %v293 = vunpack.c.l.s8.bf16 %v165
    %v294 = vunpack.c.l.s8.bf16 %v166
    %v295 = vunpack.c.h.s8.bf16 %v163
    %v296 = vunpack.c.h.s8.bf16 %v164
    %v297 = vunpack.c.h.s8.bf16 %v165
    %v298 = vunpack.c.h.s8.bf16 %v166
    %v299 = vunpack.c.l.s8.bf16 %v167
    %v300 = vunpack.c.l.s8.bf16 %v168
    %v301 = vunpack.c.l.s8.bf16 %v169
    %v302 = vunpack.c.l.s8.bf16 %v170
    %v303 = vunpack.c.h.s8.bf16 %v167
    %v304 = vunpack.c.h.s8.bf16 %v168
    %v305 = vunpack.c.h.s8.bf16 %v169
    %v306 = vunpack.c.h.s8.bf16 %v170
    %v307 = vunpack.c.l.s8.bf16 %v171
    %v308 = vunpack.c.l.s8.bf16 %v172
    %v309 = vunpack.c.l.s8.bf16 %v173
    %v310 = vunpack.c.l.s8.bf16 %v174
    %v311 = vunpack.c.h.s8.bf16 %v171
    %v312 = vunpack.c.h.s8.bf16 %v172
    %v313 = vunpack.c.h.s8.bf16 %v173
    %v314 = vunpack.c.h.s8.bf16 %v174
    %v315 = vunpack.c.l.s8.bf16 %v175
    %v316 = vunpack.c.l.s8.bf16 %v176
    %v317 = vunpack.c.l.s8.bf16 %v177
    %v318 = vunpack.c.l.s8.bf16 %v178
    %v319 = vunpack.c.h.s8.bf16 %v175
    %v320 = vunpack.c.h.s8.bf16 %v176
    %v321 = vunpack.c.h.s8.bf16 %v177
    %v322 = vunpack.c.h.s8.bf16 %v178
    %v323 = vunpack.c.l.s8.bf16 %v179
    %v324 = vunpack.c.l.s8.bf16 %v180
    %v325 = vunpack.c.l.s8.bf16 %v181
    %v326 = vunpack.c.l.s8.bf16 %v182
    %v327 = vunpack.c.h.s8.bf16 %v179
    %v328 = vunpack.c.h.s8.bf16 %v180
    %v329 = vunpack.c.h.s8.bf16 %v181
    %v330 = vunpack.c.h.s8.bf16 %v182
    %v331 = vunpack.c.l.s8.bf16 %v183
    %v332 = vunpack.c.l.s8.bf16 %v184
    %v333 = vunpack.c.l.s8.bf16 %v185
    %v334 = vunpack.c.l.s8.bf16 %v186
    %v335 = vunpack.c.h.s8.bf16 %v183
    %v336 = vunpack.c.h.s8.bf16 %v184
    %v337 = vunpack.c.h.s8.bf16 %v185
    %v338 = vunpack.c.h.s8.bf16 %v186
    %v339 = vunpack.c.l.s8.bf16 %v187
    %v340 = vunpack.c.l.s8.bf16 %v188
    %v341 = vunpack.c.l.s8.bf16 %v189
    %v342 = vunpack.c.l.s8.bf16 %v190
    %v343 = vunpack.c.h.s8.bf16 %v187
    %v344 = vunpack.c.h.s8.bf16 %v188
    %v345 = vunpack.c.h.s8.bf16 %v189
    %v346 = vunpack.c.h.s8.bf16 %v190
    %v347 = vunpack.c.l.s8.bf16 %v191
    %v348 = vunpack.c.l.s8.bf16 %v192
    %v349 = vunpack.c.l.s8.bf16 %v193
    %v350 = vunpack.c.l.s8.bf16 %v194
    %v351 = vunpack.c.h.s8.bf16 %v191
    %v352 = vunpack.c.h.s8.bf16 %v192
    %v353 = vunpack.c.h.s8.bf16 %v193
    %v354 = vunpack.c.h.s8.bf16 %v194
    %v355 = vunpack.c.l.s8.bf16 %v195
    %v356 = vunpack.c.l.s8.bf16 %v196
    %v357 = vunpack.c.l.s8.bf16 %v197
    %v358 = vunpack.c.l.s8.bf16 %v198
    %v359 = vunpack.c.h.s8.bf16 %v195
    %v360 = vunpack.c.h.s8.bf16 %v196
    %v361 = vunpack.c.h.s8.bf16 %v197
    %v362 = vunpack.c.h.s8.bf16 %v198
    %v363 = vunpack.c.l.s8.bf16 %v199
    %v364 = vunpack.c.l.s8.bf16 %v200
    %v365 = vunpack.c.l.s8.bf16 %v201
    %v366 = vunpack.c.l.s8.bf16 %v202
    %v367 = vunpack.c.h.s8.bf16 %v199
    %v368 = vunpack.c.h.s8.bf16 %v200
    %v369 = vunpack.c.h.s8.bf16 %v201
    %v370 = vunpack.c.h.s8.bf16 %v202
    %v371 = vunpack.c.l.s8.bf16 %v203
    %v372 = vunpack.c.l.s8.bf16 %v204
    %v373 = vunpack.c.l.s8.bf16 %v205
    %v374 = vunpack.c.l.s8.bf16 %v206
    %v375 = vunpack.c.h.s8.bf16 %v203
    %v376 = vunpack.c.h.s8.bf16 %v204
    %v377 = vunpack.c.h.s8.bf16 %v205
    %v378 = vunpack.c.h.s8.bf16 %v206
    %v379 = vunpack.c.l.s8.bf16 %v207
    %v380 = vunpack.c.l.s8.bf16 %v208
    %v381 = vunpack.c.l.s8.bf16 %v209
    %v382 = vunpack.c.l.s8.bf16 %v210
    %v383 = vunpack.c.h.s8.bf16 %v207
    %v384 = vunpack.c.h.s8.bf16 %v208
    %v385 = vunpack.c.h.s8.bf16 %v209
    %v386 = vunpack.c.h.s8.bf16 %v210
    %v387 = vunpack.c.l.s8.bf16 %v211
    %v388 = vunpack.c.l.s8.bf16 %v212
    %v389 = vunpack.c.l.s8.bf16 %v213
    %v390 = vunpack.c.l.s8.bf16 %v214
    %v391 = vunpack.c.h.s8.bf16 %v211
    %v392 = vunpack.c.h.s8.bf16 %v212
    %v393 = vunpack.c.h.s8.bf16 %v213
    %v394 = vunpack.c.h.s8.bf16 %v214
    %v395 = vunpack.c.l.s8.bf16 %v215
    %v396 = vunpack.c.l.s8.bf16 %v216
    %v397 = vunpack.c.l.s8.bf16 %v217
    %v398 = vunpack.c.l.s8.bf16 %v218
    %v399 = vunpack.c.h.s8.bf16 %v215
    %v400 = vunpack.c.h.s8.bf16 %v216
    %v401 = vunpack.c.h.s8.bf16 %v217
    %v402 = vunpack.c.h.s8.bf16 %v218
    %v403 = vunpack.c.l.s8.bf16 %v219
    %v404 = vunpack.c.l.s8.bf16 %v220
    %v405 = vunpack.c.l.s8.bf16 %v221
    %v406 = vunpack.c.l.s8.bf16 %v222
    %v407 = vunpack.c.h.s8.bf16 %v219
    %v408 = vunpack.c.h.s8.bf16 %v220
    %v409 = vunpack.c.h.s8.bf16 %v221
    %v410 = vunpack.c.h.s8.bf16 %v222
    %v411 = vunpack.c.l.s8.bf16 %v223
    %v412 = vunpack.c.l.s8.bf16 %v224
    %v413 = vunpack.c.l.s8.bf16 %v225
    %v414 = vunpack.c.l.s8.bf16 %v226
    %v415 = vunpack.c.h.s8.bf16 %v223
    %v416 = vunpack.c.h.s8.bf16 %v224
    %v417 = vunpack.c.h.s8.bf16 %v225
    %v418 = vunpack.c.h.s8.bf16 %v226
    %v419 = vunpack.c.l.s8.bf16 %v227
    %v420 = vunpack.c.l.s8.bf16 %v228
    %v421 = vunpack.c.l.s8.bf16 %v229
    %v422 = vunpack.c.l.s8.bf16 %v230
    %v423 = vunpack.c.h.s8.bf16 %v227
    %v424 = vunpack.c.h.s8.bf16 %v228
    %v425 = vunpack.c.h.s8.bf16 %v229
    %v426 = vunpack.c.h.s8.bf16 %v230
    %v427 = vunpack.c.l.s8.bf16 %v231
    %v428 = vunpack.c.l.s8.bf16 %v232
    %v429 = vunpack.c.l.s8.bf16 %v233
    %v430 = vunpack.c.l.s8.bf16 %v234
    %v431 = vunpack.c.h.s8.bf16 %v231
    %v432 = vunpack.c.h.s8.bf16 %v232
    %v433 = vunpack.c.h.s8.bf16 %v233
    %v434 = vunpack.c.h.s8.bf16 %v234
    %v435 = vunpack.c.l.s8.bf16 %v235
    %v436 = vunpack.c.l.s8.bf16 %v236
    %v437 = vunpack.c.l.s8.bf16 %v237
    %v438 = vunpack.c.l.s8.bf16 %v238
    %v439 = vunpack.c.h.s8.bf16 %v235
    %v440 = vunpack.c.h.s8.bf16 %v236
    %v441 = vunpack.c.h.s8.bf16 %v237
    %v442 = vunpack.c.h.s8.bf16 %v238
    %v443 = vunpack.c.l.s8.bf16 %v239
    %v444 = vunpack.c.l.s8.bf16 %v240
    %v445 = vunpack.c.l.s8.bf16 %v241
    %v446 = vunpack.c.l.s8.bf16 %v242
    %v447 = vunpack.c.h.s8.bf16 %v239
    %v448 = vunpack.c.h.s8.bf16 %v240
    %v449 = vunpack.c.h.s8.bf16 %v241
    %v450 = vunpack.c.h.s8.bf16 %v242
    %v451 = vunpack.c.l.s8.bf16 %v243
    %v452 = vunpack.c.l.s8.bf16 %v244
    %v453 = vunpack.c.l.s8.bf16 %v245
    %v454 = vunpack.c.l.s8.bf16 %v246
    %v455 = vunpack.c.h.s8.bf16 %v243
    %v456 = vunpack.c.h.s8.bf16 %v244
    %v457 = vunpack.c.h.s8.bf16 %v245
    %v458 = vunpack.c.h.s8.bf16 %v246
    %v459 = vunpack.c.l.s8.bf16 %v247
    %v460 = vunpack.c.l.s8.bf16 %v248
    %v461 = vunpack.c.l.s8.bf16 %v249
    %v462 = vunpack.c.l.s8.bf16 %v250
    %v463 = vunpack.c.h.s8.bf16 %v247
    %v464 = vunpack.c.h.s8.bf16 %v248
    %v465 = vunpack.c.h.s8.bf16 %v249
    %v466 = vunpack.c.h.s8.bf16 %v250
    %v467 = vunpack.c.l.s8.bf16 %v251
    %v468 = vunpack.c.l.s8.bf16 %v252
    %v469 = vunpack.c.l.s8.bf16 %v253
    %v470 = vunpack.c.l.s8.bf16 %v254
    %v471 = vunpack.c.h.s8.bf16 %v251
    %v472 = vunpack.c.h.s8.bf16 %v252
    %v473 = vunpack.c.h.s8.bf16 %v253
    %v474 = vunpack.c.h.s8.bf16 %v254
    %v475 = vunpack.c.l.s8.bf16 %v255
    %v476 = vunpack.c.l.s8.bf16 %v256
    %v477 = vunpack.c.l.s8.bf16 %v257
    %v478 = vunpack.c.l.s8.bf16 %v258
    %v479 = vunpack.c.h.s8.bf16 %v255
    %v480 = vunpack.c.h.s8.bf16 %v256
    %v481 = vunpack.c.h.s8.bf16 %v257
    %v482 = vunpack.c.h.s8.bf16 %v258
    %v483 = vunpack.c.l.s8.bf16 %v259
    %v484 = vunpack.c.l.s8.bf16 %v260
    %v485 = vunpack.c.l.s8.bf16 %v261
    %v486 = vunpack.c.l.s8.bf16 %v262
    %v487 = vunpack.c.h.s8.bf16 %v259
    %v488 = vunpack.c.h.s8.bf16 %v260
    %v489 = vunpack.c.h.s8.bf16 %v261
    %v490 = vunpack.c.h.s8.bf16 %v262
    %v491 = vunpack.c.l.s8.bf16 %v263
    %v492 = vunpack.c.l.s8.bf16 %v264
    %v493 = vunpack.c.l.s8.bf16 %v265
    %v494 = vunpack.c.l.s8.bf16 %v266
    %v495 = vunpack.c.h.s8.bf16 %v263
    %v496 = vunpack.c.h.s8.bf16 %v264
    %v497 = vunpack.c.h.s8.bf16 %v265
    %v498 = vunpack.c.h.s8.bf16 %v266
    %v499 = vunpack.c.l.s8.bf16 %v267
    %v500 = vunpack.c.l.s8.bf16 %v268
    %v501 = vunpack.c.l.s8.bf16 %v269
    %v502 = vunpack.c.l.s8.bf16 %v270
    %v503 = vunpack.c.h.s8.bf16 %v267
    %v504 = vunpack.c.h.s8.bf16 %v268
    %v505 = vunpack.c.h.s8.bf16 %v269
    %v506 = vunpack.c.h.s8.bf16 %v270
    %v507 = vunpack.c.l.s8.bf16 %v271
    %v508 = vunpack.c.l.s8.bf16 %v272
    %v509 = vunpack.c.l.s8.bf16 %v273
    %v510 = vunpack.c.l.s8.bf16 %v274
    %v511 = vunpack.c.h.s8.bf16 %v271
    %v512 = vunpack.c.h.s8.bf16 %v272
    %v513 = vunpack.c.h.s8.bf16 %v273
    %v514 = vunpack.c.h.s8.bf16 %v274
    %v515 = vunpack.c.l.s8.bf16 %v275
    %v516 = vunpack.c.l.s8.bf16 %v276
    %v517 = vunpack.c.l.s8.bf16 %v277
    %v518 = vunpack.c.l.s8.bf16 %v278
    %v519 = vunpack.c.h.s8.bf16 %v275
    %v520 = vunpack.c.h.s8.bf16 %v276
    %v521 = vunpack.c.h.s8.bf16 %v277
    %v522 = vunpack.c.h.s8.bf16 %v278
    %v523 = vunpack.c.l.s8.bf16 %v279
    %v524 = vunpack.c.l.s8.bf16 %v280
    %v525 = vunpack.c.l.s8.bf16 %v281
    %v526 = vunpack.c.l.s8.bf16 %v282
    %v527 = vunpack.c.h.s8.bf16 %v279
    %v528 = vunpack.c.h.s8.bf16 %v280
    %v529 = vunpack.c.h.s8.bf16 %v281
    %v530 = vunpack.c.h.s8.bf16 %v282
    %v531 = vunpack.c.l.s8.bf16 %v283
    %v532 = vunpack.c.l.s8.bf16 %v284
    %v533 = vunpack.c.l.s8.bf16 %v285
    %v534 = vunpack.c.l.s8.bf16 %v286
    %v535 = vunpack.c.h.s8.bf16 %v283
    %v536 = vunpack.c.h.s8.bf16 %v284
    %v537 = vunpack.c.h.s8.bf16 %v285
    %v538 = vunpack.c.h.s8.bf16 %v286
    %v539 = vunpack.c.l.s8.bf16 %v287
    %v540 = vunpack.c.l.s8.bf16 %v288
    %v541 = vunpack.c.l.s8.bf16 %v289
    %v542 = vunpack.c.l.s8.bf16 %v290
    %v543 = vunpack.c.h.s8.bf16 %v287
    %v544 = vunpack.c.h.s8.bf16 %v288
    %v545 = vunpack.c.h.s8.bf16 %v289
    %v546 = vunpack.c.h.s8.bf16 %v290
    %v547 = vld [vmem:[%s3] sm:$0xf]
    %v548 = vld [vmem:[%s6] ss:$8 sm:$0xf]
    %v549 = vld [vmem:[%s0] sm:$0xff]
    %v551 = vcombine.high %v549, %v549
    %v553 = vunpack.c.l.s4 1966171168
    %v554 = vunpack.c.0.s8 %v553
    %v555 = vlaneseq
    %v556 = vshrl.u32 %v555, 7
    %v557 = vsub.s32 %v554, %v556
    %v558 = vrot.slane %v549, %v557
    %v560 = vunpack.c.l.s4 1966171168
    %v561 = vunpack.c.0.s8 %v560
    %v562 = vlaneseq
    %v563 = vshrl.u32 %v562, 7
    %v564 = vsub.s32 %v561, %v563
    %v565 = vrot.slane %v551, %v564
    %v566 = vcombine.high %v558, %v558
    %v567 = vcombine.high %v565, %v565
    %v569 = vunpack.c.l.s4 1966171168
    %v570 = vunpack.c.0.s8 %v569
    %v571 = vlaneseq
    %v572 = vshrl.u32 %v571, 7
    %v573 = vsub.s32 %v570, %v572
    %v574 = vrot.slane %v558, %v573
    %v576 = vunpack.c.l.s4 1966171168
    %v577 = vunpack.c.0.s8 %v576
    %v578 = vlaneseq
    %v579 = vshrl.u32 %v578, 7
    %v580 = vsub.s32 %v577, %v579
    %v581 = vrot.slane %v565, %v580
    %v583 = vunpack.c.l.s4 1966171168
    %v584 = vunpack.c.0.s8 %v583
    %v585 = vlaneseq
    %v586 = vshrl.u32 %v585, 7
    %v587 = vsub.s32 %v584, %v586
    %v588 = vrot.slane %v566, %v587
    %v590 = vunpack.c.l.s4 1966171168
    %v591 = vunpack.c.0.s8 %v590
    %v592 = vlaneseq
    %v593 = vshrl.u32 %v592, 7
    %v594 = vsub.s32 %v591, %v593
    %v595 = vrot.slane %v567, %v594
    %v596 = vcombine.high %v574, %v574
    %v597 = vcombine.high %v581, %v581
    %v598 = vcombine.high %v588, %v588
    %v599 = vcombine.high %v595, %v595
    %608 = vmatprep.subr.bf16.mxu0 %v292
    %609 = vmatpush1.bf16.msra.mxu0 %v291
    %610 = vmatprep.subr.bf16.mxu0 %v296
    %611 = vmatpush1.bf16.msra.mxu0 %v295
    %612 = vmatprep.subr.bf16.mxu0 %v300
    %613 = vmatpush1.bf16.msra.mxu0 %v299
    %614 = vmatprep.subr.bf16.mxu0 %v304
    %615 = vmatpush1.bf16.msra.mxu0 %v303
    %616 = vmatprep.subr.bf16.mxu0 %v308
    %617 = vmatpush1.bf16.msra.mxu0 %v307
    %618 = vmatprep.subr.bf16.mxu0 %v312
    %619 = vmatpush1.bf16.msra.mxu0 %v311
    %620 = vmatprep.subr.bf16.mxu0 %v316
    %621 = vmatpush1.bf16.msra.mxu0 %v315
    %622 = vmatprep.subr.bf16.mxu0 %v320
    %623 = vmatpush1.bf16.msra.mxu0 %v319
    %624 = vmatprep.subr.bf16.mxu0 %v324
    %625 = vmatpush1.bf16.msra.mxu0 %v323
    %626 = vmatprep.subr.bf16.mxu0 %v328
    %627 = vmatpush1.bf16.msra.mxu0 %v327
    %628 = vmatprep.subr.bf16.mxu0 %v332
    %629 = vmatpush1.bf16.msra.mxu0 %v331
    %630 = vmatprep.subr.bf16.mxu0 %v336
    %631 = vmatpush1.bf16.msra.mxu0 %v335
    %632 = vmatprep.subr.bf16.mxu0 %v340
    %633 = vmatpush1.bf16.msra.mxu0 %v339
    %634 = vmatprep.subr.bf16.mxu0 %v344
    %635 = vmatpush1.bf16.msra.mxu0 %v343
    %636 = vmatprep.subr.bf16.mxu0 %v348
    %637 = vmatpush1.bf16.msra.mxu0 %v347
    %638 = vmatprep.subr.bf16.mxu0 %v352
    %639 = vmatpush1.bf16.msra.mxu0 %v351
    %640 = vmatprep.mubr.bf16.mxu0 %v588
    %641 = vmatmul.mubr.bf16.gmra.mrb[0].mxu0 %v574
    %v642 = vpop.f32.mrb[0].mxu0
    %v643 = vadd.f32 0.0, %v642
    %v644 = vpop.f32.mrb[0].mxu0
    %v645 = vadd.f32 0.0, %v644
    %v646 = vpop.f32.mrb[0].mxu0
    %v647 = vpop.f32.mrb[0].mxu0
    %648 = vdwg.mxu0
    %649 = vmatprep.subr.bf16.mxu0 %v356
    %650 = vmatpush1.bf16.msra.mxu0 %v355
    %651 = vmatprep.subr.bf16.mxu0 %v360
    %652 = vmatpush1.bf16.msra.mxu0 %v359
    %653 = vmatprep.subr.bf16.mxu0 %v364
    %654 = vmatpush1.bf16.msra.mxu0 %v363
    %655 = vmatprep.subr.bf16.mxu0 %v368
    %656 = vmatpush1.bf16.msra.mxu0 %v367
    %657 = vmatprep.subr.bf16.mxu0 %v372
    %658 = vmatpush1.bf16.msra.mxu0 %v371
    %659 = vmatprep.subr.bf16.mxu0 %v376
    %660 = vmatpush1.bf16.msra.mxu0 %v375
    %661 = vmatprep.subr.bf16.mxu0 %v380
    %662 = vmatpush1.bf16.msra.mxu0 %v379
    %663 = vmatprep.subr.bf16.mxu0 %v384
    %664 = vmatpush1.bf16.msra.mxu0 %v383
    %665 = vmatprep.subr.bf16.mxu0 %v388
    %666 = vmatpush1.bf16.msra.mxu0 %v387
    %667 = vmatprep.subr.bf16.mxu0 %v392
    %668 = vmatpush1.bf16.msra.mxu0 %v391
    %669 = vmatprep.subr.bf16.mxu0 %v396
    %670 = vmatpush1.bf16.msra.mxu0 %v395
    %671 = vmatprep.subr.bf16.mxu0 %v400
    %672 = vmatpush1.bf16.msra.mxu0 %v399
    %673 = vmatprep.subr.bf16.mxu0 %v404
    %674 = vmatpush1.bf16.msra.mxu0 %v403
    %675 = vmatprep.subr.bf16.mxu0 %v408
    %676 = vmatpush1.bf16.msra.mxu0 %v407
    %677 = vmatprep.subr.bf16.mxu0 %v412
    %678 = vmatpush1.bf16.msra.mxu0 %v411
    %679 = vmatprep.subr.bf16.mxu0 %v416
    %680 = vmatpush1.bf16.msra.mxu0 %v415
    %681 = vmatprep.mubr.bf16.mxu0 %v598
    %682 = vmatmul.mubr.bf16.gmra.mrb[0].mxu0 %v596
    %v683 = vpop.f32.mrb[0].mxu0
    %v684 = vadd.f32 %v643, %v683
    %v685 = vpop.f32.mrb[0].mxu0
    %v686 = vadd.f32 %v645, %v685
    %v687 = vpop.f32.mrb[0].mxu0
    %v688 = vpop.f32.mrb[0].mxu0
    %689 = vdwg.mxu0
    %690 = vmatprep.subr.bf16.mxu0 %v420
    %691 = vmatpush1.bf16.msra.mxu0 %v419
    %692 = vmatprep.subr.bf16.mxu0 %v424
    %693 = vmatpush1.bf16.msra.mxu0 %v423
    %694 = vmatprep.subr.bf16.mxu0 %v428
    %695 = vmatpush1.bf16.msra.mxu0 %v427
    %696 = vmatprep.subr.bf16.mxu0 %v432
    %697 = vmatpush1.bf16.msra.mxu0 %v431
    %698 = vmatprep.subr.bf16.mxu0 %v436
    %699 = vmatpush1.bf16.msra.mxu0 %v435
    %700 = vmatprep.subr.bf16.mxu0 %v440
    %701 = vmatpush1.bf16.msra.mxu0 %v439
    %702 = vmatprep.subr.bf16.mxu0 %v444
    %703 = vmatpush1.bf16.msra.mxu0 %v443
    %704 = vmatprep.subr.bf16.mxu0 %v448
    %705 = vmatpush1.bf16.msra.mxu0 %v447
    %706 = vmatprep.subr.bf16.mxu0 %v452
    %707 = vmatpush1.bf16.msra.mxu0 %v451
    %708 = vmatprep.subr.bf16.mxu0 %v456
    %709 = vmatpush1.bf16.msra.mxu0 %v455
    %710 = vmatprep.subr.bf16.mxu0 %v460
    %711 = vmatpush1.bf16.msra.mxu0 %v459
    %712 = vmatprep.subr.bf16.mxu0 %v464
    %713 = vmatpush1.bf16.msra.mxu0 %v463
    %714 = vmatprep.subr.bf16.mxu0 %v468
    %715 = vmatpush1.bf16.msra.mxu0 %v467
    %716 = vmatprep.subr.bf16.mxu0 %v472
    %717 = vmatpush1.bf16.msra.mxu0 %v471
    %718 = vmatprep.subr.bf16.mxu0 %v476
    %719 = vmatpush1.bf16.msra.mxu0 %v475
    %720 = vmatprep.subr.bf16.mxu0 %v480
    %721 = vmatpush1.bf16.msra.mxu0 %v479
    %722 = vmatprep.mubr.bf16.mxu0 %v595
    %723 = vmatmul.mubr.bf16.gmra.mrb[0].mxu0 %v581
    %v724 = vpop.f32.mrb[0].mxu0
    %v725 = vadd.f32 %v684, %v724
    %v726 = vpop.f32.mrb[0].mxu0
    %v727 = vadd.f32 %v686, %v726
    %v728 = vpop.f32.mrb[0].mxu0
    %v729 = vpop.f32.mrb[0].mxu0
    %730 = vdwg.mxu0
    %731 = vmatprep.subr.bf16.mxu0 %v484
    %732 = vmatpush1.bf16.msra.mxu0 %v483
    %733 = vmatprep.subr.bf16.mxu0 %v488
    %734 = vmatpush1.bf16.msra.mxu0 %v487
    %735 = vmatprep.subr.bf16.mxu0 %v492
    %736 = vmatpush1.bf16.msra.mxu0 %v491
    %737 = vmatprep.subr.bf16.mxu0 %v496
    %738 = vmatpush1.bf16.msra.mxu0 %v495
    %739 = vmatprep.subr.bf16.mxu0 %v500
    %740 = vmatpush1.bf16.msra.mxu0 %v499
    %741 = vmatprep.subr.bf16.mxu0 %v504
    %742 = vmatpush1.bf16.msra.mxu0 %v503
    %743 = vmatprep.subr.bf16.mxu0 %v508
    %744 = vmatpush1.bf16.msra.mxu0 %v507
    %745 = vmatprep.subr.bf16.mxu0 %v512
    %746 = vmatpush1.bf16.msra.mxu0 %v511
    %747 = vmatprep.subr.bf16.mxu0 %v516
    %748 = vmatpush1.bf16.msra.mxu0 %v515
    %749 = vmatprep.subr.bf16.mxu0 %v520
    %750 = vmatpush1.bf16.msra.mxu0 %v519
    %751 = vmatprep.subr.bf16.mxu0 %v524
    %752 = vmatpush1.bf16.msra.mxu0 %v523
    %753 = vmatprep.subr.bf16.mxu0 %v528
    %754 = vmatpush1.bf16.msra.mxu0 %v527
    %755 = vmatprep.subr.bf16.mxu0 %v532
    %756 = vmatpush1.bf16.msra.mxu0 %v531
    %757 = vmatprep.subr.bf16.mxu0 %v536
    %758 = vmatpush1.bf16.msra.mxu0 %v535
    %759 = vmatprep.subr.bf16.mxu0 %v540
    %760 = vmatpush1.bf16.msra.mxu0 %v539
    %761 = vmatprep.subr.bf16.mxu0 %v544
    %762 = vmatpush1.bf16.msra.mxu0 %v543
    %763 = vmatprep.mubr.bf16.mxu0 %v599
    %764 = vmatmul.mubr.bf16.gmra.mrb[0].mxu0 %v597
    %v765 = vpop.f32.mrb[0].mxu0
    %v766 = vadd.f32 %v725, %v765
    %v767 = vpop.f32.mrb[0].mxu0
    %v768 = vadd.f32 %v727, %v767
    %v769 = vpop.f32.mrb[0].mxu0
    %v770 = vpop.f32.mrb[0].mxu0
    %771 = vdwg.mxu0
    %772 = vmatprep.subr.bf16.mxu0 %v294
    %773 = vmatpush1.bf16.msra.mxu0 %v293
    %774 = vmatprep.subr.bf16.mxu0 %v298
    %775 = vmatpush1.bf16.msra.mxu0 %v297
    %776 = vmatprep.subr.bf16.mxu0 %v302
    %777 = vmatpush1.bf16.msra.mxu0 %v301
    %778 = vmatprep.subr.bf16.mxu0 %v306
    %779 = vmatpush1.bf16.msra.mxu0 %v305
    %780 = vmatprep.subr.bf16.mxu0 %v310
    %781 = vmatpush1.bf16.msra.mxu0 %v309
    %782 = vmatprep.subr.bf16.mxu0 %v314
    %783 = vmatpush1.bf16.msra.mxu0 %v313
    %784 = vmatprep.subr.bf16.mxu0 %v318
    %785 = vmatpush1.bf16.msra.mxu0 %v317
    %786 = vmatprep.subr.bf16.mxu0 %v322
    %787 = vmatpush1.bf16.msra.mxu0 %v321
    %788 = vmatprep.subr.bf16.mxu0 %v326
    %789 = vmatpush1.bf16.msra.mxu0 %v325
    %790 = vmatprep.subr.bf16.mxu0 %v330
    %791 = vmatpush1.bf16.msra.mxu0 %v329
    %792 = vmatprep.subr.bf16.mxu0 %v334
    %793 = vmatpush1.bf16.msra.mxu0 %v333
    %794 = vmatprep.subr.bf16.mxu0 %v338
    %795 = vmatpush1.bf16.msra.mxu0 %v337
    %796 = vmatprep.subr.bf16.mxu0 %v342
    %797 = vmatpush1.bf16.msra.mxu0 %v341
    %798 = vmatprep.subr.bf16.mxu0 %v346
    %799 = vmatpush1.bf16.msra.mxu0 %v345
    %800 = vmatprep.subr.bf16.mxu0 %v350
    %801 = vmatpush1.bf16.msra.mxu0 %v349
    %802 = vmatprep.subr.bf16.mxu0 %v354
    %803 = vmatpush1.bf16.msra.mxu0 %v353
    %804 = vmatprep.mubr.bf16.mxu0 %v588
    %805 = vmatmul.mubr.bf16.gmra.mrb[0].mxu0 %v574
    %v806 = vpop.f32.mrb[0].mxu0
    %v807 = vadd.f32 0.0, %v806
    %v808 = vpop.f32.mrb[0].mxu0
    %v809 = vadd.f32 0.0, %v808
    %v810 = vpop.f32.mrb[0].mxu0
    %v811 = vpop.f32.mrb[0].mxu0
    %812 = vdwg.mxu0
    %813 = vmatprep.subr.bf16.mxu0 %v358
    %814 = vmatpush1.bf16.msra.mxu0 %v357
    %815 = vmatprep.subr.bf16.mxu0 %v362
    %816 = vmatpush1.bf16.msra.mxu0 %v361
    %817 = vmatprep.subr.bf16.mxu0 %v366
    %818 = vmatpush1.bf16.msra.mxu0 %v365
    %819 = vmatprep.subr.bf16.mxu0 %v370
    %820 = vmatpush1.bf16.msra.mxu0 %v369
    %821 = vmatprep.subr.bf16.mxu0 %v374
    %822 = vmatpush1.bf16.msra.mxu0 %v373
    %823 = vmatprep.subr.bf16.mxu0 %v378
    %824 = vmatpush1.bf16.msra.mxu0 %v377
    %825 = vmatprep.subr.bf16.mxu0 %v382
    %826 = vmatpush1.bf16.msra.mxu0 %v381
    %827 = vmatprep.subr.bf16.mxu0 %v386
    %828 = vmatpush1.bf16.msra.mxu0 %v385
    %829 = vmatprep.subr.bf16.mxu0 %v390
    %830 = vmatpush1.bf16.msra.mxu0 %v389
    %831 = vmatprep.subr.bf16.mxu0 %v394
    %832 = vmatpush1.bf16.msra.mxu0 %v393
    %833 = vmatprep.subr.bf16.mxu0 %v398
    %834 = vmatpush1.bf16.msra.mxu0 %v397
    %835 = vmatprep.subr.bf16.mxu0 %v402
    %836 = vmatpush1.bf16.msra.mxu0 %v401
    %837 = vmatprep.subr.bf16.mxu0 %v406
    %838 = vmatpush1.bf16.msra.mxu0 %v405
    %839 = vmatprep.subr.bf16.mxu0 %v410
    %840 = vmatpush1.bf16.msra.mxu0 %v409
    %841 = vmatprep.subr.bf16.mxu0 %v414
    %842 = vmatpush1.bf16.msra.mxu0 %v413
    %843 = vmatprep.subr.bf16.mxu0 %v418
    %844 = vmatpush1.bf16.msra.mxu0 %v417
    %845 = vmatprep.mubr.bf16.mxu0 %v598
    %846 = vmatmul.mubr.bf16.gmra.mrb[0].mxu0 %v596
    %v847 = vpop.f32.mrb[0].mxu0
    %v848 = vadd.f32 %v807, %v847
    %v849 = vpop.f32.mrb[0].mxu0
    %v850 = vadd.f32 %v809, %v849
    %v851 = vpop.f32.mrb[0].mxu0
    %v852 = vpop.f32.mrb[0].mxu0
    %853 = vdwg.mxu0
    %854 = vmatprep.subr.bf16.mxu0 %v422
    %855 = vmatpush1.bf16.msra.mxu0 %v421
    %856 = vmatprep.subr.bf16.mxu0 %v426
    %857 = vmatpush1.bf16.msra.mxu0 %v425
    %858 = vmatprep.subr.bf16.mxu0 %v430
    %859 = vmatpush1.bf16.msra.mxu0 %v429
    %860 = vmatprep.subr.bf16.mxu0 %v434
    %861 = vmatpush1.bf16.msra.mxu0 %v433
    %862 = vmatprep.subr.bf16.mxu0 %v438
    %863 = vmatpush1.bf16.msra.mxu0 %v437
    %864 = vmatprep.subr.bf16.mxu0 %v442
    %865 = vmatpush1.bf16.msra.mxu0 %v441
    %866 = vmatprep.subr.bf16.mxu0 %v446
    %867 = vmatpush1.bf16.msra.mxu0 %v445
    %868 = vmatprep.subr.bf16.mxu0 %v450
    %869 = vmatpush1.bf16.msra.mxu0 %v449
    %870 = vmatprep.subr.bf16.mxu0 %v454
    %871 = vmatpush1.bf16.msra.mxu0 %v453
    %872 = vmatprep.subr.bf16.mxu0 %v458
    %873 = vmatpush1.bf16.msra.mxu0 %v457
    %874 = vmatprep.subr.bf16.mxu0 %v462
    %875 = vmatpush1.bf16.msra.mxu0 %v461
    %876 = vmatprep.subr.bf16.mxu0 %v466
    %877 = vmatpush1.bf16.msra.mxu0 %v465
    %878 = vmatprep.subr.bf16.mxu0 %v470
    %879 = vmatpush1.bf16.msra.mxu0 %v469
    %880 = vmatprep.subr.bf16.mxu0 %v474
    %881 = vmatpush1.bf16.msra.mxu0 %v473
    %882 = vmatprep.subr.bf16.mxu0 %v478
    %883 = vmatpush1.bf16.msra.mxu0 %v477
    %884 = vmatprep.subr.bf16.mxu0 %v482
    %885 = vmatpush1.bf16.msra.mxu0 %v481
    %886 = vmatprep.mubr.bf16.mxu0 %v595
    %887 = vmatmul.mubr.bf16.gmra.mrb[0].mxu0 %v581
    %v888 = vpop.f32.mrb[0].mxu0
    %v889 = vadd.f32 %v848, %v888
    %v890 = vpop.f32.mrb[0].mxu0
    %v891 = vadd.f32 %v850, %v890
    %v892 = vpop.f32.mrb[0].mxu0
    %v893 = vpop.f32.mrb[0].mxu0
    %894 = vdwg.mxu0
    %895 = vmatprep.subr.bf16.mxu0 %v486
    %896 = vmatpush1.bf16.msra.mxu0 %v485
    %897 = vmatprep.subr.bf16.mxu0 %v490
    %898 = vmatpush1.bf16.msra.mxu0 %v489
    %899 = vmatprep.subr.bf16.mxu0 %v494
    %900 = vmatpush1.bf16.msra.mxu0 %v493
    %901 = vmatprep.subr.bf16.mxu0 %v498
    %902 = vmatpush1.bf16.msra.mxu0 %v497
    %903 = vmatprep.subr.bf16.mxu0 %v502
    %904 = vmatpush1.bf16.msra.mxu0 %v501
    %905 = vmatprep.subr.bf16.mxu0 %v506
    %906 = vmatpush1.bf16.msra.mxu0 %v505
    %907 = vmatprep.subr.bf16.mxu0 %v510
    %908 = vmatpush1.bf16.msra.mxu0 %v509
    %909 = vmatprep.subr.bf16.mxu0 %v514
    %910 = vmatpush1.bf16.msra.mxu0 %v513
    %911 = vmatprep.subr.bf16.mxu0 %v518
    %912 = vmatpush1.bf16.msra.mxu0 %v517
    %913 = vmatprep.subr.bf16.mxu0 %v522
    %914 = vmatpush1.bf16.msra.mxu0 %v521
    %915 = vmatprep.subr.bf16.mxu0 %v526
    %916 = vmatpush1.bf16.msra.mxu0 %v525
    %917 = vmatprep.subr.bf16.mxu0 %v530
    %918 = vmatpush1.bf16.msra.mxu0 %v529
    %919 = vmatprep.subr.bf16.mxu0 %v534
    %920 = vmatpush1.bf16.msra.mxu0 %v533
    %921 = vmatprep.subr.bf16.mxu0 %v538
    %922 = vmatpush1.bf16.msra.mxu0 %v537
    %923 = vmatprep.subr.bf16.mxu0 %v542
    %924 = vmatpush1.bf16.msra.mxu0 %v541
    %925 = vmatprep.subr.bf16.mxu0 %v546
    %926 = vmatpush1.bf16.msra.mxu0 %v545
    %927 = vmatprep.mubr.bf16.mxu0 %v599
    %928 = vmatmul.mubr.bf16.gmra.mrb[0].mxu0 %v597
    %v929 = vpop.f32.mrb[0].mxu0
    %v930 = vadd.f32 %v889, %v929
    %v931 = vpop.f32.mrb[0].mxu0
    %v932 = vadd.f32 %v891, %v931
    %v933 = vpop.f32.mrb[0].mxu0
    %v934 = vpop.f32.mrb[0].mxu0
    %935 = vdwg.mxu0
    %v937 = vlaneseq
    %v938 = vshrl.u32 %v937, 7
    %v939 = vsub.s32 0, %v938
    %v940 = vrot.slane %v547, %v939
    %v941 = vlaneseq
    %v942 = vshrl.u32 %v941, 7
    %v943 = vsub.s32 1, %v942
    %v944 = vrot.slane %v547, %v943
    %v945 = vlaneseq
    %v946 = vshrl.u32 %v945, 7
    %v947 = vsub.s32 2, %v946
    %v948 = vrot.slane %v547, %v947
    %v949 = vlaneseq
    %v950 = vshrl.u32 %v949, 7
    %v951 = vsub.s32 3, %v950
    %v952 = vrot.slane %v547, %v951
    %v957 = vmul.f32 %v766, %v940
    %v958 = vmul.f32 %v768, %v944
    %v959 = vmul.f32 %v930, %v948
    %v960 = vmul.f32 %v932, %v952
    %v962 = vlaneseq
    %v963 = vshrl.u32 %v962, 7
    %v964 = vsub.s32 0, %v963
    %v965 = vrot.slane %v548, %v964
    %v966 = vlaneseq
    %v967 = vshrl.u32 %v966, 7
    %v968 = vsub.s32 1, %v967
    %v969 = vrot.slane %v548, %v968
    %v970 = vlaneseq
    %v971 = vshrl.u32 %v970, 7
    %v972 = vsub.s32 2, %v971
    %v973 = vrot.slane %v548, %v972
    %v974 = vlaneseq
    %v975 = vshrl.u32 %v974, 7
    %v976 = vsub.s32 3, %v975
    %v977 = vrot.slane %v548, %v976
    %v982 = vadd.f32 %v957, %v965
    %v983 = vadd.f32 %v958, %v969
    %v984 = vadd.f32 %v959, %v973
    %v985 = vadd.f32 %v960, %v977
    %v986 = vld [vmem:[%s1] sm:$0xff]
    %v988 = vcombine.high %v986, %v986
    %v990 = vunpack.c.l.s4 1966171168
    %v991 = vunpack.c.0.s8 %v990
    %v992 = vlaneseq
    %v993 = vshrl.u32 %v992, 7
    %v994 = vsub.s32 %v991, %v993
    %v995 = vrot.slane %v986, %v994
    %v997 = vunpack.c.l.s4 1966171168
    %v998 = vunpack.c.0.s8 %v997
    %v999 = vlaneseq
    %v1000 = vshrl.u32 %v999, 7
    %v1001 = vsub.s32 %v998, %v1000
    %v1002 = vrot.slane %v988, %v1001
    %v1003 = vcombine.high %v995, %v995
    %v1004 = vcombine.high %v1002, %v1002
    %v1006 = vunpack.c.l.s4 1966171168
    %v1007 = vunpack.c.0.s8 %v1006
    %v1008 = vlaneseq
    %v1009 = vshrl.u32 %v1008, 7
    %v1010 = vsub.s32 %v1007, %v1009
    %v1011 = vrot.slane %v995, %v1010
    %v1013 = vunpack.c.l.s4 1966171168
    %v1014 = vunpack.c.0.s8 %v1013
    %v1015 = vlaneseq
    %v1016 = vshrl.u32 %v1015, 7
    %v1017 = vsub.s32 %v1014, %v1016
    %v1018 = vrot.slane %v1002, %v1017
    %v1020 = vunpack.c.l.s4 1966171168
    %v1021 = vunpack.c.0.s8 %v1020
    %v1022 = vlaneseq
    %v1023 = vshrl.u32 %v1022, 7
    %v1024 = vsub.s32 %v1021, %v1023
    %v1025 = vrot.slane %v1003, %v1024
    %v1027 = vunpack.c.l.s4 1966171168
    %v1028 = vunpack.c.0.s8 %v1027
    %v1029 = vlaneseq
    %v1030 = vshrl.u32 %v1029, 7
    %v1031 = vsub.s32 %v1028, %v1030
    %v1032 = vrot.slane %v1004, %v1031
    %v1033 = vcombine.high %v1011, %v1011
    %v1034 = vcombine.high %v1018, %v1018
    %v1035 = vcombine.high %v1025, %v1025
    %v1036 = vcombine.high %v1032, %v1032
    %1045 = vmatprep.subr.bf16.mxu0 %v292
    %1046 = vmatpush1.bf16.msra.mxu0 %v291
    %1047 = vmatprep.subr.bf16.mxu0 %v296
    %1048 = vmatpush1.bf16.msra.mxu0 %v295
    %1049 = vmatprep.subr.bf16.mxu0 %v300
    %1050 = vmatpush1.bf16.msra.mxu0 %v299
    %1051 = vmatprep.subr.bf16.mxu0 %v304
    %1052 = vmatpush1.bf16.msra.mxu0 %v303
    %1053 = vmatprep.subr.bf16.mxu0 %v308
    %1054 = vmatpush1.bf16.msra.mxu0 %v307
    %1055 = vmatprep.subr.bf16.mxu0 %v312
    %1056 = vmatpush1.bf16.msra.mxu0 %v311
    %1057 = vmatprep.subr.bf16.mxu0 %v316
    %1058 = vmatpush1.bf16.msra.mxu0 %v315
    %1059 = vmatprep.subr.bf16.mxu0 %v320
    %1060 = vmatpush1.bf16.msra.mxu0 %v319
    %1061 = vmatprep.subr.bf16.mxu0 %v324
    %1062 = vmatpush1.bf16.msra.mxu0 %v323
    %1063 = vmatprep.subr.bf16.mxu0 %v328
    %1064 = vmatpush1.bf16.msra.mxu0 %v327
    %1065 = vmatprep.subr.bf16.mxu0 %v332
    %1066 = vmatpush1.bf16.msra.mxu0 %v331
    %1067 = vmatprep.subr.bf16.mxu0 %v336
    %1068 = vmatpush1.bf16.msra.mxu0 %v335
    %1069 = vmatprep.subr.bf16.mxu0 %v340
    %1070 = vmatpush1.bf16.msra.mxu0 %v339
    %1071 = vmatprep.subr.bf16.mxu0 %v344
    %1072 = vmatpush1.bf16.msra.mxu0 %v343
    %1073 = vmatprep.subr.bf16.mxu0 %v348
    %1074 = vmatpush1.bf16.msra.mxu0 %v347
    %1075 = vmatprep.subr.bf16.mxu0 %v352
    %1076 = vmatpush1.bf16.msra.mxu0 %v351
    %1077 = vmatprep.mubr.bf16.mxu0 %v1025
    %1078 = vmatmul.mubr.bf16.gmra.mrb[0].mxu0 %v1011
    %v1079 = vpop.f32.mrb[0].mxu0
    %v1080 = vadd.f32 0.0, %v1079
    %v1081 = vpop.f32.mrb[0].mxu0
    %v1082 = vadd.f32 0.0, %v1081
    %v1083 = vpop.f32.mrb[0].mxu0
    %v1084 = vpop.f32.mrb[0].mxu0
    %1085 = vdwg.mxu0
    %1086 = vmatprep.subr.bf16.mxu0 %v356
    %1087 = vmatpush1.bf16.msra.mxu0 %v355
    %1088 = vmatprep.subr.bf16.mxu0 %v360
    %1089 = vmatpush1.bf16.msra.mxu0 %v359
    %1090 = vmatprep.subr.bf16.mxu0 %v364
    %1091 = vmatpush1.bf16.msra.mxu0 %v363
    %1092 = vmatprep.subr.bf16.mxu0 %v368
    %1093 = vmatpush1.bf16.msra.mxu0 %v367
    %1094 = vmatprep.subr.bf16.mxu0 %v372
    %1095 = vmatpush1.bf16.msra.mxu0 %v371
    %1096 = vmatprep.subr.bf16.mxu0 %v376
    %1097 = vmatpush1.bf16.msra.mxu0 %v375
    %1098 = vmatprep.subr.bf16.mxu0 %v380
    %1099 = vmatpush1.bf16.msra.mxu0 %v379
    %1100 = vmatprep.subr.bf16.mxu0 %v384
    %1101 = vmatpush1.bf16.msra.mxu0 %v383
    %1102 = vmatprep.subr.bf16.mxu0 %v388
    %1103 = vmatpush1.bf16.msra.mxu0 %v387
    %1104 = vmatprep.subr.bf16.mxu0 %v392
    %1105 = vmatpush1.bf16.msra.mxu0 %v391
    %1106 = vmatprep.subr.bf16.mxu0 %v396
    %1107 = vmatpush1.bf16.msra.mxu0 %v395
    %1108 = vmatprep.subr.bf16.mxu0 %v400
    %1109 = vmatpush1.bf16.msra.mxu0 %v399
    %1110 = vmatprep.subr.bf16.mxu0 %v404
    %1111 = vmatpush1.bf16.msra.mxu0 %v403
    %1112 = vmatprep.subr.bf16.mxu0 %v408
    %1113 = vmatpush1.bf16.msra.mxu0 %v407
    %1114 = vmatprep.subr.bf16.mxu0 %v412
    %1115 = vmatpush1.bf16.msra.mxu0 %v411
    %1116 = vmatprep.subr.bf16.mxu0 %v416
    %1117 = vmatpush1.bf16.msra.mxu0 %v415
    %1118 = vmatprep.mubr.bf16.mxu0 %v1035
    %1119 = vmatmul.mubr.bf16.gmra.mrb[0].mxu0 %v1033
    %v1120 = vpop.f32.mrb[0].mxu0
    %v1121 = vadd.f32 %v1080, %v1120
    %v1122 = vpop.f32.mrb[0].mxu0
    %v1123 = vadd.f32 %v1082, %v1122
    %v1124 = vpop.f32.mrb[0].mxu0
    %v1125 = vpop.f32.mrb[0].mxu0
    %1126 = vdwg.mxu0
    %1127 = vmatprep.subr.bf16.mxu0 %v420
    %1128 = vmatpush1.bf16.msra.mxu0 %v419
    %1129 = vmatprep.subr.bf16.mxu0 %v424
    %1130 = vmatpush1.bf16.msra.mxu0 %v423
    %1131 = vmatprep.subr.bf16.mxu0 %v428
    %1132 = vmatpush1.bf16.msra.mxu0 %v427
    %1133 = vmatprep.subr.bf16.mxu0 %v432
    %1134 = vmatpush1.bf16.msra.mxu0 %v431
    %1135 = vmatprep.subr.bf16.mxu0 %v436
    %1136 = vmatpush1.bf16.msra.mxu0 %v435
    %1137 = vmatprep.subr.bf16.mxu0 %v440
    %1138 = vmatpush1.bf16.msra.mxu0 %v439
    %1139 = vmatprep.subr.bf16.mxu0 %v444
    %1140 = vmatpush1.bf16.msra.mxu0 %v443
    %1141 = vmatprep.subr.bf16.mxu0 %v448
    %1142 = vmatpush1.bf16.msra.mxu0 %v447
    %1143 = vmatprep.subr.bf16.mxu0 %v452
    %1144 = vmatpush1.bf16.msra.mxu0 %v451
    %1145 = vmatprep.subr.bf16.mxu0 %v456
    %1146 = vmatpush1.bf16.msra.mxu0 %v455
    %1147 = vmatprep.subr.bf16.mxu0 %v460
    %1148 = vmatpush1.bf16.msra.mxu0 %v459
    %1149 = vmatprep.subr.bf16.mxu0 %v464
    %1150 = vmatpush1.bf16.msra.mxu0 %v463
    %1151 = vmatprep.subr.bf16.mxu0 %v468
    %1152 = vmatpush1.bf16.msra.mxu0 %v467
    %1153 = vmatprep.subr.bf16.mxu0 %v472
    %1154 = vmatpush1.bf16.msra.mxu0 %v471
    %1155 = vmatprep.subr.bf16.mxu0 %v476
    %1156 = vmatpush1.bf16.msra.mxu0 %v475
    %1157 = vmatprep.subr.bf16.mxu0 %v480
    %1158 = vmatpush1.bf16.msra.mxu0 %v479
    %1159 = vmatprep.mubr.bf16.mxu0 %v1032
    %1160 = vmatmul.mubr.bf16.gmra.mrb[0].mxu0 %v1018
    %v1161 = vpop.f32.mrb[0].mxu0
    %v1162 = vadd.f32 %v1121, %v1161
    %v1163 = vpop.f32.mrb[0].mxu0
    %v1164 = vadd.f32 %v1123, %v1163
    %v1165 = vpop.f32.mrb[0].mxu0
    %v1166 = vpop.f32.mrb[0].mxu0
    %1167 = vdwg.mxu0
    %1168 = vmatprep.subr.bf16.mxu0 %v484
    %1169 = vmatpush1.bf16.msra.mxu0 %v483
    %1170 = vmatprep.subr.bf16.mxu0 %v488
    %1171 = vmatpush1.bf16.msra.mxu0 %v487
    %1172 = vmatprep.subr.bf16.mxu0 %v492
    %1173 = vmatpush1.bf16.msra.mxu0 %v491
    %1174 = vmatprep.subr.bf16.mxu0 %v496
    %1175 = vmatpush1.bf16.msra.mxu0 %v495
    %1176 = vmatprep.subr.bf16.mxu0 %v500
    %1177 = vmatpush1.bf16.msra.mxu0 %v499
    %1178 = vmatprep.subr.bf16.mxu0 %v504
    %1179 = vmatpush1.bf16.msra.mxu0 %v503
    %1180 = vmatprep.subr.bf16.mxu0 %v508
    %1181 = vmatpush1.bf16.msra.mxu0 %v507
    %1182 = vmatprep.subr.bf16.mxu0 %v512
    %1183 = vmatpush1.bf16.msra.mxu0 %v511
    %1184 = vmatprep.subr.bf16.mxu0 %v516
    %1185 = vmatpush1.bf16.msra.mxu0 %v515
    %1186 = vmatprep.subr.bf16.mxu0 %v520
    %1187 = vmatpush1.bf16.msra.mxu0 %v519
    %1188 = vmatprep.subr.bf16.mxu0 %v524
    %1189 = vmatpush1.bf16.msra.mxu0 %v523
    %1190 = vmatprep.subr.bf16.mxu0 %v528
    %1191 = vmatpush1.bf16.msra.mxu0 %v527
    %1192 = vmatprep.subr.bf16.mxu0 %v532
    %1193 = vmatpush1.bf16.msra.mxu0 %v531
    %1194 = vmatprep.subr.bf16.mxu0 %v536
    %1195 = vmatpush1.bf16.msra.mxu0 %v535
    %1196 = vmatprep.subr.bf16.mxu0 %v540
    %1197 = vmatpush1.bf16.msra.mxu0 %v539
    %1198 = vmatprep.subr.bf16.mxu0 %v544
    %1199 = vmatpush1.bf16.msra.mxu0 %v543
    %1200 = vmatprep.mubr.bf16.mxu0 %v1036
    %1201 = vmatmul.mubr.bf16.gmra.mrb[0].mxu0 %v1034
    %v1202 = vpop.f32.mrb[0].mxu0
    %v1203 = vadd.f32 %v1162, %v1202
    %v1204 = vpop.f32.mrb[0].mxu0
    %v1205 = vadd.f32 %v1164, %v1204
    %v1206 = vpop.f32.mrb[0].mxu0
    %v1207 = vpop.f32.mrb[0].mxu0
    %1208 = vdwg.mxu0
    %1209 = vmatprep.subr.bf16.mxu0 %v294
    %1210 = vmatpush1.bf16.msra.mxu0 %v293
    %1211 = vmatprep.subr.bf16.mxu0 %v298
    %1212 = vmatpush1.bf16.msra.mxu0 %v297
    %1213 = vmatprep.subr.bf16.mxu0 %v302
    %1214 = vmatpush1.bf16.msra.mxu0 %v301
    %1215 = vmatprep.subr.bf16.mxu0 %v306
    %1216 = vmatpush1.bf16.msra.mxu0 %v305
    %1217 = vmatprep.subr.bf16.mxu0 %v310
    %1218 = vmatpush1.bf16.msra.mxu0 %v309
    %1219 = vmatprep.subr.bf16.mxu0 %v314
    %1220 = vmatpush1.bf16.msra.mxu0 %v313
    %1221 = vmatprep.subr.bf16.mxu0 %v318
    %1222 = vmatpush1.bf16.msra.mxu0 %v317
    %1223 = vmatprep.subr.bf16.mxu0 %v322
    %1224 = vmatpush1.bf16.msra.mxu0 %v321
    %1225 = vmatprep.subr.bf16.mxu0 %v326
    %1226 = vmatpush1.bf16.msra.mxu0 %v325
    %1227 = vmatprep.subr.bf16.mxu0 %v330
    %1228 = vmatpush1.bf16.msra.mxu0 %v329
    %1229 = vmatprep.subr.bf16.mxu0 %v334
    %1230 = vmatpush1.bf16.msra.mxu0 %v333
    %1231 = vmatprep.subr.bf16.mxu0 %v338
    %1232 = vmatpush1.bf16.msra.mxu0 %v337
    %1233 = vmatprep.subr.bf16.mxu0 %v342
    %1234 = vmatpush1.bf16.msra.mxu0 %v341
    %1235 = vmatprep.subr.bf16.mxu0 %v346
    %1236 = vmatpush1.bf16.msra.mxu0 %v345
    %1237 = vmatprep.subr.bf16.mxu0 %v350
    %1238 = vmatpush1.bf16.msra.mxu0 %v349
    %1239 = vmatprep.subr.bf16.mxu0 %v354
    %1240 = vmatpush1.bf16.msra.mxu0 %v353
    %1241 = vmatprep.mubr.bf16.mxu0 %v1025
    %1242 = vmatmul.mubr.bf16.gmra.mrb[0].mxu0 %v1011
    %v1243 = vpop.f32.mrb[0].mxu0
    %v1244 = vadd.f32 0.0, %v1243
    %v1245 = vpop.f32.mrb[0].mxu0
    %v1246 = vadd.f32 0.0, %v1245
    %v1247 = vpop.f32.mrb[0].mxu0
    %v1248 = vpop.f32.mrb[0].mxu0
    %1249 = vdwg.mxu0
    %1250 = vmatprep.subr.bf16.mxu0 %v358
    %1251 = vmatpush1.bf16.msra.mxu0 %v357
    %1252 = vmatprep.subr.bf16.mxu0 %v362
    %1253 = vmatpush1.bf16.msra.mxu0 %v361
    %1254 = vmatprep.subr.bf16.mxu0 %v366
    %1255 = vmatpush1.bf16.msra.mxu0 %v365
    %1256 = vmatprep.subr.bf16.mxu0 %v370
    %1257 = vmatpush1.bf16.msra.mxu0 %v369
    %1258 = vmatprep.subr.bf16.mxu0 %v374
    %1259 = vmatpush1.bf16.msra.mxu0 %v373
    %1260 = vmatprep.subr.bf16.mxu0 %v378
    %1261 = vmatpush1.bf16.msra.mxu0 %v377
    %1262 = vmatprep.subr.bf16.mxu0 %v382
    %1263 = vmatpush1.bf16.msra.mxu0 %v381
    %1264 = vmatprep.subr.bf16.mxu0 %v386
    %1265 = vmatpush1.bf16.msra.mxu0 %v385
    %1266 = vmatprep.subr.bf16.mxu0 %v390
    %1267 = vmatpush1.bf16.msra.mxu0 %v389
    %1268 = vmatprep.subr.bf16.mxu0 %v394
    %1269 = vmatpush1.bf16.msra.mxu0 %v393
    %1270 = vmatprep.subr.bf16.mxu0 %v398
    %1271 = vmatpush1.bf16.msra.mxu0 %v397
    %1272 = vmatprep.subr.bf16.mxu0 %v402
    %1273 = vmatpush1.bf16.msra.mxu0 %v401
    %1274 = vmatprep.subr.bf16.mxu0 %v406
    %1275 = vmatpush1.bf16.msra.mxu0 %v405
    %1276 = vmatprep.subr.bf16.mxu0 %v410
    %1277 = vmatpush1.bf16.msra.mxu0 %v409
    %1278 = vmatprep.subr.bf16.mxu0 %v414
    %1279 = vmatpush1.bf16.msra.mxu0 %v413
    %1280 = vmatprep.subr.bf16.mxu0 %v418
    %1281 = vmatpush1.bf16.msra.mxu0 %v417
    %1282 = vmatprep.mubr.bf16.mxu0 %v1035
    %1283 = vmatmul.mubr.bf16.gmra.mrb[0].mxu0 %v1033
    %v1284 = vpop.f32.mrb[0].mxu0
    %v1285 = vadd.f32 %v1244, %v1284
    %v1286 = vpop.f32.mrb[0].mxu0
    %v1287 = vadd.f32 %v1246, %v1286
    %v1288 = vpop.f32.mrb[0].mxu0
    %v1289 = vpop.f32.mrb[0].mxu0
    %1290 = vdwg.mxu0
    %1291 = vmatprep.subr.bf16.mxu0 %v422
    %1292 = vmatpush1.bf16.msra.mxu0 %v421
    %1293 = vmatprep.subr.bf16.mxu0 %v426
    %1294 = vmatpush1.bf16.msra.mxu0 %v425
    %1295 = vmatprep.subr.bf16.mxu0 %v430
    %1296 = vmatpush1.bf16.msra.mxu0 %v429
    %1297 = vmatprep.subr.bf16.mxu0 %v434
    %1298 = vmatpush1.bf16.msra.mxu0 %v433
    %1299 = vmatprep.subr.bf16.mxu0 %v438
    %1300 = vmatpush1.bf16.msra.mxu0 %v437
    %1301 = vmatprep.subr.bf16.mxu0 %v442
    %1302 = vmatpush1.bf16.msra.mxu0 %v441
    %1303 = vmatprep.subr.bf16.mxu0 %v446
    %1304 = vmatpush1.bf16.msra.mxu0 %v445
    %1305 = vmatprep.subr.bf16.mxu0 %v450
    %1306 = vmatpush1.bf16.msra.mxu0 %v449
    %1307 = vmatprep.subr.bf16.mxu0 %v454
    %1308 = vmatpush1.bf16.msra.mxu0 %v453
    %1309 = vmatprep.subr.bf16.mxu0 %v458
    %1310 = vmatpush1.bf16.msra.mxu0 %v457
    %1311 = vmatprep.subr.bf16.mxu0 %v462
    %1312 = vmatpush1.bf16.msra.mxu0 %v461
    %1313 = vmatprep.subr.bf16.mxu0 %v466
    %1314 = vmatpush1.bf16.msra.mxu0 %v465
    %1315 = vmatprep.subr.bf16.mxu0 %v470
    %1316 = vmatpush1.bf16.msra.mxu0 %v469
    %1317 = vmatprep.subr.bf16.mxu0 %v474
    %1318 = vmatpush1.bf16.msra.mxu0 %v473
    %1319 = vmatprep.subr.bf16.mxu0 %v478
    %1320 = vmatpush1.bf16.msra.mxu0 %v477
    %1321 = vmatprep.subr.bf16.mxu0 %v482
    %1322 = vmatpush1.bf16.msra.mxu0 %v481
    %1323 = vmatprep.mubr.bf16.mxu0 %v1032
    %1324 = vmatmul.mubr.bf16.gmra.mrb[0].mxu0 %v1018
    %v1325 = vpop.f32.mrb[0].mxu0
    %v1326 = vadd.f32 %v1285, %v1325
    %v1327 = vpop.f32.mrb[0].mxu0
    %v1328 = vadd.f32 %v1287, %v1327
    %v1329 = vpop.f32.mrb[0].mxu0
    %v1330 = vpop.f32.mrb[0].mxu0
    %1331 = vdwg.mxu0
    %1332 = vmatprep.subr.bf16.mxu0 %v486
    %1333 = vmatpush1.bf16.msra.mxu0 %v485
    %1334 = vmatprep.subr.bf16.mxu0 %v490
    %1335 = vmatpush1.bf16.msra.mxu0 %v489
    %1336 = vmatprep.subr.bf16.mxu0 %v494
    %1337 = vmatpush1.bf16.msra.mxu0 %v493
    %1338 = vmatprep.subr.bf16.mxu0 %v498
    %1339 = vmatpush1.bf16.msra.mxu0 %v497
    %1340 = vmatprep.subr.bf16.mxu0 %v502
    %1341 = vmatpush1.bf16.msra.mxu0 %v501
    %1342 = vmatprep.subr.bf16.mxu0 %v506
    %1343 = vmatpush1.bf16.msra.mxu0 %v505
    %1344 = vmatprep.subr.bf16.mxu0 %v510
    %1345 = vmatpush1.bf16.msra.mxu0 %v509
    %1346 = vmatprep.subr.bf16.mxu0 %v514
    %1347 = vmatpush1.bf16.msra.mxu0 %v513
    %1348 = vmatprep.subr.bf16.mxu0 %v518
    %1349 = vmatpush1.bf16.msra.mxu0 %v517
    %1350 = vmatprep.subr.bf16.mxu0 %v522
    %1351 = vmatpush1.bf16.msra.mxu0 %v521
    %1352 = vmatprep.subr.bf16.mxu0 %v526
    %1353 = vmatpush1.bf16.msra.mxu0 %v525
    %1354 = vmatprep.subr.bf16.mxu0 %v530
    %1355 = vmatpush1.bf16.msra.mxu0 %v529
    %1356 = vmatprep.subr.bf16.mxu0 %v534
    %1357 = vmatpush1.bf16.msra.mxu0 %v533
    %1358 = vmatprep.subr.bf16.mxu0 %v538
    %1359 = vmatpush1.bf16.msra.mxu0 %v537
    %1360 = vmatprep.subr.bf16.mxu0 %v542
    %1361 = vmatpush1.bf16.msra.mxu0 %v541
    %1362 = vmatprep.subr.bf16.mxu0 %v546
    %1363 = vmatpush1.bf16.msra.mxu0 %v545
    %1364 = vmatprep.mubr.bf16.mxu0 %v1036
    %1365 = vmatmul.mubr.bf16.gmra.mrb[0].mxu0 %v1034
    %v1366 = vpop.f32.mrb[0].mxu0
    %v1367 = vadd.f32 %v1326, %v1366
    %v1368 = vpop.f32.mrb[0].mxu0
    %v1369 = vadd.f32 %v1328, %v1368
    %v1370 = vpop.f32.mrb[0].mxu0
    %v1371 = vpop.f32.mrb[0].mxu0
    %1372 = vdwg.mxu0
    %v1373 = vmul.f32 %v1203, %v940
    %v1374 = vmul.f32 %v1205, %v944
    %v1375 = vmul.f32 %v1367, %v948
    %v1376 = vmul.f32 %v1369, %v952
    %v1377 = vadd.f32 %v1373, %v965
    %v1378 = vadd.f32 %v1374, %v969
    %v1379 = vadd.f32 %v1375, %v973
    %v1380 = vadd.f32 %v1376, %v977
    %s1381 = smul.u32 4, 192
    %s1382 = smul.u32 %s1381, 2
    %s1383 = sshll.u32 %s1382, 4
    %1384 = dma.done [#allocation4], %s1383
    %v1385 = vld [vmem:[#allocation2] sm:$0xff]
    %v1386 = vld [vmem:[#allocation2 + $0x8] sm:$0xff]
    %v1387 = vld [vmem:[#allocation2 + $0x10] sm:$0xff]
    %v1388 = vld [vmem:[#allocation2 + $0x18] sm:$0xff]
    %v1389 = vld [vmem:[#allocation2 + $0x20] sm:$0xff]
    %v1390 = vld [vmem:[#allocation2 + $0x28] sm:$0xff]
    %v1391 = vld [vmem:[#allocation2 + $0x30] sm:$0xff]
    %v1392 = vld [vmem:[#allocation2 + $0x38] sm:$0xff]
    %v1393 = vld [vmem:[#allocation2 + $0x40] sm:$0xff]
    %v1394 = vld [vmem:[#allocation2 + $0x48] sm:$0xff]
    %v1395 = vld [vmem:[#allocation2 + $0x50] sm:$0xff]
    %v1396 = vld [vmem:[#allocation2 + $0x58] sm:$0xff]
    %v1397 = vld [vmem:[#allocation2 + $0x60] sm:$0xff]
    %v1398 = vld [vmem:[#allocation2 + $0x68] sm:$0xff]
    %v1399 = vld [vmem:[#allocation2 + $0x70] sm:$0xff]
    %v1400 = vld [vmem:[#allocation2 + $0x78] sm:$0xff]
    %v1401 = vld [vmem:[#allocation2 + $0x80] sm:$0xff]
    %v1402 = vld [vmem:[#allocation2 + $0x88] sm:$0xff]
    %v1403 = vld [vmem:[#allocation2 + $0x90] sm:$0xff]
    %v1404 = vld [vmem:[#allocation2 + $0x98] sm:$0xff]
    %v1405 = vld [vmem:[#allocation2 + $0xa0] sm:$0xff]
    %v1406 = vld [vmem:[#allocation2 + $0xa8] sm:$0xff]
    %v1407 = vld [vmem:[#allocation2 + $0xb0] sm:$0xff]
    %v1408 = vld [vmem:[#allocation2 + $0xb8] sm:$0xff]
    %v1409 = vld [vmem:[#allocation2 + $0xc0] sm:$0xff]
    %v1410 = vld [vmem:[#allocation2 + $0xc8] sm:$0xff]
    %v1411 = vld [vmem:[#allocation2 + $0xd0] sm:$0xff]
    %v1412 = vld [vmem:[#allocation2 + $0xd8] sm:$0xff]
    %v1413 = vld [vmem:[#allocation2 + $0xe0] sm:$0xff]
    %v1414 = vld [vmem:[#allocation2 + $0xe8] sm:$0xff]
    %v1415 = vld [vmem:[#allocation2 + $0xf0] sm:$0xff]
    %v1416 = vld [vmem:[#allocation2 + $0xf8] sm:$0xff]
    %v1417 = vld [vmem:[#allocation2 + $0x100] sm:$0xff]
    %v1418 = vld [vmem:[#allocation2 + $0x108] sm:$0xff]
    %v1419 = vld [vmem:[#allocation2 + $0x110] sm:$0xff]
    %v1420 = vld [vmem:[#allocation2 + $0x118] sm:$0xff]
    %v1421 = vld [vmem:[#allocation2 + $0x120] sm:$0xff]
    %v1422 = vld [vmem:[#allocation2 + $0x128] sm:$0xff]
    %v1423 = vld [vmem:[#allocation2 + $0x130] sm:$0xff]
    %v1424 = vld [vmem:[#allocation2 + $0x138] sm:$0xff]
    %v1425 = vld [vmem:[#allocation2 + $0x140] sm:$0xff]
    %v1426 = vld [vmem:[#allocation2 + $0x148] sm:$0xff]
    %v1427 = vld [vmem:[#allocation2 + $0x150] sm:$0xff]
    %v1428 = vld [vmem:[#allocation2 + $0x158] sm:$0xff]
    %v1429 = vld [vmem:[#allocation2 + $0x160] sm:$0xff]
    %v1430 = vld [vmem:[#allocation2 + $0x168] sm:$0xff]
    %v1431 = vld [vmem:[#allocation2 + $0x170] sm:$0xff]
    %v1432 = vld [vmem:[#allocation2 + $0x178] sm:$0xff]
    %v1433 = vld [vmem:[#allocation2 + $0x180] sm:$0xff]
    %v1434 = vld [vmem:[#allocation2 + $0x188] sm:$0xff]
    %v1435 = vld [vmem:[#allocation2 + $0x190] sm:$0xff]
    %v1436 = vld [vmem:[#allocation2 + $0x198] sm:$0xff]
    %v1437 = vld [vmem:[#allocation2 + $0x1a0] sm:$0xff]
    %v1438 = vld [vmem:[#allocation2 + $0x1a8] sm:$0xff]
    %v1439 = vld [vmem:[#allocation2 + $0x1b0] sm:$0xff]
    %v1440 = vld [vmem:[#allocation2 + $0x1b8] sm:$0xff]
    %v1441 = vld [vmem:[#allocation2 + $0x1c0] sm:$0xff]
    %v1442 = vld [vmem:[#allocation2 + $0x1c8] sm:$0xff]
    %v1443 = vld [vmem:[#allocation2 + $0x1d0] sm:$0xff]
    %v1444 = vld [vmem:[#allocation2 + $0x1d8] sm:$0xff]
    %v1445 = vld [vmem:[#allocation2 + $0x1e0] sm:$0xff]
    %v1446 = vld [vmem:[#allocation2 + $0x1e8] sm:$0xff]
    %v1447 = vld [vmem:[#allocation2 + $0x1f0] sm:$0xff]
    %v1448 = vld [vmem:[#allocation2 + $0x1f8] sm:$0xff]
    %v1449 = vpack.c.bf16 %v982, %v982
    %v1450 = vpack.c.bf16 %v983, %v983
    %v1451 = vpack.c.bf16 %v984, %v984
    %v1452 = vpack.c.bf16 %v985, %v985
    %s1453 = scalar_lea.vmem %s6, 1
    %v1454 = vld [vmem:[%s1453] ss:$8 sm:$0x3]
    %v1456 = vlaneseq
    %v1457 = vshrl.u32 %v1456, 7
    %v1458 = vsub.s32 0, %v1457
    %v1459 = vrot.slane %v1454, %v1458
    %v1460 = vlaneseq
    %v1461 = vshrl.u32 %v1460, 7
    %v1462 = vsub.s32 1, %v1461
    %v1463 = vrot.slane %v1454, %v1462
    %1466 = vmatprep.subr.bf16.mxu0 %v1386
    %1467 = vmatpush1.bf16.msra.mxu0 %v1385
    %1468 = vmatprep.subr.bf16.mxu0 %v1388
    %1469 = vmatpush1.bf16.msra.mxu0 %v1387
    %1470 = vmatprep.subr.bf16.mxu0 %v1390
    %1471 = vmatpush1.bf16.msra.mxu0 %v1389
    %1472 = vmatprep.subr.bf16.mxu0 %v1392
    %1473 = vmatpush1.bf16.msra.mxu0 %v1391
    %1474 = vmatprep.subr.bf16.mxu0 %v1394
    %1475 = vmatpush1.bf16.msra.mxu0 %v1393
    %1476 = vmatprep.subr.bf16.mxu0 %v1396
    %1477 = vmatpush1.bf16.msra.mxu0 %v1395
    %1478 = vmatprep.subr.bf16.mxu0 %v1398
    %1479 = vmatpush1.bf16.msra.mxu0 %v1397
    %1480 = vmatprep.subr.bf16.mxu0 %v1400
    %1481 = vmatpush1.bf16.msra.mxu0 %v1399
    %1482 = vmatprep.subr.bf16.mxu0 %v1402
    %1483 = vmatpush1.bf16.msra.mxu0 %v1401
    %1484 = vmatprep.subr.bf16.mxu0 %v1404
    %1485 = vmatpush1.bf16.msra.mxu0 %v1403
    %1486 = vmatprep.subr.bf16.mxu0 %v1406
    %1487 = vmatpush1.bf16.msra.mxu0 %v1405
    %1488 = vmatprep.subr.bf16.mxu0 %v1408
    %1489 = vmatpush1.bf16.msra.mxu0 %v1407
    %1490 = vmatprep.subr.bf16.mxu0 %v1410
    %1491 = vmatpush1.bf16.msra.mxu0 %v1409
    %1492 = vmatprep.subr.bf16.mxu0 %v1412
    %1493 = vmatpush1.bf16.msra.mxu0 %v1411
    %1494 = vmatprep.subr.bf16.mxu0 %v1414
    %1495 = vmatpush1.bf16.msra.mxu0 %v1413
    %1496 = vmatprep.subr.bf16.mxu0 %v1416
    %1497 = vmatpush1.bf16.msra.mxu0 %v1415
    %1498 = vmatprep.mubr.bf16.mxu0 %v1450
    %1499 = vmatmul.mubr.bf16.gmra.mrb[0].mxu0 %v1449
    %v1500 = vpop.f32.mrb[0].mxu0
    %v1501 = vadd.f32 %v1459, %v1500
    %v1502 = vpop.f32.mrb[0].mxu0
    %v1503 = vadd.f32 %v1463, %v1502
    %v1504 = vpop.f32.mrb[0].mxu0
    %v1505 = vpop.f32.mrb[0].mxu0
    %1506 = vdwg.mxu0
    %1507 = vmatprep.subr.bf16.mxu0 %v1418
    %1508 = vmatpush1.bf16.msra.mxu0 %v1417
    %1509 = vmatprep.subr.bf16.mxu0 %v1420
    %1510 = vmatpush1.bf16.msra.mxu0 %v1419
    %1511 = vmatprep.subr.bf16.mxu0 %v1422
    %1512 = vmatpush1.bf16.msra.mxu0 %v1421
    %1513 = vmatprep.subr.bf16.mxu0 %v1424
    %1514 = vmatpush1.bf16.msra.mxu0 %v1423
    %1515 = vmatprep.subr.bf16.mxu0 %v1426
    %1516 = vmatpush1.bf16.msra.mxu0 %v1425
    %1517 = vmatprep.subr.bf16.mxu0 %v1428
    %1518 = vmatpush1.bf16.msra.mxu0 %v1427
    %1519 = vmatprep.subr.bf16.mxu0 %v1430
    %1520 = vmatpush1.bf16.msra.mxu0 %v1429
    %1521 = vmatprep.subr.bf16.mxu0 %v1432
    %1522 = vmatpush1.bf16.msra.mxu0 %v1431
    %1523 = vmatprep.subr.bf16.mxu0 %v1434
    %1524 = vmatpush1.bf16.msra.mxu0 %v1433
    %1525 = vmatprep.subr.bf16.mxu0 %v1436
    %1526 = vmatpush1.bf16.msra.mxu0 %v1435
    %1527 = vmatprep.subr.bf16.mxu0 %v1438
    %1528 = vmatpush1.bf16.msra.mxu0 %v1437
    %1529 = vmatprep.subr.bf16.mxu0 %v1440
    %1530 = vmatpush1.bf16.msra.mxu0 %v1439
    %1531 = vmatprep.subr.bf16.mxu0 %v1442
    %1532 = vmatpush1.bf16.msra.mxu0 %v1441
    %1533 = vmatprep.subr.bf16.mxu0 %v1444
    %1534 = vmatpush1.bf16.msra.mxu0 %v1443
    %1535 = vmatprep.subr.bf16.mxu0 %v1446
    %1536 = vmatpush1.bf16.msra.mxu0 %v1445
    %1537 = vmatprep.subr.bf16.mxu0 %v1448
    %1538 = vmatpush1.bf16.msra.mxu0 %v1447
    %1539 = vmatprep.mubr.bf16.mxu0 %v1452
    %1540 = vmatmul.mubr.bf16.gmra.mrb[0].mxu0 %v1451
    %v1541 = vpop.f32.mrb[0].mxu0
    %v1542 = vadd.f32 %v1501, %v1541
    %v1543 = vpop.f32.mrb[0].mxu0
    %v1544 = vadd.f32 %v1503, %v1543
    %v1545 = vpop.f32.mrb[0].mxu0
    %v1546 = vpop.f32.mrb[0].mxu0
    %1547 = vdwg.mxu0
    %v1548 = vmax.f32 %v1542, 0.0
    %v1549 = vmax.f32 %v1544, 0.0
    %vm1550 = vcmask 1041408
    %v1551 = vsel %vm1550, %v1548, 0.0
    %v1552 = vrot.slane %v1551, 4
    %v1553 = vadd.f32 %v1551, %v1552
    %v1554 = vrot.slane %v1553, 2
    %v1555 = vadd.f32 %v1553, %v1554
    %v1556 = vrot.slane %v1555, 1
    %v1557 = vadd.f32 %v1555, %v1556
    %v1558 = vsel %vm1550, %v1549, 0.0
    %v1559 = vrot.slane %v1558, 4
    %v1560 = vadd.f32 %v1558, %v1559
    %v1561 = vrot.slane %v1560, 2
    %v1562 = vadd.f32 %v1560, %v1561
    %v1563 = vrot.slane %v1562, 1
    %v1564 = vadd.f32 %v1562, %v1563
    %v1565 = vrcp.pop 2.0
    %v1566 = vmul.f32 %v1557, %v1565
    %v1567 = vmul.f32 %v1564, %v1565
    %v1568 = vsub.f32 %v1548, %v1566
    %v1569 = vsub.f32 %v1549, %v1567
    %v1570 = vmul.f32 %v1568, %v1568
    %v1571 = vmul.f32 %v1569, %v1569
    %v1572 = vsel %vm1550, %v1570, 0.0
    %v1573 = vrot.slane %v1572, 4
    %v1574 = vadd.f32 %v1572, %v1573
    %v1575 = vrot.slane %v1574, 2
    %v1576 = vadd.f32 %v1574, %v1575
    %v1577 = vrot.slane %v1576, 1
    %v1578 = vadd.f32 %v1576, %v1577
    %v1579 = vsel %vm1550, %v1571, 0.0
    %v1580 = vrot.slane %v1579, 4
    %v1581 = vadd.f32 %v1579, %v1580
    %v1582 = vrot.slane %v1581, 2
    %v1583 = vadd.f32 %v1581, %v1582
    %v1584 = vrot.slane %v1583, 1
    %v1585 = vadd.f32 %v1583, %v1584
    %v1586 = vmul.f32 %v1578, %v1565
    %v1587 = vmul.f32 %v1585, %v1565
    %v1588 = vadd.f32 %v1586, 0.2
    %v1589 = vadd.f32 %v1587, 0.2
    %v1590 = vrsqrt.pop %v1588
    %v1591 = vrsqrt.pop %v1589
    %v1592 = vmul.f32 %v1568, %v1590
    %v1593 = vmul.f32 %v1569, %v1591
    %v1594 = vld [vmem:[#allocation2 + $0x200] sm:$0xff]
    %v1595 = vld [vmem:[#allocation2 + $0x208] sm:$0xff]
    %v1596 = vld [vmem:[#allocation2 + $0x210] sm:$0xff]
    %v1597 = vld [vmem:[#allocation2 + $0x218] sm:$0xff]
    %v1598 = vld [vmem:[#allocation2 + $0x220] sm:$0xff]
    %v1599 = vld [vmem:[#allocation2 + $0x228] sm:$0xff]
    %v1600 = vld [vmem:[#allocation2 + $0x230] sm:$0xff]
    %v1601 = vld [vmem:[#allocation2 + $0x238] sm:$0xff]
    %v1602 = vld [vmem:[#allocation2 + $0x240] sm:$0xff]
    %v1603 = vld [vmem:[#allocation2 + $0x248] sm:$0xff]
    %v1604 = vld [vmem:[#allocation2 + $0x250] sm:$0xff]
    %v1605 = vld [vmem:[#allocation2 + $0x258] sm:$0xff]
    %v1606 = vld [vmem:[#allocation2 + $0x260] sm:$0xff]
    %v1607 = vld [vmem:[#allocation2 + $0x268] sm:$0xff]
    %v1608 = vld [vmem:[#allocation2 + $0x270] sm:$0xff]
    %v1609 = vld [vmem:[#allocation2 + $0x278] sm:$0xff]
    %v1610 = vld [vmem:[#allocation2 + $0x280] sm:$0xff]
    %v1611 = vld [vmem:[#allocation2 + $0x288] sm:$0xff]
    %v1612 = vld [vmem:[#allocation2 + $0x290] sm:$0xff]
    %v1613 = vld [vmem:[#allocation2 + $0x298] sm:$0xff]
    %v1614 = vld [vmem:[#allocation2 + $0x2a0] sm:$0xff]
    %v1615 = vld [vmem:[#allocation2 + $0x2a8] sm:$0xff]
    %v1616 = vld [vmem:[#allocation2 + $0x2b0] sm:$0xff]
    %v1617 = vld [vmem:[#allocation2 + $0x2b8] sm:$0xff]
    %v1618 = vld [vmem:[#allocation2 + $0x2c0] sm:$0xff]
    %v1619 = vld [vmem:[#allocation2 + $0x2c8] sm:$0xff]
    %v1620 = vld [vmem:[#allocation2 + $0x2d0] sm:$0xff]
    %v1621 = vld [vmem:[#allocation2 + $0x2d8] sm:$0xff]
    %v1622 = vld [vmem:[#allocation2 + $0x2e0] sm:$0xff]
    %v1623 = vld [vmem:[#allocation2 + $0x2e8] sm:$0xff]
    %v1624 = vld [vmem:[#allocation2 + $0x2f0] sm:$0xff]
    %v1625 = vld [vmem:[#allocation2 + $0x2f8] sm:$0xff]
    %v1626 = vpack.c.bf16 %v1592, %v1592
    %v1627 = vpack.c.bf16 %v1593, %v1593
    %s1628 = scalar_lea.vmem %s6, 2
    %v1629 = vld [vmem:[%s1628] ss:$8 sm:$0x3]
    %v1631 = vlaneseq
    %v1632 = vshrl.u32 %v1631, 7
    %v1633 = vsub.s32 0, %v1632
    %v1634 = vrot.slane %v1629, %v1633
    %v1635 = vlaneseq
    %v1636 = vshrl.u32 %v1635, 7
    %v1637 = vsub.s32 1, %v1636
    %v1638 = vrot.slane %v1629, %v1637
    %1641 = vmatprep.subr.bf16.mxu0 %v1595
    %1642 = vmatpush1.bf16.msra.mxu0 %v1594
    %1643 = vmatprep.subr.bf16.mxu0 %v1597
    %1644 = vmatpush1.bf16.msra.mxu0 %v1596
    %1645 = vmatprep.subr.bf16.mxu0 %v1599
    %1646 = vmatpush1.bf16.msra.mxu0 %v1598
    %1647 = vmatprep.subr.bf16.mxu0 %v1601
    %1648 = vmatpush1.bf16.msra.mxu0 %v1600
    %1649 = vmatprep.subr.bf16.mxu0 %v1603
    %1650 = vmatpush1.bf16.msra.mxu0 %v1602
    %1651 = vmatprep.subr.bf16.mxu0 %v1605
    %1652 = vmatpush1.bf16.msra.mxu0 %v1604
    %1653 = vmatprep.subr.bf16.mxu0 %v1607
    %1654 = vmatpush1.bf16.msra.mxu0 %v1606
    %1655 = vmatprep.subr.bf16.mxu0 %v1609
    %1656 = vmatpush1.bf16.msra.mxu0 %v1608
    %1657 = vmatprep.subr.bf16.mxu0 %v1611
    %1658 = vmatpush1.bf16.msra.mxu0 %v1610
    %1659 = vmatprep.subr.bf16.mxu0 %v1613
    %1660 = vmatpush1.bf16.msra.mxu0 %v1612
    %1661 = vmatprep.subr.bf16.mxu0 %v1615
    %1662 = vmatpush1.bf16.msra.mxu0 %v1614
    %1663 = vmatprep.subr.bf16.mxu0 %v1617
    %1664 = vmatpush1.bf16.msra.mxu0 %v1616
    %1665 = vmatprep.subr.bf16.mxu0 %v1619
    %1666 = vmatpush1.bf16.msra.mxu0 %v1618
    %1667 = vmatprep.subr.bf16.mxu0 %v1621
    %1668 = vmatpush1.bf16.msra.mxu0 %v1620
    %1669 = vmatprep.subr.bf16.mxu0 %v1623
    %1670 = vmatpush1.bf16.msra.mxu0 %v1622
    %1671 = vmatprep.subr.bf16.mxu0 %v1625
    %1672 = vmatpush1.bf16.msra.mxu0 %v1624
    %1673 = vmatprep.mubr.bf16.mxu0 %v1627
    %1674 = vmatmul.mubr.bf16.gmra.mrb[0].mxu0 %v1626
    %v1675 = vpop.f32.mrb[0].mxu0
    %v1676 = vadd.f32 %v1634, %v1675
    %v1677 = vpop.f32.mrb[0].mxu0
    %v1678 = vadd.f32 %v1638, %v1677
    %v1679 = vpop.f32.mrb[0].mxu0
    %v1680 = vpop.f32.mrb[0].mxu0
    %1681 = vdwg.mxu0
    %v1682 = vmax.f32 %v1676, 0.0
    %v1683 = vmax.f32 %v1678, 0.0
    %v1684 = vsel %vm1550, %v1682, 0.0
    %v1685 = vrot.slane %v1684, 4
    %v1686 = vadd.f32 %v1684, %v1685
    %v1687 = vrot.slane %v1686, 2
    %v1688 = vadd.f32 %v1686, %v1687
    %v1689 = vrot.slane %v1688, 1
    %v1690 = vadd.f32 %v1688, %v1689
    %v1691 = vsel %vm1550, %v1683, 0.0
    %v1692 = vrot.slane %v1691, 4
    %v1693 = vadd.f32 %v1691, %v1692
    %v1694 = vrot.slane %v1693, 2
    %v1695 = vadd.f32 %v1693, %v1694
    %v1696 = vrot.slane %v1695, 1
    %v1697 = vadd.f32 %v1695, %v1696
    %v1698 = vmul.f32 %v1690, %v1565
    %v1699 = vmul.f32 %v1697, %v1565
    %v1700 = vsub.f32 %v1682, %v1698
    %v1701 = vsub.f32 %v1683, %v1699
    %v1702 = vmul.f32 %v1700, %v1700
    %v1703 = vmul.f32 %v1701, %v1701
    %v1704 = vsel %vm1550, %v1702, 0.0
    %v1705 = vrot.slane %v1704, 4
    %v1706 = vadd.f32 %v1704, %v1705
    %v1707 = vrot.slane %v1706, 2
    %v1708 = vadd.f32 %v1706, %v1707
    %v1709 = vrot.slane %v1708, 1
    %v1710 = vadd.f32 %v1708, %v1709
    %v1711 = vsel %vm1550, %v1703, 0.0
    %v1712 = vrot.slane %v1711, 4
    %v1713 = vadd.f32 %v1711, %v1712
    %v1714 = vrot.slane %v1713, 2
    %v1715 = vadd.f32 %v1713, %v1714
    %v1716 = vrot.slane %v1715, 1
    %v1717 = vadd.f32 %v1715, %v1716
    %v1718 = vmul.f32 %v1710, %v1565
    %v1719 = vmul.f32 %v1717, %v1565
    %v1720 = vadd.f32 %v1718, 0.2
    %v1721 = vadd.f32 %v1719, 0.2
    %v1722 = vrsqrt.pop %v1720
    %v1723 = vrsqrt.pop %v1721
    %v1724 = vmul.f32 %v1700, %v1722
    %v1725 = vmul.f32 %v1701, %v1723
    %v1726 = vld [vmem:[#allocation2 + $0x300] sm:$0xff]
    %v1727 = vld [vmem:[#allocation2 + $0x308] sm:$0xff]
    %v1728 = vld [vmem:[#allocation2 + $0x310] sm:$0xff]
    %v1729 = vld [vmem:[#allocation2 + $0x318] sm:$0xff]
    %v1730 = vld [vmem:[#allocation2 + $0x320] sm:$0xff]
    %v1731 = vld [vmem:[#allocation2 + $0x328] sm:$0xff]
    %v1732 = vld [vmem:[#allocation2 + $0x330] sm:$0xff]
    %v1733 = vld [vmem:[#allocation2 + $0x338] sm:$0xff]
    %v1734 = vld [vmem:[#allocation2 + $0x340] sm:$0xff]
    %v1735 = vld [vmem:[#allocation2 + $0x348] sm:$0xff]
    %v1736 = vld [vmem:[#allocation2 + $0x350] sm:$0xff]
    %v1737 = vld [vmem:[#allocation2 + $0x358] sm:$0xff]
    %v1738 = vld [vmem:[#allocation2 + $0x360] sm:$0xff]
    %v1739 = vld [vmem:[#allocation2 + $0x368] sm:$0xff]
    %v1740 = vld [vmem:[#allocation2 + $0x370] sm:$0xff]
    %v1741 = vld [vmem:[#allocation2 + $0x378] sm:$0xff]
    %v1742 = vld [vmem:[#allocation2 + $0x380] sm:$0xff]
    %v1743 = vld [vmem:[#allocation2 + $0x388] sm:$0xff]
    %v1744 = vld [vmem:[#allocation2 + $0x390] sm:$0xff]
    %v1745 = vld [vmem:[#allocation2 + $0x398] sm:$0xff]
    %v1746 = vld [vmem:[#allocation2 + $0x3a0] sm:$0xff]
    %v1747 = vld [vmem:[#allocation2 + $0x3a8] sm:$0xff]
    %v1748 = vld [vmem:[#allocation2 + $0x3b0] sm:$0xff]
    %v1749 = vld [vmem:[#allocation2 + $0x3b8] sm:$0xff]
    %v1750 = vld [vmem:[#allocation2 + $0x3c0] sm:$0xff]
    %v1751 = vld [vmem:[#allocation2 + $0x3c8] sm:$0xff]
    %v1752 = vld [vmem:[#allocation2 + $0x3d0] sm:$0xff]
    %v1753 = vld [vmem:[#allocation2 + $0x3d8] sm:$0xff]
    %v1754 = vld [vmem:[#allocation2 + $0x3e0] sm:$0xff]
    %v1755 = vld [vmem:[#allocation2 + $0x3e8] sm:$0xff]
    %v1756 = vld [vmem:[#allocation2 + $0x3f0] sm:$0xff]
    %v1757 = vld [vmem:[#allocation2 + $0x3f8] sm:$0xff]
    %v1758 = vpack.c.bf16 %v1724, %v1724
    %v1759 = vpack.c.bf16 %v1725, %v1725
    %s1760 = scalar_lea.vmem %s6, 3
    %v1761 = vld [vmem:[%s1760] ss:$8 sm:$0x3]
    %v1763 = vlaneseq
    %v1764 = vshrl.u32 %v1763, 7
    %v1765 = vsub.s32 0, %v1764
    %v1766 = vrot.slane %v1761, %v1765
    %v1767 = vlaneseq
    %v1768 = vshrl.u32 %v1767, 7
    %v1769 = vsub.s32 1, %v1768
    %v1770 = vrot.slane %v1761, %v1769
    %1773 = vmatprep.subr.bf16.mxu0 %v1727
    %1774 = vmatpush1.bf16.msra.mxu0 %v1726
    %1775 = vmatprep.subr.bf16.mxu0 %v1729
    %1776 = vmatpush1.bf16.msra.mxu0 %v1728
    %1777 = vmatprep.subr.bf16.mxu0 %v1731
    %1778 = vmatpush1.bf16.msra.mxu0 %v1730
    %1779 = vmatprep.subr.bf16.mxu0 %v1733
    %1780 = vmatpush1.bf16.msra.mxu0 %v1732
    %1781 = vmatprep.subr.bf16.mxu0 %v1735
    %1782 = vmatpush1.bf16.msra.mxu0 %v1734
    %1783 = vmatprep.subr.bf16.mxu0 %v1737
    %1784 = vmatpush1.bf16.msra.mxu0 %v1736
    %1785 = vmatprep.subr.bf16.mxu0 %v1739
    %1786 = vmatpush1.bf16.msra.mxu0 %v1738
    %1787 = vmatprep.subr.bf16.mxu0 %v1741
    %1788 = vmatpush1.bf16.msra.mxu0 %v1740
    %1789 = vmatprep.subr.bf16.mxu0 %v1743
    %1790 = vmatpush1.bf16.msra.mxu0 %v1742
    %1791 = vmatprep.subr.bf16.mxu0 %v1745
    %1792 = vmatpush1.bf16.msra.mxu0 %v1744
    %1793 = vmatprep.subr.bf16.mxu0 %v1747
    %1794 = vmatpush1.bf16.msra.mxu0 %v1746
    %1795 = vmatprep.subr.bf16.mxu0 %v1749
    %1796 = vmatpush1.bf16.msra.mxu0 %v1748
    %1797 = vmatprep.subr.bf16.mxu0 %v1751
    %1798 = vmatpush1.bf16.msra.mxu0 %v1750
    %1799 = vmatprep.subr.bf16.mxu0 %v1753
    %1800 = vmatpush1.bf16.msra.mxu0 %v1752
    %1801 = vmatprep.subr.bf16.mxu0 %v1755
    %1802 = vmatpush1.bf16.msra.mxu0 %v1754
    %1803 = vmatprep.subr.bf16.mxu0 %v1757
    %1804 = vmatpush1.bf16.msra.mxu0 %v1756
    %1805 = vmatprep.mubr.bf16.mxu0 %v1759
    %1806 = vmatmul.mubr.bf16.gmra.mrb[0].mxu0 %v1758
    %v1807 = vpop.f32.mrb[0].mxu0
    %v1808 = vadd.f32 %v1766, %v1807
    %v1809 = vpop.f32.mrb[0].mxu0
    %v1810 = vadd.f32 %v1770, %v1809
    %v1811 = vpop.f32.mrb[0].mxu0
    %v1812 = vpop.f32.mrb[0].mxu0
    %1813 = vdwg.mxu0
    %v1814 = vmax.f32 %v1808, 0.0
    %v1815 = vmax.f32 %v1810, 0.0
    %v1816 = vsel %vm1550, %v1814, 0.0
    %v1817 = vrot.slane %v1816, 4
    %v1818 = vadd.f32 %v1816, %v1817
    %v1819 = vrot.slane %v1818, 2
    %v1820 = vadd.f32 %v1818, %v1819
    %v1821 = vrot.slane %v1820, 1
    %v1822 = vadd.f32 %v1820, %v1821
    %v1823 = vsel %vm1550, %v1815, 0.0
    %v1824 = vrot.slane %v1823, 4
    %v1825 = vadd.f32 %v1823, %v1824
    %v1826 = vrot.slane %v1825, 2
    %v1827 = vadd.f32 %v1825, %v1826
    %v1828 = vrot.slane %v1827, 1
    %v1829 = vadd.f32 %v1827, %v1828
    %v1830 = vmul.f32 %v1822, %v1565
    %v1831 = vmul.f32 %v1829, %v1565
    %v1832 = vsub.f32 %v1814, %v1830
    %v1833 = vsub.f32 %v1815, %v1831
    %v1834 = vmul.f32 %v1832, %v1832
    %v1835 = vmul.f32 %v1833, %v1833
    %v1836 = vsel %vm1550, %v1834, 0.0
    %v1837 = vrot.slane %v1836, 4
    %v1838 = vadd.f32 %v1836, %v1837
    %v1839 = vrot.slane %v1838, 2
    %v1840 = vadd.f32 %v1838, %v1839
    %v1841 = vrot.slane %v1840, 1
    %v1842 = vadd.f32 %v1840, %v1841
    %v1843 = vsel %vm1550, %v1835, 0.0
    %v1844 = vrot.slane %v1843, 4
    %v1845 = vadd.f32 %v1843, %v1844
    %v1846 = vrot.slane %v1845, 2
    %v1847 = vadd.f32 %v1845, %v1846
    %v1848 = vrot.slane %v1847, 1
    %v1849 = vadd.f32 %v1847, %v1848
    %v1850 = vmul.f32 %v1842, %v1565
    %v1851 = vmul.f32 %v1849, %v1565
    %v1852 = vadd.f32 %v1850, 0.2
    %v1853 = vadd.f32 %v1851, 0.2
    %v1854 = vrsqrt.pop %v1852
    %v1855 = vrsqrt.pop %v1853
    %v1856 = vmul.f32 %v1832, %v1854
    %v1857 = vmul.f32 %v1833, %v1855
    %v1858 = vpack.c.bf16 %v1377, %v1377
    %v1859 = vpack.c.bf16 %v1378, %v1378
    %v1860 = vpack.c.bf16 %v1379, %v1379
    %v1861 = vpack.c.bf16 %v1380, %v1380
    %1862 = vmatprep.subr.bf16.mxu0 %v1386
    %1863 = vmatpush1.bf16.msra.mxu0 %v1385
    %1864 = vmatprep.subr.bf16.mxu0 %v1388
    %1865 = vmatpush1.bf16.msra.mxu0 %v1387
    %1866 = vmatprep.subr.bf16.mxu0 %v1390
    %1867 = vmatpush1.bf16.msra.mxu0 %v1389
    %1868 = vmatprep.subr.bf16.mxu0 %v1392
    %1869 = vmatpush1.bf16.msra.mxu0 %v1391
    %1870 = vmatprep.subr.bf16.mxu0 %v1394
    %1871 = vmatpush1.bf16.msra.mxu0 %v1393
    %1872 = vmatprep.subr.bf16.mxu0 %v1396
    %1873 = vmatpush1.bf16.msra.mxu0 %v1395
    %1874 = vmatprep.subr.bf16.mxu0 %v1398
    %1875 = vmatpush1.bf16.msra.mxu0 %v1397
    %1876 = vmatprep.subr.bf16.mxu0 %v1400
    %1877 = vmatpush1.bf16.msra.mxu0 %v1399
    %1878 = vmatprep.subr.bf16.mxu0 %v1402
    %1879 = vmatpush1.bf16.msra.mxu0 %v1401
    %1880 = vmatprep.subr.bf16.mxu0 %v1404
    %1881 = vmatpush1.bf16.msra.mxu0 %v1403
    %1882 = vmatprep.subr.bf16.mxu0 %v1406
    %1883 = vmatpush1.bf16.msra.mxu0 %v1405
    %1884 = vmatprep.subr.bf16.mxu0 %v1408
    %1885 = vmatpush1.bf16.msra.mxu0 %v1407
    %1886 = vmatprep.subr.bf16.mxu0 %v1410
    %1887 = vmatpush1.bf16.msra.mxu0 %v1409
    %1888 = vmatprep.subr.bf16.mxu0 %v1412
    %1889 = vmatpush1.bf16.msra.mxu0 %v1411
    %1890 = vmatprep.subr.bf16.mxu0 %v1414
    %1891 = vmatpush1.bf16.msra.mxu0 %v1413
    %1892 = vmatprep.subr.bf16.mxu0 %v1416
    %1893 = vmatpush1.bf16.msra.mxu0 %v1415
    %1894 = vmatprep.mubr.bf16.mxu0 %v1859
    %1895 = vmatmul.mubr.bf16.gmra.mrb[0].mxu0 %v1858
    %v1896 = vpop.f32.mrb[0].mxu0
    %v1897 = vadd.f32 %v1459, %v1896
    %v1898 = vpop.f32.mrb[0].mxu0
    %v1899 = vadd.f32 %v1463, %v1898
    %v1900 = vpop.f32.mrb[0].mxu0
    %v1901 = vpop.f32.mrb[0].mxu0
    %1902 = vdwg.mxu0
    %1903 = vmatprep.subr.bf16.mxu0 %v1418
    %1904 = vmatpush1.bf16.msra.mxu0 %v1417
    %1905 = vmatprep.subr.bf16.mxu0 %v1420
    %1906 = vmatpush1.bf16.msra.mxu0 %v1419
    %1907 = vmatprep.subr.bf16.mxu0 %v1422
    %1908 = vmatpush1.bf16.msra.mxu0 %v1421
    %1909 = vmatprep.subr.bf16.mxu0 %v1424
    %1910 = vmatpush1.bf16.msra.mxu0 %v1423
    %1911 = vmatprep.subr.bf16.mxu0 %v1426
    %1912 = vmatpush1.bf16.msra.mxu0 %v1425
    %1913 = vmatprep.subr.bf16.mxu0 %v1428
    %1914 = vmatpush1.bf16.msra.mxu0 %v1427
    %1915 = vmatprep.subr.bf16.mxu0 %v1430
    %1916 = vmatpush1.bf16.msra.mxu0 %v1429
    %1917 = vmatprep.subr.bf16.mxu0 %v1432
    %1918 = vmatpush1.bf16.msra.mxu0 %v1431
    %1919 = vmatprep.subr.bf16.mxu0 %v1434
    %1920 = vmatpush1.bf16.msra.mxu0 %v1433
    %1921 = vmatprep.subr.bf16.mxu0 %v1436
    %1922 = vmatpush1.bf16.msra.mxu0 %v1435
    %1923 = vmatprep.subr.bf16.mxu0 %v1438
    %1924 = vmatpush1.bf16.msra.mxu0 %v1437
    %1925 = vmatprep.subr.bf16.mxu0 %v1440
    %1926 = vmatpush1.bf16.msra.mxu0 %v1439
    %1927 = vmatprep.subr.bf16.mxu0 %v1442
    %1928 = vmatpush1.bf16.msra.mxu0 %v1441
    %1929 = vmatprep.subr.bf16.mxu0 %v1444
    %1930 = vmatpush1.bf16.msra.mxu0 %v1443
    %1931 = vmatprep.subr.bf16.mxu0 %v1446
    %1932 = vmatpush1.bf16.msra.mxu0 %v1445
    %1933 = vmatprep.subr.bf16.mxu0 %v1448
    %1934 = vmatpush1.bf16.msra.mxu0 %v1447
    %1935 = vmatprep.mubr.bf16.mxu0 %v1861
    %1936 = vmatmul.mubr.bf16.gmra.mrb[0].mxu0 %v1860
    %v1937 = vpop.f32.mrb[0].mxu0
    %v1938 = vadd.f32 %v1897, %v1937
    %v1939 = vpop.f32.mrb[0].mxu0
    %v1940 = vadd.f32 %v1899, %v1939
    %v1941 = vpop.f32.mrb[0].mxu0
    %v1942 = vpop.f32.mrb[0].mxu0
    %1943 = vdwg.mxu0
    %v1944 = vmax.f32 %v1938, 0.0
    %v1945 = vmax.f32 %v1940, 0.0
    %v1946 = vsel %vm1550, %v1944, 0.0
    %v1947 = vrot.slane %v1946, 4
    %v1948 = vadd.f32 %v1946, %v1947
    %v1949 = vrot.slane %v1948, 2
    %v1950 = vadd.f32 %v1948, %v1949
    %v1951 = vrot.slane %v1950, 1
    %v1952 = vadd.f32 %v1950, %v1951
    %v1953 = vsel %vm1550, %v1945, 0.0
    %v1954 = vrot.slane %v1953, 4
    %v1955 = vadd.f32 %v1953, %v1954
    %v1956 = vrot.slane %v1955, 2
    %v1957 = vadd.f32 %v1955, %v1956
    %v1958 = vrot.slane %v1957, 1
    %v1959 = vadd.f32 %v1957, %v1958
    %v1960 = vmul.f32 %v1952, %v1565
    %v1961 = vmul.f32 %v1959, %v1565
    %v1962 = vsub.f32 %v1944, %v1960
    %v1963 = vsub.f32 %v1945, %v1961
    %v1964 = vmul.f32 %v1962, %v1962
    %v1965 = vmul.f32 %v1963, %v1963
    %v1966 = vsel %vm1550, %v1964, 0.0
    %v1967 = vrot.slane %v1966, 4
    %v1968 = vadd.f32 %v1966, %v1967
    %v1969 = vrot.slane %v1968, 2
    %v1970 = vadd.f32 %v1968, %v1969
    %v1971 = vrot.slane %v1970, 1
    %v1972 = vadd.f32 %v1970, %v1971
    %v1973 = vsel %vm1550, %v1965, 0.0
    %v1974 = vrot.slane %v1973, 4
    %v1975 = vadd.f32 %v1973, %v1974
    %v1976 = vrot.slane %v1975, 2
    %v1977 = vadd.f32 %v1975, %v1976
    %v1978 = vrot.slane %v1977, 1
    %v1979 = vadd.f32 %v1977, %v1978
    %v1980 = vmul.f32 %v1972, %v1565
    %v1981 = vmul.f32 %v1979, %v1565
    %v1982 = vadd.f32 %v1980, 0.2
    %v1983 = vadd.f32 %v1981, 0.2
    %v1984 = vrsqrt.pop %v1982
    %v1985 = vrsqrt.pop %v1983
    %v1986 = vmul.f32 %v1962, %v1984
    %v1987 = vmul.f32 %v1963, %v1985
    %v1988 = vpack.c.bf16 %v1986, %v1986
    %v1989 = vpack.c.bf16 %v1987, %v1987
    %1990 = vmatprep.subr.bf16.mxu0 %v1595
    %1991 = vmatpush1.bf16.msra.mxu0 %v1594
    %1992 = vmatprep.subr.bf16.mxu0 %v1597
    %1993 = vmatpush1.bf16.msra.mxu0 %v1596
    %1994 = vmatprep.subr.bf16.mxu0 %v1599
    %1995 = vmatpush1.bf16.msra.mxu0 %v1598
    %1996 = vmatprep.subr.bf16.mxu0 %v1601
    %1997 = vmatpush1.bf16.msra.mxu0 %v1600
    %1998 = vmatprep.subr.bf16.mxu0 %v1603
    %1999 = vmatpush1.bf16.msra.mxu0 %v1602
    %2000 = vmatprep.subr.bf16.mxu0 %v1605
    %2001 = vmatpush1.bf16.msra.mxu0 %v1604
    %2002 = vmatprep.subr.bf16.mxu0 %v1607
    %2003 = vmatpush1.bf16.msra.mxu0 %v1606
    %2004 = vmatprep.subr.bf16.mxu0 %v1609
    %2005 = vmatpush1.bf16.msra.mxu0 %v1608
    %2006 = vmatprep.subr.bf16.mxu0 %v1611
    %2007 = vmatpush1.bf16.msra.mxu0 %v1610
    %2008 = vmatprep.subr.bf16.mxu0 %v1613
    %2009 = vmatpush1.bf16.msra.mxu0 %v1612
    %2010 = vmatprep.subr.bf16.mxu0 %v1615
    %2011 = vmatpush1.bf16.msra.mxu0 %v1614
    %2012 = vmatprep.subr.bf16.mxu0 %v1617
    %2013 = vmatpush1.bf16.msra.mxu0 %v1616
    %2014 = vmatprep.subr.bf16.mxu0 %v1619
    %2015 = vmatpush1.bf16.msra.mxu0 %v1618
    %2016 = vmatprep.subr.bf16.mxu0 %v1621
    %2017 = vmatpush1.bf16.msra.mxu0 %v1620
    %2018 = vmatprep.subr.bf16.mxu0 %v1623
    %2019 = vmatpush1.bf16.msra.mxu0 %v1622
    %2020 = vmatprep.subr.bf16.mxu0 %v1625
    %2021 = vmatpush1.bf16.msra.mxu0 %v1624
    %2022 = vmatprep.mubr.bf16.mxu0 %v1989
    %2023 = vmatmul.mubr.bf16.gmra.mrb[0].mxu0 %v1988
    %v2024 = vpop.f32.mrb[0].mxu0
    %v2025 = vadd.f32 %v1634, %v2024
    %v2026 = vpop.f32.mrb[0].mxu0
    %v2027 = vadd.f32 %v1638, %v2026
    %v2028 = vpop.f32.mrb[0].mxu0
    %v2029 = vpop.f32.mrb[0].mxu0
    %2030 = vdwg.mxu0
    %v2031 = vmax.f32 %v2025, 0.0
    %v2032 = vmax.f32 %v2027, 0.0
    %v2033 = vsel %vm1550, %v2031, 0.0
    %v2034 = vrot.slane %v2033, 4
    %v2035 = vadd.f32 %v2033, %v2034
    %v2036 = vrot.slane %v2035, 2
    %v2037 = vadd.f32 %v2035, %v2036
    %v2038 = vrot.slane %v2037, 1
    %v2039 = vadd.f32 %v2037, %v2038
    %v2040 = vsel %vm1550, %v2032, 0.0
    %v2041 = vrot.slane %v2040, 4
    %v2042 = vadd.f32 %v2040, %v2041
    %v2043 = vrot.slane %v2042, 2
    %v2044 = vadd.f32 %v2042, %v2043
    %v2045 = vrot.slane %v2044, 1
    %v2046 = vadd.f32 %v2044, %v2045
    %v2047 = vmul.f32 %v2039, %v1565
    %v2048 = vmul.f32 %v2046, %v1565
    %v2049 = vsub.f32 %v2031, %v2047
    %v2050 = vsub.f32 %v2032, %v2048
    %v2051 = vmul.f32 %v2049, %v2049
    %v2052 = vmul.f32 %v2050, %v2050
    %v2053 = vsel %vm1550, %v2051, 0.0
    %v2054 = vrot.slane %v2053, 4
    %v2055 = vadd.f32 %v2053, %v2054
    %v2056 = vrot.slane %v2055, 2
    %v2057 = vadd.f32 %v2055, %v2056
    %v2058 = vrot.slane %v2057, 1
    %v2059 = vadd.f32 %v2057, %v2058
    %v2060 = vsel %vm1550, %v2052, 0.0
    %v2061 = vrot.slane %v2060, 4
    %v2062 = vadd.f32 %v2060, %v2061
    %v2063 = vrot.slane %v2062, 2
    %v2064 = vadd.f32 %v2062, %v2063
    %v2065 = vrot.slane %v2064, 1
    %v2066 = vadd.f32 %v2064, %v2065
    %v2067 = vmul.f32 %v2059, %v1565
    %v2068 = vmul.f32 %v2066, %v1565
    %v2069 = vadd.f32 %v2067, 0.2
    %v2070 = vadd.f32 %v2068, 0.2
    %v2071 = vrsqrt.pop %v2069
    %v2072 = vrsqrt.pop %v2070
    %v2073 = vmul.f32 %v2049, %v2071
    %v2074 = vmul.f32 %v2050, %v2072
    %v2075 = vpack.c.bf16 %v2073, %v2073
    %v2076 = vpack.c.bf16 %v2074, %v2074
    %2077 = vmatprep.subr.bf16.mxu0 %v1727
    %2078 = vmatpush1.bf16.msra.mxu0 %v1726
    %2079 = vmatprep.subr.bf16.mxu0 %v1729
    %2080 = vmatpush1.bf16.msra.mxu0 %v1728
    %2081 = vmatprep.subr.bf16.mxu0 %v1731
    %2082 = vmatpush1.bf16.msra.mxu0 %v1730
    %2083 = vmatprep.subr.bf16.mxu0 %v1733
    %2084 = vmatpush1.bf16.msra.mxu0 %v1732
    %2085 = vmatprep.subr.bf16.mxu0 %v1735
    %2086 = vmatpush1.bf16.msra.mxu0 %v1734
    %2087 = vmatprep.subr.bf16.mxu0 %v1737
    %2088 = vmatpush1.bf16.msra.mxu0 %v1736
    %2089 = vmatprep.subr.bf16.mxu0 %v1739
    %2090 = vmatpush1.bf16.msra.mxu0 %v1738
    %2091 = vmatprep.subr.bf16.mxu0 %v1741
    %2092 = vmatpush1.bf16.msra.mxu0 %v1740
    %2093 = vmatprep.subr.bf16.mxu0 %v1743
    %2094 = vmatpush1.bf16.msra.mxu0 %v1742
    %2095 = vmatprep.subr.bf16.mxu0 %v1745
    %2096 = vmatpush1.bf16.msra.mxu0 %v1744
    %2097 = vmatprep.subr.bf16.mxu0 %v1747
    %2098 = vmatpush1.bf16.msra.mxu0 %v1746
    %2099 = vmatprep.subr.bf16.mxu0 %v1749
    %2100 = vmatpush1.bf16.msra.mxu0 %v1748
    %2101 = vmatprep.subr.bf16.mxu0 %v1751
    %2102 = vmatpush1.bf16.msra.mxu0 %v1750
    %2103 = vmatprep.subr.bf16.mxu0 %v1753
    %2104 = vmatpush1.bf16.msra.mxu0 %v1752
    %2105 = vmatprep.subr.bf16.mxu0 %v1755
    %2106 = vmatpush1.bf16.msra.mxu0 %v1754
    %2107 = vmatprep.subr.bf16.mxu0 %v1757
    %2108 = vmatpush1.bf16.msra.mxu0 %v1756
    %2109 = vmatprep.mubr.bf16.mxu0 %v2076
    %2110 = vmatmul.mubr.bf16.gmra.mrb[0].mxu0 %v2075
    %v2111 = vpop.f32.mrb[0].mxu0
    %v2112 = vadd.f32 %v1766, %v2111
    %v2113 = vpop.f32.mrb[0].mxu0
    %v2114 = vadd.f32 %v1770, %v2113
    %v2115 = vpop.f32.mrb[0].mxu0
    %v2116 = vpop.f32.mrb[0].mxu0
    %2117 = vdwg.mxu0
    %v2118 = vmax.f32 %v2112, 0.0
    %v2119 = vmax.f32 %v2114, 0.0
    %v2120 = vsel %vm1550, %v2118, 0.0
    %v2121 = vrot.slane %v2120, 4
    %v2122 = vadd.f32 %v2120, %v2121
    %v2123 = vrot.slane %v2122, 2
    %v2124 = vadd.f32 %v2122, %v2123
    %v2125 = vrot.slane %v2124, 1
    %v2126 = vadd.f32 %v2124, %v2125
    %v2127 = vsel %vm1550, %v2119, 0.0
    %v2128 = vrot.slane %v2127, 4
    %v2129 = vadd.f32 %v2127, %v2128
    %v2130 = vrot.slane %v2129, 2
    %v2131 = vadd.f32 %v2129, %v2130
    %v2132 = vrot.slane %v2131, 1
    %v2133 = vadd.f32 %v2131, %v2132
    %v2134 = vmul.f32 %v2126, %v1565
    %v2135 = vmul.f32 %v2133, %v1565
    %v2136 = vsub.f32 %v2118, %v2134
    %v2137 = vsub.f32 %v2119, %v2135
    %v2138 = vmul.f32 %v2136, %v2136
    %v2139 = vmul.f32 %v2137, %v2137
    %v2140 = vsel %vm1550, %v2138, 0.0
    %v2141 = vrot.slane %v2140, 4
    %v2142 = vadd.f32 %v2140, %v2141
    %v2143 = vrot.slane %v2142, 2
    %v2144 = vadd.f32 %v2142, %v2143
    %v2145 = vrot.slane %v2144, 1
    %v2146 = vadd.f32 %v2144, %v2145
    %v2147 = vsel %vm1550, %v2139, 0.0
    %v2148 = vrot.slane %v2147, 4
    %v2149 = vadd.f32 %v2147, %v2148
    %v2150 = vrot.slane %v2149, 2
    %v2151 = vadd.f32 %v2149, %v2150
    %v2152 = vrot.slane %v2151, 1
    %v2153 = vadd.f32 %v2151, %v2152
    %v2154 = vmul.f32 %v2146, %v1565
    %v2155 = vmul.f32 %v2153, %v1565
    %v2156 = vadd.f32 %v2154, 0.2
    %v2157 = vadd.f32 %v2155, 0.2
    %v2158 = vrsqrt.pop %v2156
    %v2159 = vrsqrt.pop %v2157
    %v2160 = vmul.f32 %v2136, %v2158
    %v2161 = vmul.f32 %v2137, %v2159
    %v2162 = vld [vmem:[#allocation2 + $0x400] sm:$0xff]
    %v2163 = vld [vmem:[#allocation2 + $0x408] sm:$0xff]
    %v2164 = vld [vmem:[#allocation2 + $0x410] sm:$0xff]
    %v2165 = vld [vmem:[#allocation2 + $0x418] sm:$0xff]
    %v2166 = vld [vmem:[#allocation2 + $0x420] sm:$0xff]
    %v2167 = vld [vmem:[#allocation2 + $0x428] sm:$0xff]
    %v2168 = vld [vmem:[#allocation2 + $0x430] sm:$0xff]
    %v2169 = vld [vmem:[#allocation2 + $0x438] sm:$0xff]
    %v2170 = vld [vmem:[#allocation2 + $0x440] sm:$0xff]
    %v2171 = vld [vmem:[#allocation2 + $0x448] sm:$0xff]
    %v2172 = vld [vmem:[#allocation2 + $0x450] sm:$0xff]
    %v2173 = vld [vmem:[#allocation2 + $0x458] sm:$0xff]
    %v2174 = vld [vmem:[#allocation2 + $0x460] sm:$0xff]
    %v2175 = vld [vmem:[#allocation2 + $0x468] sm:$0xff]
    %v2176 = vld [vmem:[#allocation2 + $0x470] sm:$0xff]
    %v2177 = vld [vmem:[#allocation2 + $0x478] sm:$0xff]
    %v2178 = vld [vmem:[#allocation2 + $0x480] sm:$0xff]
    %v2179 = vld [vmem:[#allocation2 + $0x488] sm:$0xff]
    %v2180 = vld [vmem:[#allocation2 + $0x490] sm:$0xff]
    %v2181 = vld [vmem:[#allocation2 + $0x498] sm:$0xff]
    %v2182 = vld [vmem:[#allocation2 + $0x4a0] sm:$0xff]
    %v2183 = vld [vmem:[#allocation2 + $0x4a8] sm:$0xff]
    %v2184 = vld [vmem:[#allocation2 + $0x4b0] sm:$0xff]
    %v2185 = vld [vmem:[#allocation2 + $0x4b8] sm:$0xff]
    %v2186 = vld [vmem:[#allocation2 + $0x4c0] sm:$0xff]
    %v2187 = vld [vmem:[#allocation2 + $0x4c8] sm:$0xff]
    %v2188 = vld [vmem:[#allocation2 + $0x4d0] sm:$0xff]
    %v2189 = vld [vmem:[#allocation2 + $0x4d8] sm:$0xff]
    %v2190 = vld [vmem:[#allocation2 + $0x4e0] sm:$0xff]
    %v2191 = vld [vmem:[#allocation2 + $0x4e8] sm:$0xff]
    %v2192 = vld [vmem:[#allocation2 + $0x4f0] sm:$0xff]
    %v2193 = vld [vmem:[#allocation2 + $0x4f8] sm:$0xff]
    %v2194 = vpack.c.bf16 %v1856, %v1856
    %v2195 = vpack.c.bf16 %v1857, %v1857
    %v2196 = vld [vmem:[#allocation2 + $0x500] sm:$0xff]
    %v2197 = vld [vmem:[#allocation2 + $0x508] sm:$0xff]
    %v2198 = vld [vmem:[#allocation2 + $0x510] sm:$0xff]
    %v2199 = vld [vmem:[#allocation2 + $0x518] sm:$0xff]
    %v2200 = vld [vmem:[#allocation2 + $0x520] sm:$0xff]
    %v2201 = vld [vmem:[#allocation2 + $0x528] sm:$0xff]
    %v2202 = vld [vmem:[#allocation2 + $0x530] sm:$0xff]
    %v2203 = vld [vmem:[#allocation2 + $0x538] sm:$0xff]
    %v2204 = vld [vmem:[#allocation2 + $0x540] sm:$0xff]
    %v2205 = vld [vmem:[#allocation2 + $0x548] sm:$0xff]
    %v2206 = vld [vmem:[#allocation2 + $0x550] sm:$0xff]
    %v2207 = vld [vmem:[#allocation2 + $0x558] sm:$0xff]
    %v2208 = vld [vmem:[#allocation2 + $0x560] sm:$0xff]
    %v2209 = vld [vmem:[#allocation2 + $0x568] sm:$0xff]
    %v2210 = vld [vmem:[#allocation2 + $0x570] sm:$0xff]
    %v2211 = vld [vmem:[#allocation2 + $0x578] sm:$0xff]
    %v2212 = vld [vmem:[#allocation2 + $0x580] sm:$0xff]
    %v2213 = vld [vmem:[#allocation2 + $0x588] sm:$0xff]
    %v2214 = vld [vmem:[#allocation2 + $0x590] sm:$0xff]
    %v2215 = vld [vmem:[#allocation2 + $0x598] sm:$0xff]
    %v2216 = vld [vmem:[#allocation2 + $0x5a0] sm:$0xff]
    %v2217 = vld [vmem:[#allocation2 + $0x5a8] sm:$0xff]
    %v2218 = vld [vmem:[#allocation2 + $0x5b0] sm:$0xff]
    %v2219 = vld [vmem:[#allocation2 + $0x5b8] sm:$0xff]
    %v2220 = vld [vmem:[#allocation2 + $0x5c0] sm:$0xff]
    %v2221 = vld [vmem:[#allocation2 + $0x5c8] sm:$0xff]
    %v2222 = vld [vmem:[#allocation2 + $0x5d0] sm:$0xff]
    %v2223 = vld [vmem:[#allocation2 + $0x5d8] sm:$0xff]
    %v2224 = vld [vmem:[#allocation2 + $0x5e0] sm:$0xff]
    %v2225 = vld [vmem:[#allocation2 + $0x5e8] sm:$0xff]
    %v2226 = vld [vmem:[#allocation2 + $0x5f0] sm:$0xff]
    %v2227 = vld [vmem:[#allocation2 + $0x5f8] sm:$0xff]
    %v2228 = vpack.c.bf16 %v2160, %v2160
    %v2229 = vpack.c.bf16 %v2161, %v2161
    %2230 = vmatprep.subr.bf16.mxu0 %v2197
    %2231 = vmatpush1.bf16.msra.mxu0 %v2196
    %2232 = vmatprep.subr.bf16.mxu0 %v2199
    %2233 = vmatpush1.bf16.msra.mxu0 %v2198
    %2234 = vmatprep.subr.bf16.mxu0 %v2201
    %2235 = vmatpush1.bf16.msra.mxu0 %v2200
    %2236 = vmatprep.subr.bf16.mxu0 %v2203
    %2237 = vmatpush1.bf16.msra.mxu0 %v2202
    %2238 = vmatprep.subr.bf16.mxu0 %v2205
    %2239 = vmatpush1.bf16.msra.mxu0 %v2204
    %2240 = vmatprep.subr.bf16.mxu0 %v2207
    %2241 = vmatpush1.bf16.msra.mxu0 %v2206
    %2242 = vmatprep.subr.bf16.mxu0 %v2209
    %2243 = vmatpush1.bf16.msra.mxu0 %v2208
    %2244 = vmatprep.subr.bf16.mxu0 %v2211
    %2245 = vmatpush1.bf16.msra.mxu0 %v2210
    %2246 = vmatprep.subr.bf16.mxu0 %v2213
    %2247 = vmatpush1.bf16.msra.mxu0 %v2212
    %2248 = vmatprep.subr.bf16.mxu0 %v2215
    %2249 = vmatpush1.bf16.msra.mxu0 %v2214
    %2250 = vmatprep.subr.bf16.mxu0 %v2217
    %2251 = vmatpush1.bf16.msra.mxu0 %v2216
    %2252 = vmatprep.subr.bf16.mxu0 %v2219
    %2253 = vmatpush1.bf16.msra.mxu0 %v2218
    %2254 = vmatprep.subr.bf16.mxu0 %v2221
    %2255 = vmatpush1.bf16.msra.mxu0 %v2220
    %2256 = vmatprep.subr.bf16.mxu0 %v2223
    %2257 = vmatpush1.bf16.msra.mxu0 %v2222
    %2258 = vmatprep.subr.bf16.mxu0 %v2225
    %2259 = vmatpush1.bf16.msra.mxu0 %v2224
    %2260 = vmatprep.subr.bf16.mxu0 %v2227
    %2261 = vmatpush1.bf16.msra.mxu0 %v2226
    %2262 = vmatprep.mubr.bf16.mxu0 %v2229
    %2263 = vmatmul.mubr.bf16.gmra.mrb[0].mxu0 %v2228
    %v2264 = vpop.f32.mrb[0].mxu0
    %v2265 = vadd.f32 0.0, %v2264
    %v2266 = vpop.f32.mrb[0].mxu0
    %v2267 = vadd.f32 0.0, %v2266
    %v2268 = vpop.f32.mrb[0].mxu0
    %v2269 = vpop.f32.mrb[0].mxu0
    %2270 = vdwg.mxu0
    %2271 = vmatprep.subr.bf16.mxu0 %v2163
    %2272 = vmatpush1.bf16.msra.mxu0 %v2162
    %2273 = vmatprep.subr.bf16.mxu0 %v2165
    %2274 = vmatpush1.bf16.msra.mxu0 %v2164
    %2275 = vmatprep.subr.bf16.mxu0 %v2167
    %2276 = vmatpush1.bf16.msra.mxu0 %v2166
    %2277 = vmatprep.subr.bf16.mxu0 %v2169
    %2278 = vmatpush1.bf16.msra.mxu0 %v2168
    %2279 = vmatprep.subr.bf16.mxu0 %v2171
    %2280 = vmatpush1.bf16.msra.mxu0 %v2170
    %2281 = vmatprep.subr.bf16.mxu0 %v2173
    %2282 = vmatpush1.bf16.msra.mxu0 %v2172
    %2283 = vmatprep.subr.bf16.mxu0 %v2175
    %2284 = vmatpush1.bf16.msra.mxu0 %v2174
    %2285 = vmatprep.subr.bf16.mxu0 %v2177
    %2286 = vmatpush1.bf16.msra.mxu0 %v2176
    %2287 = vmatprep.subr.bf16.mxu0 %v2179
    %2288 = vmatpush1.bf16.msra.mxu0 %v2178
    %2289 = vmatprep.subr.bf16.mxu0 %v2181
    %2290 = vmatpush1.bf16.msra.mxu0 %v2180
    %2291 = vmatprep.subr.bf16.mxu0 %v2183
    %2292 = vmatpush1.bf16.msra.mxu0 %v2182
    %2293 = vmatprep.subr.bf16.mxu0 %v2185
    %2294 = vmatpush1.bf16.msra.mxu0 %v2184
    %2295 = vmatprep.subr.bf16.mxu0 %v2187
    %2296 = vmatpush1.bf16.msra.mxu0 %v2186
    %2297 = vmatprep.subr.bf16.mxu0 %v2189
    %2298 = vmatpush1.bf16.msra.mxu0 %v2188
    %2299 = vmatprep.subr.bf16.mxu0 %v2191
    %2300 = vmatpush1.bf16.msra.mxu0 %v2190
    %2301 = vmatprep.subr.bf16.mxu0 %v2193
    %2302 = vmatpush1.bf16.msra.mxu0 %v2192
    %2303 = vmatprep.mubr.bf16.mxu0 %v2195
    %2304 = vmatmul.mubr.bf16.gmra.mrb[0].mxu0 %v2194
    %v2305 = vpop.f32.mrb[0].mxu0
    %v2306 = vadd.f32 %v2265, %v2305
    %v2307 = vpop.f32.mrb[0].mxu0
    %v2308 = vadd.f32 %v2267, %v2307
    %v2309 = vpop.f32.mrb[0].mxu0
    %v2310 = vpop.f32.mrb[0].mxu0
    %2311 = vdwg.mxu0
    %s2312 = scalar_lea.vmem %s6, 4
    %v2313 = vld [vmem:[%s2312] ss:$8 sm:$0x3]
    %v2315 = vlaneseq
    %v2316 = vshrl.u32 %v2315, 7
    %v2317 = vsub.s32 0, %v2316
    %v2318 = vrot.slane %v2313, %v2317
    %v2319 = vlaneseq
    %v2320 = vshrl.u32 %v2319, 7
    %v2321 = vsub.s32 1, %v2320
    %v2322 = vrot.slane %v2313, %v2321
    %v2325 = vadd.f32 %v2306, %v2318
    %v2326 = vadd.f32 %v2308, %v2322
    %v2327 = vmax.f32 %v2325, 0.0
    %v2328 = vmax.f32 %v2326, 0.0
    %v2329 = vsel %vm1550, %v2327, 0.0
    %v2330 = vrot.slane %v2329, 4
    %v2331 = vadd.f32 %v2329, %v2330
    %v2332 = vrot.slane %v2331, 2
    %v2333 = vadd.f32 %v2331, %v2332
    %v2334 = vrot.slane %v2333, 1
    %v2335 = vadd.f32 %v2333, %v2334
    %v2336 = vsel %vm1550, %v2328, 0.0
    %v2337 = vrot.slane %v2336, 4
    %v2338 = vadd.f32 %v2336, %v2337
    %v2339 = vrot.slane %v2338, 2
    %v2340 = vadd.f32 %v2338, %v2339
    %v2341 = vrot.slane %v2340, 1
    %v2342 = vadd.f32 %v2340, %v2341
    %v2343 = vmul.f32 %v2335, %v1565
    %v2344 = vmul.f32 %v2342, %v1565
    %v2345 = vsub.f32 %v2327, %v2343
    %v2346 = vsub.f32 %v2328, %v2344
    %v2347 = vmul.f32 %v2345, %v2345
    %v2348 = vmul.f32 %v2346, %v2346
    %v2349 = vsel %vm1550, %v2347, 0.0
    %v2350 = vrot.slane %v2349, 4
    %v2351 = vadd.f32 %v2349, %v2350
    %v2352 = vrot.slane %v2351, 2
    %v2353 = vadd.f32 %v2351, %v2352
    %v2354 = vrot.slane %v2353, 1
    %v2355 = vadd.f32 %v2353, %v2354
    %v2356 = vsel %vm1550, %v2348, 0.0
    %v2357 = vrot.slane %v2356, 4
    %v2358 = vadd.f32 %v2356, %v2357
    %v2359 = vrot.slane %v2358, 2
    %v2360 = vadd.f32 %v2358, %v2359
    %v2361 = vrot.slane %v2360, 1
    %v2362 = vadd.f32 %v2360, %v2361
    %v2363 = vmul.f32 %v2355, %v1565
    %v2364 = vmul.f32 %v2362, %v1565
    %v2365 = vadd.f32 %v2363, 0.2
    %v2366 = vadd.f32 %v2364, 0.2
    %v2367 = vrsqrt.pop %v2365
    %v2368 = vrsqrt.pop %v2366
    %v2369 = vmul.f32 %v2345, %v2367
    %v2370 = vmul.f32 %v2346, %v2368
    %s2371 = smul.u32 4, 50
    %s2372 = smul.u32 %s2371, 1
    %s2373 = sshll.u32 %s2372, 4
    %2374 = dma.done %s72, %s2373
    %v2375 = vld [vmem:[#allocation3] sm:$0xff]
    %v2376 = vld [vmem:[#allocation3 + $0x8] sm:$0xff]
    %v2377 = vld [vmem:[#allocation3 + $0x10] sm:$0xff]
    %v2378 = vld [vmem:[#allocation3 + $0x18] sm:$0xff]
    %v2379 = vld [vmem:[#allocation3 + $0x20] sm:$0xff]
    %v2380 = vld [vmem:[#allocation3 + $0x28] sm:$0xff]
    %v2381 = vld [vmem:[#allocation3 + $0x30] sm:$0xff]
    %v2382 = vld [vmem:[#allocation3 + $0x38] sm:$0xff]
    %v2383 = vld [vmem:[#allocation3 + $0x40] sm:$0xff]
    %v2384 = vld [vmem:[#allocation3 + $0x48] sm:$0xff]
    %v2385 = vld [vmem:[#allocation3 + $0x50] sm:$0xff]
    %v2386 = vld [vmem:[#allocation3 + $0x58] sm:$0xff]
    %v2387 = vld [vmem:[#allocation3 + $0x60] sm:$0xff]
    %v2388 = vld [vmem:[#allocation3 + $0x68] sm:$0xff]
    %v2389 = vld [vmem:[#allocation3 + $0x70] sm:$0xff]
    %v2390 = vld [vmem:[#allocation3 + $0x78] sm:$0xff]
    %v2391 = vpack.c.bf16 %v2369, %v2369
    %v2392 = vpack.c.bf16 %v2370, %v2370
    %v2393 = vld [vmem:[%s6 + $0x5] ss:$0 sm:$0xff]
    %2394 = vmatprep.subr.bf16.mxu0 0
    %2395 = vmatpush1.bf16.msra.mxu0 %v2375
    %2396 = vmatprep.subr.bf16.mxu0 0
    %2397 = vmatpush1.bf16.msra.mxu0 %v2376
    %2398 = vmatprep.subr.bf16.mxu0 0
    %2399 = vmatpush1.bf16.msra.mxu0 %v2377
    %2400 = vmatprep.subr.bf16.mxu0 0
    %2401 = vmatpush1.bf16.msra.mxu0 %v2378
    %2402 = vmatprep.subr.bf16.mxu0 0
    %2403 = vmatpush1.bf16.msra.mxu0 %v2379
    %2404 = vmatprep.subr.bf16.mxu0 0
    %2405 = vmatpush1.bf16.msra.mxu0 %v2380
    %2406 = vmatprep.subr.bf16.mxu0 0
    %2407 = vmatpush1.bf16.msra.mxu0 %v2381
    %2408 = vmatprep.subr.bf16.mxu0 0
    %2409 = vmatpush1.bf16.msra.mxu0 %v2382
    %2410 = vmatprep.subr.bf16.mxu0 0
    %2411 = vmatpush1.bf16.msra.mxu0 %v2383
    %2412 = vmatprep.subr.bf16.mxu0 0
    %2413 = vmatpush1.bf16.msra.mxu0 %v2384
    %2414 = vmatprep.subr.bf16.mxu0 0
    %2415 = vmatpush1.bf16.msra.mxu0 %v2385
    %2416 = vmatprep.subr.bf16.mxu0 0
    %2417 = vmatpush1.bf16.msra.mxu0 %v2386
    %2418 = vmatprep.subr.bf16.mxu0 0
    %2419 = vmatpush1.bf16.msra.mxu0 %v2387
    %2420 = vmatprep.subr.bf16.mxu0 0
    %2421 = vmatpush1.bf16.msra.mxu0 %v2388
    %2422 = vmatprep.subr.bf16.mxu0 0
    %2423 = vmatpush1.bf16.msra.mxu0 %v2389
    %2424 = vmatprep.subr.bf16.mxu0 0
    %2425 = vmatpush1.bf16.msra.mxu0 %v2390
    %2426 = vmatprep.mubr.bf16.mxu0 %v2392
    %2427 = vmatmul.mubr.bf16.gmra.mrb[0].mxu0 %v2391
    %v2428 = vpop.f32.mrb[0].mxu0
    %v2429 = vadd.f32 %v2393, %v2428
    %v2430 = vpop.f32.mrb[0].mxu0
    %v2431 = vpop.f32.mrb[0].mxu0
    %v2432 = vpop.f32.mrb[0].mxu0
    %2433 = vdwg.mxu0
    %v2434 = vmax.f32 %v2429, 0.0
    %v2435 = vsel %vm1550, %v2434, 0.0
    %v2436 = vrot.slane %v2435, 4
    %v2437 = vadd.f32 %v2435, %v2436
    %v2438 = vrot.slane %v2437, 2
    %v2439 = vadd.f32 %v2437, %v2438
    %v2440 = vrot.slane %v2439, 1
    %v2441 = vadd.f32 %v2439, %v2440
    %v2442 = vmul.f32 %v2441, %v1565
    %v2443 = vsub.f32 %v2434, %v2442
    %v2444 = vmul.f32 %v2443, %v2443
    %v2445 = vsel %vm1550, %v2444, 0.0
    %v2446 = vrot.slane %v2445, 4
    %v2447 = vadd.f32 %v2445, %v2446
    %v2448 = vrot.slane %v2447, 2
    %v2449 = vadd.f32 %v2447, %v2448
    %v2450 = vrot.slane %v2449, 1
    %v2451 = vadd.f32 %v2449, %v2450
    %v2452 = vmul.f32 %v2451, %v1565
    %v2453 = vadd.f32 %v2452, 0.2
    %v2454 = vrsqrt.pop %v2453
    %v2455 = vmul.f32 %v2443, %v2454
    %v2456 = vld [vmem:[#allocation3 + $0x80] sm:$0xff]
    %v2457 = vld [vmem:[#allocation3 + $0x88] sm:$0xff]
    %v2458 = vld [vmem:[#allocation3 + $0x90] sm:$0xff]
    %v2459 = vld [vmem:[#allocation3 + $0x98] sm:$0xff]
    %v2460 = vld [vmem:[#allocation3 + $0xa0] sm:$0xff]
    %v2461 = vld [vmem:[#allocation3 + $0xa8] sm:$0xff]
    %v2462 = vld [vmem:[#allocation3 + $0xb0] sm:$0xff]
    %v2463 = vld [vmem:[#allocation3 + $0xb8] sm:$0xff]
    %v2464 = vpack.c.bf16 %v2455, %v2455
    %v2465 = vld [vmem:[%s6 + $0x6] ss:$0 sm:$0xff]
    %2466 = vmatprep.subr.bf16.mxu0 0
    %2467 = vmatpush1.bf16.msra.mxu0 %v2456
    %2468 = vmatprep.subr.bf16.mxu0 0
    %2469 = vmatpush1.bf16.msra.mxu0 %v2457
    %2470 = vmatprep.subr.bf16.mxu0 0
    %2471 = vmatpush1.bf16.msra.mxu0 %v2458
    %2472 = vmatprep.subr.bf16.mxu0 0
    %2473 = vmatpush1.bf16.msra.mxu0 %v2459
    %2474 = vmatprep.subr.bf16.mxu0 0
    %2475 = vmatpush1.bf16.msra.mxu0 %v2460
    %2476 = vmatprep.subr.bf16.mxu0 0
    %2477 = vmatpush1.bf16.msra.mxu0 %v2461
    %2478 = vmatprep.subr.bf16.mxu0 0
    %2479 = vmatpush1.bf16.msra.mxu0 %v2462
    %2480 = vmatprep.subr.bf16.mxu0 0
    %2481 = vmatpush1.bf16.msra.mxu0 %v2463
    %2482 = vmatprep.subr.bf16.mxu0 0
    %2483 = vmatpush1.bf16.msra.mxu0 0
    %2484 = vmatprep.subr.bf16.mxu0 0
    %2485 = vmatpush1.bf16.msra.mxu0 0
    %2486 = vmatprep.subr.bf16.mxu0 0
    %2487 = vmatpush1.bf16.msra.mxu0 0
    %2488 = vmatprep.subr.bf16.mxu0 0
    %2489 = vmatpush1.bf16.msra.mxu0 0
    %2490 = vmatprep.subr.bf16.mxu0 0
    %2491 = vmatpush1.bf16.msra.mxu0 0
    %2492 = vmatprep.subr.bf16.mxu0 0
    %2493 = vmatpush1.bf16.msra.mxu0 0
    %2494 = vmatprep.subr.bf16.mxu0 0
    %2495 = vmatpush1.bf16.msra.mxu0 0
    %2496 = vmatprep.subr.bf16.mxu0 0
    %2497 = vmatpush1.bf16.msra.mxu0 0
    %2498 = vmatprep.mubr.bf16.mxu0 0
    %2499 = vmatmul.mubr.bf16.gmra.mrb[0].mxu0 %v2464
    %v2500 = vpop.f32.mrb[0].mxu0
    %v2501 = vadd.f32 %v2465, %v2500
    %v2502 = vpop.f32.mrb[0].mxu0
    %v2503 = vpop.f32.mrb[0].mxu0
    %v2504 = vpop.f32.mrb[0].mxu0
    %2505 = vdwg.mxu0
    %v2506 = vmax.f32 %v2501, 0.0
    %vm2507 = vcmask 517120
    %v2508 = vsel %vm2507, %v2506, 0.0
    %v2509 = vrot.slane %v2508, 4
    %v2510 = vadd.f32 %v2508, %v2509
    %v2511 = vrot.slane %v2510, 2
    %v2512 = vadd.f32 %v2510, %v2511
    %v2513 = vrot.slane %v2512, 1
    %v2514 = vadd.f32 %v2512, %v2513
    %v2515 = vmul.f32 %v2514, %v1565
    %v2516 = vsub.f32 %v2506, %v2515
    %v2517 = vmul.f32 %v2516, %v2516
    %v2518 = vsel %vm2507, %v2517, 0.0
    %v2519 = vrot.slane %v2518, 4
    %v2520 = vadd.f32 %v2518, %v2519
    %v2521 = vrot.slane %v2520, 2
    %v2522 = vadd.f32 %v2520, %v2521
    %v2523 = vrot.slane %v2522, 1
    %v2524 = vadd.f32 %v2522, %v2523
    %v2525 = vmul.f32 %v2524, %v1565
    %v2526 = vadd.f32 %v2525, 0.2
    %v2527 = vrsqrt.pop %v2526
    %v2528 = vmul.f32 %v2516, %v2527
    %v2529 = vld [vmem:[#allocation3 + $0x80] sm:$0xff]
    %v2530 = vld [vmem:[#allocation3 + $0x88] sm:$0xff]
    %v2531 = vld [vmem:[#allocation3 + $0x90] sm:$0xff]
    %v2532 = vld [vmem:[#allocation3 + $0x98] sm:$0xff]
    %v2533 = vpack.c.bf16 %v2528, %v2528
    %v2534 = vld [vmem:[%s6 + $0x7] ss:$0 sm:$0xff]
    %2539 = vrot.lane.b32.xlu0 %v2529, 64
    %v2540 = vpop.permute.xlu0 %2539
    %2541 = vrot.lane.b32.xlu0 %v2530, 64
    %v2542 = vpop.permute.xlu0 %2541
    %2543 = vrot.lane.b32.xlu0 %v2531, 64
    %v2544 = vpop.permute.xlu0 %2543
    %2545 = vrot.lane.b32.xlu0 %v2532, 64
    %v2546 = vpop.permute.xlu0 %2545
    %vm2551 = vcmask 523264
    %v2553 = vsel %vm2551, %v2533, 0
    %2555 = vmatprep.subr.bf16.mxu0 0
    %2556 = vmatpush1.bf16.msra.mxu0 %v2540
    %2557 = vmatprep.subr.bf16.mxu0 0
    %2558 = vmatpush1.bf16.msra.mxu0 %v2542
    %2559 = vmatprep.subr.bf16.mxu0 0
    %2560 = vmatpush1.bf16.msra.mxu0 %v2544
    %2561 = vmatprep.subr.bf16.mxu0 0
    %2562 = vmatpush1.bf16.msra.mxu0 %v2546
    %2563 = vmatprep.subr.bf16.mxu0 0
    %2564 = vmatpush1.bf16.msra.mxu0 0
    %2565 = vmatprep.subr.bf16.mxu0 0
    %2566 = vmatpush1.bf16.msra.mxu0 0
    %2567 = vmatprep.subr.bf16.mxu0 0
    %2568 = vmatpush1.bf16.msra.mxu0 0
    %2569 = vmatprep.subr.bf16.mxu0 0
    %2570 = vmatpush1.bf16.msra.mxu0 0
    %2571 = vmatprep.subr.bf16.mxu0 0
    %2572 = vmatpush1.bf16.msra.mxu0 0
    %2573 = vmatprep.subr.bf16.mxu0 0
    %2574 = vmatpush1.bf16.msra.mxu0 0
    %2575 = vmatprep.subr.bf16.mxu0 0
    %2576 = vmatpush1.bf16.msra.mxu0 0
    %2577 = vmatprep.subr.bf16.mxu0 0
    %2578 = vmatpush1.bf16.msra.mxu0 0
    %2579 = vmatprep.subr.bf16.mxu0 0
    %2580 = vmatpush1.bf16.msra.mxu0 0
    %2581 = vmatprep.subr.bf16.mxu0 0
    %2582 = vmatpush1.bf16.msra.mxu0 0
    %2583 = vmatprep.subr.bf16.mxu0 0
    %2584 = vmatpush1.bf16.msra.mxu0 0
    %2585 = vmatprep.subr.bf16.mxu0 0
    %2586 = vmatpush1.bf16.msra.mxu0 0
    %2587 = vmatprep.mubr.bf16.mxu0 0
    %2588 = vmatmul.mubr.bf16.gmra.mrb[0].mxu0 %v2553
    %v2589 = vpop.f32.mrb[0].mxu0
    %v2590 = vadd.f32 %v2534, %v2589
    %v2591 = vpop.f32.mrb[0].mxu0
    %v2592 = vpop.f32.mrb[0].mxu0
    %v2593 = vpop.f32.mrb[0].mxu0
    %2594 = vdwg.mxu0
    %v2595 = vmax.f32 %v2590, 0.0
    %vm2596 = vcmask 254976
    %v2597 = vsel %vm2596, %v2595, 0.0
    %v2598 = vrot.slane %v2597, 4
    %v2599 = vadd.f32 %v2597, %v2598
    %v2600 = vrot.slane %v2599, 2
    %v2601 = vadd.f32 %v2599, %v2600
    %v2602 = vrot.slane %v2601, 1
    %v2603 = vadd.f32 %v2601, %v2602
    %v2604 = vmul.f32 %v2603, %v1565
    %v2605 = vsub.f32 %v2595, %v2604
    %v2606 = vmul.f32 %v2605, %v2605
    %v2607 = vsel %vm2596, %v2606, 0.0
    %v2608 = vrot.slane %v2607, 4
    %v2609 = vadd.f32 %v2607, %v2608
    %v2610 = vrot.slane %v2609, 2
    %v2611 = vadd.f32 %v2609, %v2610
    %v2612 = vrot.slane %v2611, 1
    %v2613 = vadd.f32 %v2611, %v2612
    %v2614 = vmul.f32 %v2613, %v1565
    %v2615 = vadd.f32 %v2614, 0.2
    %v2616 = vrsqrt.pop %v2615
    %v2617 = vmul.f32 %v2605, %v2616
    %v2618 = vld [vmem:[#allocation3 + $0x80] sm:$0xff]
    %v2619 = vld [vmem:[#allocation3 + $0x88] sm:$0xff]
    %v2620 = vpack.c.bf16 %v2617, %v2617
    %v2621 = vld [vmem:[%s6 + $0x20] ss:$0 sm:$0xff]
    %2624 = vrot.lane.b32.xlu0 %v2618, 32
    %v2625 = vpop.permute.xlu0 %2624
    %2626 = vrot.lane.b32.xlu0 %v2619, 32
    %v2627 = vpop.permute.xlu0 %2626
    %vm2630 = vcmask 261120
    %v2632 = vsel %vm2630, %v2620, 0
    %2634 = vmatprep.subr.bf16.mxu0 0
    %2635 = vmatpush1.bf16.msra.mxu0 %v2625
    %2636 = vmatprep.subr.bf16.mxu0 0
    %2637 = vmatpush1.bf16.msra.mxu0 %v2627
    %2638 = vmatprep.subr.bf16.mxu0 0
    %2639 = vmatpush1.bf16.msra.mxu0 0
    %2640 = vmatprep.subr.bf16.mxu0 0
    %2641 = vmatpush1.bf16.msra.mxu0 0
    %2642 = vmatprep.subr.bf16.mxu0 0
    %2643 = vmatpush1.bf16.msra.mxu0 0
    %2644 = vmatprep.subr.bf16.mxu0 0
    %2645 = vmatpush1.bf16.msra.mxu0 0
    %2646 = vmatprep.subr.bf16.mxu0 0
    %2647 = vmatpush1.bf16.msra.mxu0 0
    %2648 = vmatprep.subr.bf16.mxu0 0
    %2649 = vmatpush1.bf16.msra.mxu0 0
    %2650 = vmatprep.subr.bf16.mxu0 0
    %2651 = vmatpush1.bf16.msra.mxu0 0
    %2652 = vmatprep.subr.bf16.mxu0 0
    %2653 = vmatpush1.bf16.msra.mxu0 0
    %2654 = vmatprep.subr.bf16.mxu0 0
    %2655 = vmatpush1.bf16.msra.mxu0 0
    %2656 = vmatprep.subr.bf16.mxu0 0
    %2657 = vmatpush1.bf16.msra.mxu0 0
    %2658 = vmatprep.subr.bf16.mxu0 0
    %2659 = vmatpush1.bf16.msra.mxu0 0
    %2660 = vmatprep.subr.bf16.mxu0 0
    %2661 = vmatpush1.bf16.msra.mxu0 0
    %2662 = vmatprep.subr.bf16.mxu0 0
    %2663 = vmatpush1.bf16.msra.mxu0 0
    %2664 = vmatprep.subr.bf16.mxu0 0
    %2665 = vmatpush1.bf16.msra.mxu0 0
    %2666 = vmatprep.mubr.bf16.mxu0 0
    %2667 = vmatmul.mubr.bf16.gmra.mrb[0].mxu0 %v2632
    %v2668 = vpop.f32.mrb[0].mxu0
    %v2669 = vadd.f32 %v2621, %v2668
    %v2670 = vpop.f32.mrb[0].mxu0
    %v2671 = vpop.f32.mrb[0].mxu0
    %v2672 = vpop.f32.mrb[0].mxu0
    %2673 = vdwg.mxu0
    %v2674 = vmax.f32 %v2669, 0.0
    %vm2675 = vcmask 123904
    %v2676 = vsel %vm2675, %v2674, 0.0
    %v2677 = vrot.slane %v2676, 4
    %v2678 = vadd.f32 %v2676, %v2677
    %v2679 = vrot.slane %v2678, 2
    %v2680 = vadd.f32 %v2678, %v2679
    %v2681 = vrot.slane %v2680, 1
    %v2682 = vadd.f32 %v2680, %v2681
    %v2683 = vmul.f32 %v2682, %v1565
    %v2684 = vsub.f32 %v2674, %v2683
    %v2685 = vmul.f32 %v2684, %v2684
    %v2686 = vsel %vm2675, %v2685, 0.0
    %v2687 = vrot.slane %v2686, 4
    %v2688 = vadd.f32 %v2686, %v2687
    %v2689 = vrot.slane %v2688, 2
    %v2690 = vadd.f32 %v2688, %v2689
    %v2691 = vrot.slane %v2690, 1
    %v2692 = vadd.f32 %v2690, %v2691
    %v2693 = vmul.f32 %v2692, %v1565
    %v2694 = vadd.f32 %v2693, 0.2
    %v2695 = vrsqrt.pop %v2694
    %v2696 = vmul.f32 %v2684, %v2695
    %v2697 = vld [vmem:[#allocation3 + $0xc0] sm:$0xff]
    %v2698 = vpack.c.bf16 %v2696, %v2696
    %v2699 = vld [vmem:[%s6 + $0x21] ss:$0 sm:$0xff]
    %vm2700 = vcmask 130048
    %v2702 = vsel %vm2700, %v2698, 0
    %2704 = vmatprep.subr.bf16.mxu0 0
    %2705 = vmatpush1.bf16.msra.mxu0 %v2697
    %2706 = vmatprep.subr.bf16.mxu0 0
    %2707 = vmatpush1.bf16.msra.mxu0 0
    %2708 = vmatprep.subr.bf16.mxu0 0
    %2709 = vmatpush1.bf16.msra.mxu0 0
    %2710 = vmatprep.subr.bf16.mxu0 0
    %2711 = vmatpush1.bf16.msra.mxu0 0
    %2712 = vmatprep.subr.bf16.mxu0 0
    %2713 = vmatpush1.bf16.msra.mxu0 0
    %2714 = vmatprep.subr.bf16.mxu0 0
    %2715 = vmatpush1.bf16.msra.mxu0 0
    %2716 = vmatprep.subr.bf16.mxu0 0
    %2717 = vmatpush1.bf16.msra.mxu0 0
    %2718 = vmatprep.subr.bf16.mxu0 0
    %2719 = vmatpush1.bf16.msra.mxu0 0
    %2720 = vmatprep.subr.bf16.mxu0 0
    %2721 = vmatpush1.bf16.msra.mxu0 0
    %2722 = vmatprep.subr.bf16.mxu0 0
    %2723 = vmatpush1.bf16.msra.mxu0 0
    %2724 = vmatprep.subr.bf16.mxu0 0
    %2725 = vmatpush1.bf16.msra.mxu0 0
    %2726 = vmatprep.subr.bf16.mxu0 0
    %2727 = vmatpush1.bf16.msra.mxu0 0
    %2728 = vmatprep.subr.bf16.mxu0 0
    %2729 = vmatpush1.bf16.msra.mxu0 0
    %2730 = vmatprep.subr.bf16.mxu0 0
    %2731 = vmatpush1.bf16.msra.mxu0 0
    %2732 = vmatprep.subr.bf16.mxu0 0
    %2733 = vmatpush1.bf16.msra.mxu0 0
    %2734 = vmatprep.subr.bf16.mxu0 0
    %2735 = vmatpush1.bf16.msra.mxu0 0
    %2736 = vmatprep.mubr.bf16.mxu0 0
    %2737 = vmatmul.mubr.bf16.gmra.mrb[0].mxu0 %v2702
    %v2738 = vpop.f32.mrb[0].mxu0
    %v2739 = vadd.f32 %v2699, %v2738
    %v2740 = vpop.f32.mrb[0].mxu0
    %v2741 = vpop.f32.mrb[0].mxu0
    %v2742 = vpop.f32.mrb[0].mxu0
    %2743 = vdwg.mxu0
    %v2744 = vlaneseq
    %v2745 = vand.u32 %v2744, 127
    %vm2746 = vcmp.ge.s32.totalorder %v2745, 0
    %vm2747 = vcmp.lt.s32.totalorder %v2745, 3
    %vm2748 = vmand %vm2746, %vm2747
    %v2749 = vsel %vm2748, %v2739, -1e+30
    %v2750 = vsel %vm1550, %v2749, -inf
    %2751 = vmax.xlane.f32.xlu0 %v2750
    %v2752 = vpop.xlane.xlu0 %2751
    %v2753 = vsub.f32 %v2749, %v2752
    %v2754 = vmul.f32 %v2753, 1.442695
    %v2755 = vpow.pop %v2754
    %v2756 = vsel %vm1550, %v2755, 0.0
    %2757 = vadd.xlane.f32.xlu0 %v2756
    %v2758 = vpop.xlane.xlu0 %2757
    %v2759 = vrcp.pop %v2758
    %v2760 = vmul.f32 %v2755, %v2759
    %v2761 = vadd.f32 %v2760, 0.0
    %vm2762 = vcmp.ge.s32.totalorder %v2745, 3
    %vm2763 = vcmp.lt.s32.totalorder %v2745, 6
    %vm2764 = vmand %vm2762, %vm2763
    %v2765 = vsel %vm2764, %v2739, -1e+30
    %v2766 = vsel %vm1550, %v2765, -inf
    %2767 = vmax.xlane.f32.xlu0 %v2766
    %v2768 = vpop.xlane.xlu0 %2767
    %v2769 = vsub.f32 %v2765, %v2768
    %v2770 = vmul.f32 %v2769, 1.442695
    %v2771 = vpow.pop %v2770
    %v2772 = vsel %vm1550, %v2771, 0.0
    %2773 = vadd.xlane.f32.xlu0 %v2772
    %v2774 = vpop.xlane.xlu0 %2773
    %v2775 = vrcp.pop %v2774
    %v2776 = vmul.f32 %v2771, %v2775
    %v2777 = vadd.f32 %v2761, %v2776
    %vm2778 = vcmp.ge.s32.totalorder %v2745, 6
    %vm2779 = vcmp.lt.s32.totalorder %v2745, 12
    %vm2780 = vmand %vm2778, %vm2779
    %v2781 = vsel %vm2780, %v2739, -1e+30
    %v2782 = vsel %vm1550, %v2781, -inf
    %2783 = vmax.xlane.f32.xlu0 %v2782
    %v2784 = vpop.xlane.xlu0 %2783
    %v2785 = vsub.f32 %v2781, %v2784
    %v2786 = vmul.f32 %v2785, 1.442695
    %v2787 = vpow.pop %v2786
    %v2788 = vsel %vm1550, %v2787, 0.0
    %2789 = vadd.xlane.f32.xlu0 %v2788
    %v2790 = vpop.xlane.xlu0 %2789
    %v2791 = vrcp.pop %v2790
    %v2792 = vmul.f32 %v2787, %v2791
    %v2793 = vadd.f32 %v2777, %v2792
    %vm2794 = vcmp.ge.s32.totalorder %v2745, 12
    %vm2795 = vcmp.lt.s32.totalorder %v2745, 16
    %vm2796 = vmand %vm2794, %vm2795
    %v2797 = vsel %vm2796, %v2739, -1e+30
    %v2798 = vsel %vm1550, %v2797, -inf
    %2799 = vmax.xlane.f32.xlu0 %v2798
    %v2800 = vpop.xlane.xlu0 %2799
    %v2801 = vsub.f32 %v2797, %v2800
    %v2802 = vmul.f32 %v2801, 1.442695
    %v2803 = vpow.pop %v2802
    %v2804 = vsel %vm1550, %v2803, 0.0
    %2805 = vadd.xlane.f32.xlu0 %v2804
    %v2806 = vpop.xlane.xlu0 %2805
    %v2807 = vrcp.pop %v2806
    %v2808 = vmul.f32 %v2803, %v2807
    %v2809 = vadd.f32 %v2793, %v2808
    %2810 = vst [vmem:[%s7] sm:$0x3] %v2809
    // Predicated region
    $region60: #{combine_multi_output_forward.1} parent=1 // pred_check
      _
    $region61: #{combine_multi_output_forward.1} parent=1 // pred_check_branch
      %2812 = sbr.rel (0) target = $region63
    $region62: #{combine_multi_output_forward.1} parent=1 // pred_region
      _
    $region63: #{combine_multi_output_forward.1} parent=1 // pred_fallthru
      _
    // Predicated region
    $region64: #{combine_multi_output_forward.1} parent=1 // pred_check
      _
    $region65: #{combine_multi_output_forward.1} parent=1 // pred_check_branch
      %2814 = sbr.rel (0) target = $region67
    $region66: #{combine_multi_output_forward.1} parent=1 // pred_region
      _
    $region67: #{combine_multi_output_forward.1} parent=1 // pred_fallthru
      _
    %2815 = vsyncpa [#allocation6], 1
  %2816 = vsyncmov [#allocation4]
  %s2817 = vpop.sfrf %2816
  %p2818 = scmp.eq.s32.totalorder %s2817, 0
  %p2819 = pneg %p2818
  %2821 = shalt.err (%p2819)
  %s2822 = scalar_lea.sflag [#allocation4], 1
  %2823 = vsyncmov %s2822
  %s2824 = vpop.sfrf %2823
  %p2825 = scmp.eq.s32.totalorder %s2824, 0
  %p2826 = pneg %p2825
  %2828 = shalt.err (%p2826)

</llo_original>
